<compile_context>
chip_gen: v7x
topology: tpu7x:2x2x1
jax: 0.10.0
libtpu: 0.0.40
codegen_flags: <defaults>
</compile_context>

<pallas_src>
import jax
import jax.numpy as jnp
from jax.experimental import pallas as pl
from jax.experimental.pallas import tpu as pltpu

D_IN = 384
D_OUT = 1536
TILE_N = 768                 # lane-dense multiple of 128; 2 grid steps
N_TILES = D_OUT // TILE_N
EPS = 1e-6
INV_SQRT2 = 0.7071067811865476  # hoisted GELU constant


def ln_linear_gelu_kernel(x_ref, gamma_ref, beta_ref, w_ref, b_ref, o_ref):
    # x_ref:     (R, D_IN)      full row slab, constant block index across grid
    # w_ref:     (D_IN, TILE_N) contiguous weight column tile (leading dim squeezed)
    # b_ref:     (1, TILE_N)    bias tile
    # o_ref:     (R, TILE_N)    output column tile
    x = x_ref[...]

    # LayerNorm over the channel axis (fp32 throughout).
    mean = jnp.mean(x, axis=-1, keepdims=True)
    xc = x - mean
    var = jnp.mean(xc * xc, axis=-1, keepdims=True)
    inv = jax.lax.rsqrt(var + EPS)
    xn = xc * inv * gamma_ref[...] + beta_ref[...]

    # Linear column tile: (R, D_IN) @ (D_IN, TILE_N) + bias, fp32 accumulation.
    y = jnp.dot(xn, w_ref[...], preferred_element_type=jnp.float32)
    y = y + b_ref[...]

    # Exact (erf) GELU — matches torch GELU(approximate='none').
    g = 0.5 * y * (1.0 + jax.lax.erf(y * INV_SQRT2))
    o_ref[...] = g.astype(o_ref.dtype)


def prepare_weight(w):
    """One-time pre-tiling (outside the hot path): (D_IN, D_OUT) ->
    (N_TILES, D_IN, TILE_N) so each column tile is a contiguous HBM slab."""
    return jnp.transpose(w.reshape(D_IN, N_TILES, TILE_N), (1, 0, 2))


def ln_linear_gelu(x, gamma, beta, w_tiled, b):
    """x: (N, H, W, D_IN) f32, w_tiled: (N_TILES, D_IN, TILE_N) f32
    -> (N, H, W, D_OUT) f32."""
    N, H, W, D = x.shape
    assert D == D_IN
    assert w_tiled.shape == (N_TILES, D_IN, TILE_N)
    rows = N * H * W  # 196: used at full extent, no padding needed

    x2 = x.reshape(rows, D_IN)
    gamma2 = gamma.reshape(1, D_IN)
    beta2 = beta.reshape(1, D_IN)
    b2 = b.reshape(1, D_OUT)

    out = pl.pallas_call(
        ln_linear_gelu_kernel,
        out_shape=jax.ShapeDtypeStruct((rows, D_OUT), x.dtype),
        grid=(N_TILES,),
        in_specs=[
            pl.BlockSpec((rows, D_IN), lambda j: (0, 0)),        # x: fetched once
            pl.BlockSpec((1, D_IN), lambda j: (0, 0)),           # gamma
            pl.BlockSpec((1, D_IN), lambda j: (0, 0)),           # beta
            pl.BlockSpec((None, D_IN, TILE_N), lambda j: (j, 0, 0)),  # weight tile
            pl.BlockSpec((1, TILE_N), lambda j: (0, j)),          # bias tile
        ],
        out_specs=pl.BlockSpec((rows, TILE_N), lambda j: (0, j)),
        compiler_params=pltpu.CompilerParams(
            # Independent output tiles -> v7x's 2 TCs take one tile each;
            # harmless on single-TC v5e/v6e.
            dimension_semantics=("parallel",),
        ),
    )(x2, gamma2, beta2, w_tiled, b2)

    return out.reshape(N, H, W, D_OUT)


def reference(x, gamma, beta, w, b):
    xf = x.astype(jnp.float32)
    mean = jnp.mean(xf, axis=-1, keepdims=True)
    var = jnp.mean((xf - mean) ** 2, axis=-1, keepdims=True)
    xn = (xf - mean) * jax.lax.rsqrt(var + EPS) * gamma + beta
    y = xn @ w + b
    return 0.5 * y * (1.0 + jax.lax.erf(y / jnp.sqrt(2.0)))


if __name__ == "__main__":
    key = jax.random.PRNGKey(0)
    kx, kw, kb = jax.random.split(key, 3)

    # Input matching the module: (1, 14, 14, 384)
    x = jax.random.normal(kx, (1, 14, 14, D_IN), dtype=jnp.float32)

    # LayerNorm params (elementwise_affine=True): gamma=1, beta=0 (default init)
    gamma = jnp.ones((D_IN,), dtype=jnp.float32)
    beta = jnp.zeros((D_IN,), dtype=jnp.float32)

    # Linear params, PyTorch-style uniform(-1/sqrt(in), 1/sqrt(in)) init.
    bound = 1.0 / jnp.sqrt(jnp.float32(D_IN))
    w = jax.random.uniform(kw, (D_IN, D_OUT), dtype=jnp.float32,
                           minval=-bound, maxval=bound)
    b = jax.random.uniform(kb, (D_OUT,), dtype=jnp.float32,
                           minval=-bound, maxval=bound)

    # One-time weight pre-tiling (outside the hot call).
    w_tiled = jax.block_until_ready(prepare_weight(w))

    out = jax.block_until_ready(ln_linear_gelu(x, gamma, beta, w_tiled, b))

    ref = reference(x, gamma, beta, w, b)
    assert out.shape == (1, 14, 14, D_OUT)
    assert jnp.allclose(out, ref, atol=1e-4, rtol=1e-4)

    print("KERNEL_OK")
</pallas_src>

<mosaic_0001>
module attributes {stable_mosaic.version = 11 : i64} {
  func.func @ln_linear_gelu_kernel(%arg0: i32, %arg1: memref<196x384xf32, #tpu.memory_space<vmem>>, %arg2: memref<1x384xf32, #tpu.memory_space<vmem>>, %arg3: memref<1x384xf32, #tpu.memory_space<vmem>>, %arg4: memref<1x384x768xf32, #tpu.memory_space<vmem>>, %arg5: memref<1x768xf32, #tpu.memory_space<vmem>>, %arg6: memref<196x768xf32, #tpu.memory_space<vmem>>) attributes {dimension_semantics = [#tpu.dimension_semantics<parallel>], iteration_bounds = array<i64: 2>, scalar_prefetch = 0 : i64, scratch_operands = 0 : i64, tpu.core_type = #tpu.core_type<tc>, window_params = [{pipeline_mode = #tpu.pipeline_mode<synchronous>, transform_indices = @transform_0, window_bounds = array<i64: 196, 384>}, {pipeline_mode = #tpu.pipeline_mode<synchronous>, transform_indices = @transform_1, window_bounds = array<i64: 1, 384>}, {pipeline_mode = #tpu.pipeline_mode<synchronous>, transform_indices = @transform_2, window_bounds = array<i64: 1, 384>}, {transform_indices = @transform_3, window_bounds = array<i64: 1, 384, 768>}, {transform_indices = @transform_4, window_bounds = array<i64: 1, 768>}, {transform_indices = @transform_5, window_bounds = array<i64: 196, 768>}]} {
    %c0 = arith.constant 0 : index
    %c0_0 = arith.constant 0 : index
    %0 = vector.load %arg1[%c0, %c0_0] : memref<196x384xf32, #tpu.memory_space<vmem>>, vector<196x384xf32>
    %cst = arith.constant dense<0.000000e+00> : vector<196xf32>
    %1 = vector.multi_reduction <add>, %0, %cst [1] : vector<196x384xf32> to vector<196xf32>
    %2 = vector.shape_cast %1 : vector<196xf32> to vector<196x1xf32>
    %cst_1 = arith.constant 3.840000e+02 : f32
    %3 = vector.broadcast %cst_1 : f32 to vector<196x1xf32>
    %4 = arith.divf %2, %3 : vector<196x1xf32>
    %5 = vector.broadcast %4 : vector<196x1xf32> to vector<196x384xf32>
    %6 = arith.subf %0, %5 : vector<196x384xf32>
    %7 = arith.mulf %6, %6 : vector<196x384xf32>
    %cst_2 = arith.constant dense<0.000000e+00> : vector<196xf32>
    %8 = vector.multi_reduction <add>, %7, %cst_2 [1] : vector<196x384xf32> to vector<196xf32>
    %9 = vector.shape_cast %8 : vector<196xf32> to vector<196x1xf32>
    %cst_3 = arith.constant 3.840000e+02 : f32
    %10 = vector.broadcast %cst_3 : f32 to vector<196x1xf32>
    %11 = arith.divf %9, %10 : vector<196x1xf32>
    %cst_4 = arith.constant 9.99999997E-7 : f32
    %12 = vector.broadcast %cst_4 : f32 to vector<196x1xf32>
    %13 = arith.addf %11, %12 : vector<196x1xf32>
    %14 = math.rsqrt %13 : vector<196x1xf32>
    %15 = vector.broadcast %14 : vector<196x1xf32> to vector<196x384xf32>
    %16 = arith.mulf %6, %15 : vector<196x384xf32>
    %c0_5 = arith.constant 0 : index
    %c0_6 = arith.constant 0 : index
    %17 = vector.load %arg2[%c0_5, %c0_6] : memref<1x384xf32, #tpu.memory_space<vmem>>, vector<1x384xf32>
    %18 = vector.broadcast %17 : vector<1x384xf32> to vector<196x384xf32>
    %19 = arith.mulf %16, %18 : vector<196x384xf32>
    %c0_7 = arith.constant 0 : index
    %c0_8 = arith.constant 0 : index
    %20 = vector.load %arg3[%c0_7, %c0_8] : memref<1x384xf32, #tpu.memory_space<vmem>>, vector<1x384xf32>
    %21 = vector.broadcast %20 : vector<1x384xf32> to vector<196x384xf32>
    %22 = arith.addf %19, %21 : vector<196x384xf32>
    %c0_9 = arith.constant 0 : index
    %c0_10 = arith.constant 0 : index
    %c0_11 = arith.constant 0 : index
    %23 = vector.load %arg4[%c0_9, %c0_10, %c0_11] : memref<1x384x768xf32, #tpu.memory_space<vmem>>, vector<1x384x768xf32>
    %24 = vector.shape_cast %23 : vector<1x384x768xf32> to vector<384x768xf32>
    %cst_12 = arith.constant dense<0.000000e+00> : vector<196x768xf32>
    %25 = tpu.matmul %22, %24, %cst_12 {dimension_numbers = #tpu.dot_dimension_numbers<[1], [0], [0], [1], [0, 0, 1, 1], [], []>} : vector<196x384xf32>, vector<384x768xf32>, vector<196x768xf32> -> vector<196x768xf32>
    %c0_13 = arith.constant 0 : index
    %c0_14 = arith.constant 0 : index
    %26 = vector.load %arg5[%c0_13, %c0_14] : memref<1x768xf32, #tpu.memory_space<vmem>>, vector<1x768xf32>
    %27 = vector.broadcast %26 : vector<1x768xf32> to vector<196x768xf32>
    %28 = arith.addf %25, %27 : vector<196x768xf32>
    %cst_15 = arith.constant 5.000000e-01 : f32
    %29 = vector.broadcast %cst_15 : f32 to vector<196x768xf32>
    %30 = arith.mulf %29, %28 : vector<196x768xf32>
    %cst_16 = arith.constant 0.707106769 : f32
    %31 = vector.broadcast %cst_16 : f32 to vector<196x768xf32>
    %32 = arith.mulf %28, %31 : vector<196x768xf32>
    %33 = math.erf %32 : vector<196x768xf32>
    %cst_17 = arith.constant 1.000000e+00 : f32
    %34 = vector.broadcast %cst_17 : f32 to vector<196x768xf32>
    %35 = arith.addf %34, %33 : vector<196x768xf32>
    %36 = arith.mulf %30, %35 : vector<196x768xf32>
    %c0_18 = arith.constant 0 : index
    %c0_19 = arith.constant 0 : index
    %37 = vector.load %arg6[%c0_18, %c0_19] : memref<196x768xf32, #tpu.memory_space<vmem>>, vector<196x768xf32>
    tpu.vector_store %arg6[%c0_18, %c0_19], %36 {strides = array<i32>} : memref<196x768xf32, #tpu.memory_space<vmem>>, vector<196x768xf32>,
    return
  }
  func.func @transform_0(%arg0: i32) -> (i32, i32) {
    %c0_i32 = arith.constant 0 : i32
    %c0_i32_0 = arith.constant 0 : i32
    %c0_i32_1 = arith.constant 0 : i32
    return %c0_i32, %c0_i32_0 : i32, i32
  }
  func.func @transform_1(%arg0: i32) -> (i32, i32) {
    %c0_i32 = arith.constant 0 : i32
    %c0_i32_0 = arith.constant 0 : i32
    %c0_i32_1 = arith.constant 0 : i32
    return %c0_i32, %c0_i32_0 : i32, i32
  }
  func.func @transform_2(%arg0: i32) -> (i32, i32) {
    %c0_i32 = arith.constant 0 : i32
    %c0_i32_0 = arith.constant 0 : i32
    %c0_i32_1 = arith.constant 0 : i32
    return %c0_i32, %c0_i32_0 : i32, i32
  }
  func.func @transform_3(%arg0: i32) -> (i32, i32, i32) {
    %c0_i32 = arith.constant 0 : i32
    %c0_i32_0 = arith.constant 0 : i32
    %c0_i32_1 = arith.constant 0 : i32
    return %arg0, %c0_i32, %c0_i32_0 : i32, i32, i32
  }
  func.func @transform_4(%arg0: i32) -> (i32, i32) {
    %c0_i32 = arith.constant 0 : i32
    %c0_i32_0 = arith.constant 0 : i32
    return %c0_i32, %arg0 : i32, i32
  }
  func.func @transform_5(%arg0: i32) -> (i32, i32) {
    %c0_i32 = arith.constant 0 : i32
    %c0_i32_0 = arith.constant 0 : i32
    return %c0_i32, %arg0 : i32, i32
  }
}

</mosaic_0001>

<llo_original>
// kernel: tpu_custom_call.1
$region0: #{tpu_custom_call.1}
  #allocation0 [shape = 'u32[]', space=smem, size = 0x4, offset = 0x4, fixed_abs, tag = 'smem constant byte address 0x4 - core index']
  #allocation1 [shape = 'u32[144,128]{1,0:T(1,128)}', space=vmem, size = 0x12000, scoped, tag = 'internal scratch']
  %s0 = inlined_call_operand.hbm [shape: f32[196,384], index: 0, kind: input, shape index: {}]
  %s1 = inlined_call_operand.hbm [shape: f32[1,384], index: 1, kind: input, shape index: {}]
  %s2 = inlined_call_operand.hbm [shape: f32[1,384], index: 2, kind: input, shape index: {}]
  %s3 = inlined_call_operand.hbm [shape: f32[2,384,768], index: 3, kind: input, shape index: {}]
  %s4 = inlined_call_operand.hbm [shape: f32[1,1536], index: 4, kind: input, shape index: {}]
  %s5 = inlined_call_operand.hbm [shape: f32[196,1536], index: 5, kind: output, shape index: {}]
  %s6 = sld [smem:[#allocation0]]
  $region73: #{tpu_custom_call.1} parent=0
    _
  %s8 = ssub.s32 1, %s6
  %s9 = scalar_select 0, %s8, %s6
  $region1: #{tpu_custom_call.1} parent=0
    #allocation2 [shape = 'u8[307200]{0}', space=vmem, size = 0x4b000, scoped, tag = 'input window, operand 0, single buffered']
    #allocation3 [shape = 's32[2]{0}', space=sflag, size = 0x8, scoped, tag = 'scoped memory for tpu_custom_call.1']
    #allocation4 [shape = 's32[2]{0}', space=sflag, size = 0x8, scoped, tag = 'scoped memory for tpu_custom_call.1']
    #allocation5 [shape = 'u8[1536]{0}', space=vmem, size = 0x800, scoped, tag = 'input window, operand 1, single buffered']
    #allocation6 [shape = 's32[1]{0}', space=sflag, size = 0x4, scoped, tag = 'scoped memory for tpu_custom_call.1']
    #allocation7 [shape = 'u8[1536]{0}', space=vmem, size = 0x800, scoped, tag = 'input window, operand 2, single buffered']
    #allocation8 [shape = 'u8[2359296]{0}', space=vmem, size = 0x240000, scoped, tag = 'input window, operand 3']
    #allocation9 [shape = 's32[2]{0}', space=sflag, size = 0x8, scoped, tag = 'scoped memory for tpu_custom_call.1']
    #allocation10 [shape = 'u8[6144]{0}', space=vmem, size = 0x1800, scoped, tag = 'input window, operand 4']
    #allocation11 [shape = 'u8[1228800]{0}', space=vmem, size = 0x12c000, scoped, tag = 'output window, operand 0']
    %10 = vsyncpa [#allocation3], 0
    %11 = vsyncpa [#allocation6], 0
    %12 = vsyncpa [#allocation9], 0
    %s13 = scalar_lea.sflag [#allocation9], 1
    %14 = vsyncpa %s13, 0
    %15 = vsyncpa [#allocation4], 0
    %s16 = scalar_lea.sflag [#allocation4], 1
    %17 = vsyncpa %s16, 0
    loop: start=0, step=1, limit=4
    $region2: #{tpu_custom_call.1} parent=1 // loop_pre_header
      _
    $region3: #{tpu_custom_call.1} parent=1 // loop_header
      %s19 = sphi 0, %s23
      %p20 = scmp.ge.s32.totalorder %s19, 4
      %s27 = sphi 0, %s27
      %s29 = sphi 0, %s27
      %s30 = sphi 0, %s29
      %s44 = sphi 0, %s30
      %s48 = sphi 0, %s48
      %s50 = sphi 0, %s48
      %s51 = sphi 0, %s50
      %s65 = sphi 0, %s51
      %s69 = sphi 0, %s69
      %s71 = sphi 0, %s69
      %s72 = sphi 0, %s71
      %s86 = sphi 0, %s72
      %s92 = sphi 0, %s94
      %s95 = sphi 0, %s92
      %s96 = sphi 0, %s95
      %s112 = sphi 0, %s96
      %s118 = sphi 0, %s120
      %s121 = sphi 0, %s118
      %s122 = sphi 0, %s121
      %s138 = sphi 0, %s122
      %s144 = sphi 0, %s146
      %s147 = sphi 0, %s144
      %s148 = sphi 0, %s147
      %s164 = sphi 0, %s148
    $region4: #{tpu_custom_call.1} parent=1 // loop_header_branch
      %22 = sbr.rel (%p20) target = $region8
    $region5: #{tpu_custom_call.1} parent=1 // loop_body
      %s24 = ssub.s32 %s19, 1
      %s25 = ssub.s32 %s19, 2
      %s26 = sadd.s32 %s19, 1
      %s28 = sadd.s32 %s27, 1
      %p31 = scmp.eq.s32.totalorder %s19, 1
      %p32 = scmp.ne.s32.totalorder %s27, %s29
      %p33 = scmp.eq.s32.totalorder %s19, 0
      %p34 = por %p32, %p33
      %p35 = scmp.ne.s32.totalorder %s27, %s29
      %p36 = scmp.eq.s32.totalorder %s24, 1
      %p37 = por %p35, %p36
      %p38 = scmp.ne.s32.totalorder %s29, %s30
      %p39 = scmp.eq.s32.totalorder %s24, 0
      %p40 = por %p38, %p39
      %p41 = scmp.ne.s32.totalorder %s29, %s30
      %p42 = scmp.eq.s32.totalorder %s25, 1
      %p43 = por %p41, %p42
      %p45 = scmp.ne.s32.totalorder %s30, %s44
      %p46 = scmp.eq.s32.totalorder %s25, 0
      %p47 = por %p45, %p46
      %s49 = sadd.s32 %s48, 1
      %p52 = scmp.eq.s32.totalorder %s19, 1
      %p53 = scmp.ne.s32.totalorder %s48, %s50
      %p54 = scmp.eq.s32.totalorder %s19, 0
      %p55 = por %p53, %p54
      %p56 = scmp.ne.s32.totalorder %s48, %s50
      %p57 = scmp.eq.s32.totalorder %s24, 1
      %p58 = por %p56, %p57
      %p59 = scmp.ne.s32.totalorder %s50, %s51
      %p60 = scmp.eq.s32.totalorder %s24, 0
      %p61 = por %p59, %p60
      %p62 = scmp.ne.s32.totalorder %s50, %s51
      %p63 = scmp.eq.s32.totalorder %s25, 1
      %p64 = por %p62, %p63
      %p66 = scmp.ne.s32.totalorder %s51, %s65
      %p67 = scmp.eq.s32.totalorder %s25, 0
      %p68 = por %p66, %p67
      %s70 = sadd.s32 %s69, 1
      %p73 = scmp.eq.s32.totalorder %s19, 1
      %p74 = scmp.ne.s32.totalorder %s69, %s71
      %p75 = scmp.eq.s32.totalorder %s19, 0
      %p76 = por %p74, %p75
      %p77 = scmp.ne.s32.totalorder %s69, %s71
      %p78 = scmp.eq.s32.totalorder %s24, 1
      %p79 = por %p77, %p78
      %p80 = scmp.ne.s32.totalorder %s71, %s72
      %p81 = scmp.eq.s32.totalorder %s24, 0
      %p82 = por %p80, %p81
      %p83 = scmp.ne.s32.totalorder %s71, %s72
      %p84 = scmp.eq.s32.totalorder %s25, 1
      %p85 = por %p83, %p84
      %p87 = scmp.ne.s32.totalorder %s72, %s86
      %p88 = scmp.eq.s32.totalorder %s25, 0
      %p89 = por %p87, %p88
      %s90 = ssub.s32 %s19, %s26
      %p91 = scmp.eq.s32.totalorder %s90, 0
      %s93 = sadd.s32 %s92, 1
      %s94 = scalar_select %p91, %s92, %s93
      %p97 = pneg %p91
      %p98 = scmp.eq.s32.totalorder %s19, 1
      %p99 = por %p97, %p98
      %p100 = scmp.ne.s32.totalorder %s92, %s95
      %p101 = scmp.eq.s32.totalorder %s19, 0
      %p102 = por %p100, %p101
      %p103 = scmp.ne.s32.totalorder %s92, %s95
      %p104 = scmp.eq.s32.totalorder %s24, 1
      %p105 = por %p103, %p104
      %p106 = scmp.ne.s32.totalorder %s95, %s96
      %p107 = scmp.eq.s32.totalorder %s24, 0
      %p108 = por %p106, %p107
      %p109 = scmp.ne.s32.totalorder %s95, %s96
      %p110 = scmp.eq.s32.totalorder %s25, 1
      %p111 = por %p109, %p110
      %p113 = scmp.ne.s32.totalorder %s96, %s112
      %p114 = scmp.eq.s32.totalorder %s25, 0
      %p115 = por %p113, %p114
      %s116 = ssub.s32 %s19, %s26
      %p117 = scmp.eq.s32.totalorder %s116, 0
      %s119 = sadd.s32 %s118, 1
      %s120 = scalar_select %p117, %s118, %s119
      %p123 = pneg %p117
      %p124 = scmp.eq.s32.totalorder %s19, 1
      %p125 = por %p123, %p124
      %p126 = scmp.ne.s32.totalorder %s118, %s121
      %p127 = scmp.eq.s32.totalorder %s19, 0
      %p128 = por %p126, %p127
      %p129 = scmp.ne.s32.totalorder %s118, %s121
      %p130 = scmp.eq.s32.totalorder %s24, 1
      %p131 = por %p129, %p130
      %p132 = scmp.ne.s32.totalorder %s121, %s122
      %p133 = scmp.eq.s32.totalorder %s24, 0
      %p134 = por %p132, %p133
      %p135 = scmp.ne.s32.totalorder %s121, %s122
      %p136 = scmp.eq.s32.totalorder %s25, 1
      %p137 = por %p135, %p136
      %p139 = scmp.ne.s32.totalorder %s122, %s138
      %p140 = scmp.eq.s32.totalorder %s25, 0
      %p141 = por %p139, %p140
      %s142 = ssub.s32 %s19, %s26
      %p143 = scmp.eq.s32.totalorder %s142, 0
      %s145 = sadd.s32 %s144, 1
      %s146 = scalar_select %p143, %s144, %s145
      %p149 = pneg %p143
      %p150 = scmp.eq.s32.totalorder %s19, 1
      %p151 = por %p149, %p150
      %p152 = scmp.ne.s32.totalorder %s144, %s147
      %p153 = scmp.eq.s32.totalorder %s19, 0
      %p154 = por %p152, %p153
      %p155 = scmp.ne.s32.totalorder %s144, %s147
      %p156 = scmp.eq.s32.totalorder %s24, 1
      %p157 = por %p155, %p156
      %p158 = scmp.ne.s32.totalorder %s147, %s148
      %p159 = scmp.eq.s32.totalorder %s24, 0
      %p160 = por %p158, %p159
      %p161 = scmp.ne.s32.totalorder %s147, %s148
      %p162 = scmp.eq.s32.totalorder %s25, 1
      %p163 = por %p161, %p162
      %p165 = scmp.ne.s32.totalorder %s148, %s164
      %p166 = scmp.eq.s32.totalorder %s25, 0
      %p167 = por %p165, %p166
      %p168 = scmp.le.s32.totalorder 1, %s19
      %p169 = scmp.lt.s32.totalorder %s19, 3
      %p170 = pnand %p168, %p169
      %p171 = pneg %p170
      // Predicated region
      $region9: #{tpu_custom_call.1} parent=5 // pred_check
        _
      $region10: #{tpu_custom_call.1} parent=5 // pred_check_branch
        %173 = sbr.rel (%p170) target = $region12
      $region11: #{tpu_custom_call.1} parent=5 // pred_region
        %s174 = ssub.s32 %s19, 1
        // Predicated region
        $region13: #{tpu_custom_call.1} parent=11 // pred_check
          %p175 = pneg %p40
        $region14: #{tpu_custom_call.1} parent=11 // pred_check_branch
          %177 = sbr.rel (%p175) target = $region16
        $region15: #{tpu_custom_call.1} parent=11 // pred_region
          %s179 = ssub.s32 9600, 9600
          %180 = vsyncadd [#allocation3], %s179
          %s181 = sshll.u32 [#allocation2], 4
          %s182 = int_to_ptr.vmem [resolvable:$true] %s181
          %187 = dma.hbm_to_vmem [thread:$0]  %s0, 9600, %s182, [#allocation3], 384, 384, 24
        $region16: #{tpu_custom_call.1} parent=11 // pred_fallthru
          _
        // Predicated region
        $region17: #{tpu_custom_call.1} parent=11 // pred_check
          %p188 = pneg %p61
        $region18: #{tpu_custom_call.1} parent=11 // pred_check_branch
          %190 = sbr.rel (%p188) target = $region20
        $region19: #{tpu_custom_call.1} parent=11 // pred_region
          %s192 = ssub.s32 48, 48
          %193 = vsyncadd [#allocation6], %s192
          %s195 = sshll.u32 [#allocation5], 4
          %s196 = int_to_ptr.vmem [resolvable:$true] %s195
          %198 = dma.hbm_to_vmem [thread:$0]  %s1, 48, %s196, [#allocation6]
        $region20: #{tpu_custom_call.1} parent=11 // pred_fallthru
          _
        // Predicated region
        $region21: #{tpu_custom_call.1} parent=11 // pred_check
          %p199 = pneg %p82
        $region22: #{tpu_custom_call.1} parent=11 // pred_check_branch
          %201 = sbr.rel (%p199) target = $region24
        $region23: #{tpu_custom_call.1} parent=11 // pred_region
          %s203 = ssub.s32 48, 48
          %204 = vsyncadd [#allocation6], %s203
          %s206 = sshll.u32 [#allocation7], 4
          %s207 = int_to_ptr.vmem [resolvable:$true] %s206
          %209 = dma.hbm_to_vmem [thread:$0]  %s2, 48, %s207, [#allocation6]
        $region24: #{tpu_custom_call.1} parent=11 // pred_fallthru
          _
      $region12: #{tpu_custom_call.1} parent=5 // pred_fallthru
        _
      %p210 = scmp.lt.s32.totalorder %s19, 2
      // Predicated region
      $region25: #{tpu_custom_call.1} parent=5 // pred_check
        %p211 = pneg %p210
      $region26: #{tpu_custom_call.1} parent=5 // pred_check_branch
        %213 = sbr.rel (%p211) target = $region28
      $region27: #{tpu_custom_call.1} parent=5 // pred_region
        // Predicated region
        $region29: #{tpu_custom_call.1} parent=27 // pred_check
          %p214 = pneg %p102
        $region30: #{tpu_custom_call.1} parent=27 // pred_check_branch
          %216 = sbr.rel (%p214) target = $region32
        $region31: #{tpu_custom_call.1} parent=27 // pred_region
          %s217 = sand.u32 %s19, 1
          %s218 = scalar_lea.sflag [#allocation9], %s217
          %s219 = sand.u32 %s92, 1
          %s220 = smul.addr %s219, 2304
          %s221 = scalar_lea.vmem [#allocation8], %s220
          %s223 = ssub.s32 36864, 36864
          %224 = vsyncadd %s218, %s223
          %s225 = smul.addr %s19, 288
          %s226 = smul.addr %s225, 128
          %s227 = scalar_lea.hbm %s3, %s226
          %s228 = sshll.u32 %s221, 4
          %s229 = int_to_ptr.vmem [resolvable:$true] %s228
          %234 = dma.hbm_to_vmem [thread:$0]  %s227, 36864, %s229, %s218, 768, 768, 48
        $region32: #{tpu_custom_call.1} parent=27 // pred_fallthru
          _
        // Predicated region
        $region33: #{tpu_custom_call.1} parent=27 // pred_check
          %p235 = pneg %p128
        $region34: #{tpu_custom_call.1} parent=27 // pred_check_branch
          %237 = sbr.rel (%p235) target = $region36
        $region35: #{tpu_custom_call.1} parent=27 // pred_region
          %s238 = sand.u32 %s19, 1
          %s239 = scalar_lea.sflag [#allocation9], %s238
          %s240 = sand.u32 %s118, 1
          %s241 = smul.addr %s240, 6
          %s242 = scalar_lea.vmem [#allocation10], %s241
          %s243 = smul.u32 6, %s19
          %s245 = ssub.s32 96, 96
          %246 = vsyncadd %s239, %s245
          %s247 = smul.addr %s243, 16
          %s248 = scalar_lea.hbm %s4, %s247
          %s250 = sshll.u32 %s242, 4
          %s251 = int_to_ptr.vmem [resolvable:$true] %s250
          %253 = dma.hbm_to_vmem [thread:$0]  %s248, 96, %s251, %s239
        $region36: #{tpu_custom_call.1} parent=27 // pred_fallthru
          _
      $region28: #{tpu_custom_call.1} parent=5 // pred_fallthru
        _
      %p254 = scmp.le.s32.totalorder 1, %s19
      %p255 = scmp.lt.s32.totalorder %s19, 3
      %p256 = pnand %p254, %p255
      %p257 = pneg %p256
      // Predicated region
      $region37: #{tpu_custom_call.1} parent=5 // pred_check
        _
      $region38: #{tpu_custom_call.1} parent=5 // pred_check_branch
        %259 = sbr.rel (%p256) target = $region40
      $region39: #{tpu_custom_call.1} parent=5 // pred_region
        %s260 = ssub.s32 %s19, 1
        // Predicated region
        $region41: #{tpu_custom_call.1} parent=39 // pred_check
          %p261 = pneg %p40
        $region42: #{tpu_custom_call.1} parent=39 // pred_check_branch
          %263 = sbr.rel (%p261) target = $region44
        $region43: #{tpu_custom_call.1} parent=39 // pred_region
          %264 = dma.done [#allocation3], 9600
        $region44: #{tpu_custom_call.1} parent=39 // pred_fallthru
          _
        // Predicated region
        $region45: #{tpu_custom_call.1} parent=39 // pred_check
          %p265 = pneg %p61
        $region46: #{tpu_custom_call.1} parent=39 // pred_check_branch
          %267 = sbr.rel (%p265) target = $region48
        $region47: #{tpu_custom_call.1} parent=39 // pred_region
          %268 = dma.done [#allocation6], 48
        $region48: #{tpu_custom_call.1} parent=39 // pred_fallthru
          _
        // Predicated region
        $region49: #{tpu_custom_call.1} parent=39 // pred_check
          %p269 = pneg %p82
        $region50: #{tpu_custom_call.1} parent=39 // pred_check_branch
          %271 = sbr.rel (%p269) target = $region52
        $region51: #{tpu_custom_call.1} parent=39 // pred_region
          %272 = dma.done [#allocation6], 48
        $region52: #{tpu_custom_call.1} parent=39 // pred_fallthru
          _
        %s273 = sand.u32 %s24, 1
        %s274 = scalar_lea.sflag [#allocation9], %s273
        %s275 = sand.u32 %s95, 1
        %s276 = smul.addr %s275, 2304
        %s277 = scalar_lea.vmem [#allocation8], %s276
        // Predicated region
        $region53: #{tpu_custom_call.1} parent=39 // pred_check
          %p278 = pneg %p108
        $region54: #{tpu_custom_call.1} parent=39 // pred_check_branch
          %280 = sbr.rel (%p278) target = $region56
        $region55: #{tpu_custom_call.1} parent=39 // pred_region
          %281 = dma.done %s274, 36864
        $region56: #{tpu_custom_call.1} parent=39 // pred_fallthru
          _
        %s282 = sand.u32 %s24, 1
        %s283 = scalar_lea.sflag [#allocation9], %s282
        %s284 = sand.u32 %s121, 1
        %s285 = smul.addr %s284, 6
        %s286 = scalar_lea.vmem [#allocation10], %s285
        // Predicated region
        $region57: #{tpu_custom_call.1} parent=39 // pred_check
          %p287 = pneg %p134
        $region58: #{tpu_custom_call.1} parent=39 // pred_check_branch
          %289 = sbr.rel (%p287) target = $region60
        $region59: #{tpu_custom_call.1} parent=39 // pred_region
          %290 = dma.done %s283, 96
        $region60: #{tpu_custom_call.1} parent=39 // pred_fallthru
          _
        %p291 = pneg %p40
        %p292 = pneg %p37
        %p293 = pneg %p61
        %p294 = pneg %p58
        %p295 = pneg %p82
        %p296 = pneg %p79
        %s297 = sand.u32 %s24, 1
        %s298 = scalar_lea.sflag [#allocation9], %s297
        %s299 = sand.u32 %s95, 1
        %s300 = smul.addr %s299, 2304
        %s301 = scalar_lea.vmem [#allocation8], %s300
        %p302 = pneg %p108
        %p303 = pneg %p105
        %s304 = sand.u32 %s24, 1
        %s305 = scalar_lea.sflag [#allocation9], %s304
        %s306 = sand.u32 %s121, 1
        %s307 = smul.addr %s306, 6
        %s308 = scalar_lea.vmem [#allocation10], %s307
        %p309 = pneg %p134
        %p310 = pneg %p131
        %p311 = pneg %p160
        %p312 = pneg %p157
        %s313 = sand.u32 %s147, 1
        %s314 = scalar_lea.sflag [#allocation4], %s313
        %s315 = sand.u32 %s147, 1
        %s316 = smul.addr %s315, 1200
        %s317 = scalar_lea.vmem [#allocation11], %s316
        %s318 = smul.u32 6, %s24
        %s319 = smul.u32 6, %s24
        %v320 = vld [vmem:[#allocation2] sm:$0xff]
        %v321 = vld [vmem:[#allocation2 + $0x8] sm:$0xff]
        %v322 = vld [vmem:[#allocation2 + $0x10] sm:$0xff]
        %v323 = vld [vmem:[#allocation2 + $0x18] sm:$0xff]
        %v324 = vld [vmem:[#allocation2 + $0x20] sm:$0xff]
        %v325 = vld [vmem:[#allocation2 + $0x28] sm:$0xff]
        %v326 = vld [vmem:[#allocation2 + $0x30] sm:$0xff]
        %v327 = vld [vmem:[#allocation2 + $0x38] sm:$0xff]
        %v328 = vld [vmem:[#allocation2 + $0x40] sm:$0xff]
        %v329 = vld [vmem:[#allocation2 + $0x48] sm:$0xff]
        %v330 = vld [vmem:[#allocation2 + $0x50] sm:$0xff]
        %v331 = vld [vmem:[#allocation2 + $0x58] sm:$0xff]
        %v332 = vld [vmem:[#allocation2 + $0x60] sm:$0xff]
        %v333 = vld [vmem:[#allocation2 + $0x68] sm:$0xff]
        %v334 = vld [vmem:[#allocation2 + $0x70] sm:$0xff]
        %v335 = vld [vmem:[#allocation2 + $0x78] sm:$0xff]
        %v336 = vld [vmem:[#allocation2 + $0x80] sm:$0xff]
        %v337 = vld [vmem:[#allocation2 + $0x88] sm:$0xff]
        %v338 = vld [vmem:[#allocation2 + $0x90] sm:$0xff]
        %v339 = vld [vmem:[#allocation2 + $0x98] sm:$0xff]
        %v340 = vld [vmem:[#allocation2 + $0xa0] sm:$0xff]
        %v341 = vld [vmem:[#allocation2 + $0xa8] sm:$0xff]
        %v342 = vld [vmem:[#allocation2 + $0xb0] sm:$0xff]
        %v343 = vld [vmem:[#allocation2 + $0xb8] sm:$0xff]
        %v344 = vld [vmem:[#allocation2 + $0xc0] sm:$0xff]
        %v345 = vld [vmem:[#allocation2 + $0xc8] sm:$0xff]
        %v346 = vld [vmem:[#allocation2 + $0xd0] sm:$0xff]
        %v347 = vld [vmem:[#allocation2 + $0xd8] sm:$0xff]
        %v348 = vld [vmem:[#allocation2 + $0xe0] sm:$0xff]
        %v349 = vld [vmem:[#allocation2 + $0xe8] sm:$0xff]
        %v350 = vld [vmem:[#allocation2 + $0xf0] sm:$0xff]
        %v351 = vld [vmem:[#allocation2 + $0xf8] sm:$0xff]
        %v352 = vld [vmem:[#allocation2 + $0x100] sm:$0xff]
        %v353 = vld [vmem:[#allocation2 + $0x108] sm:$0xff]
        %v354 = vld [vmem:[#allocation2 + $0x110] sm:$0xff]
        %v355 = vld [vmem:[#allocation2 + $0x118] sm:$0xff]
        %v356 = vld [vmem:[#allocation2 + $0x120] sm:$0xff]
        %v357 = vld [vmem:[#allocation2 + $0x128] sm:$0xff]
        %v358 = vld [vmem:[#allocation2 + $0x130] sm:$0xff]
        %v359 = vld [vmem:[#allocation2 + $0x138] sm:$0xff]
        %v360 = vld [vmem:[#allocation2 + $0x140] sm:$0xff]
        %v361 = vld [vmem:[#allocation2 + $0x148] sm:$0xff]
        %v362 = vld [vmem:[#allocation2 + $0x150] sm:$0xff]
        %v363 = vld [vmem:[#allocation2 + $0x158] sm:$0xff]
        %v364 = vld [vmem:[#allocation2 + $0x160] sm:$0xff]
        %v365 = vld [vmem:[#allocation2 + $0x168] sm:$0xff]
        %v366 = vld [vmem:[#allocation2 + $0x170] sm:$0xff]
        %v367 = vld [vmem:[#allocation2 + $0x178] sm:$0xff]
        %v368 = vld [vmem:[#allocation2 + $0x180] sm:$0xff]
        %v369 = vld [vmem:[#allocation2 + $0x188] sm:$0xff]
        %v370 = vld [vmem:[#allocation2 + $0x190] sm:$0xff]
        %v371 = vld [vmem:[#allocation2 + $0x198] sm:$0xff]
        %v372 = vld [vmem:[#allocation2 + $0x1a0] sm:$0xff]
        %v373 = vld [vmem:[#allocation2 + $0x1a8] sm:$0xff]
        %v374 = vld [vmem:[#allocation2 + $0x1b0] sm:$0xff]
        %v375 = vld [vmem:[#allocation2 + $0x1b8] sm:$0xff]
        %v376 = vld [vmem:[#allocation2 + $0x1c0] sm:$0xff]
        %v377 = vld [vmem:[#allocation2 + $0x1c8] sm:$0xff]
        %v378 = vld [vmem:[#allocation2 + $0x1d0] sm:$0xff]
        %v379 = vld [vmem:[#allocation2 + $0x1d8] sm:$0xff]
        %v380 = vld [vmem:[#allocation2 + $0x1e0] sm:$0xff]
        %v381 = vld [vmem:[#allocation2 + $0x1e8] sm:$0xff]
        %v382 = vld [vmem:[#allocation2 + $0x1f0] sm:$0xff]
        %v383 = vld [vmem:[#allocation2 + $0x1f8] sm:$0xff]
        %v384 = vld [vmem:[#allocation2 + $0x200] sm:$0xff]
        %v385 = vld [vmem:[#allocation2 + $0x208] sm:$0xff]
        %v386 = vld [vmem:[#allocation2 + $0x210] sm:$0xff]
        %v387 = vld [vmem:[#allocation2 + $0x218] sm:$0xff]
        %v388 = vld [vmem:[#allocation2 + $0x220] sm:$0xff]
        %v389 = vld [vmem:[#allocation2 + $0x228] sm:$0xff]
        %v390 = vld [vmem:[#allocation2 + $0x230] sm:$0xff]
        %v391 = vld [vmem:[#allocation2 + $0x238] sm:$0xff]
        %v392 = vld [vmem:[#allocation2 + $0x240] sm:$0xf]
        %v393 = vld [vmem:[#allocation2 + $0x248] sm:$0xf]
        %v394 = vld [vmem:[#allocation2 + $0x250] sm:$0xf]
        %v395 = vadd.f32 %v320, %v321
        %v396 = vadd.f32 %v395, %v322
        %397 = vadd.xlane.f32.xlu0 %v396
        %v398 = vpop.xlane.xlu0 %397
        %v399 = vadd.f32 %v323, %v324
        %v400 = vadd.f32 %v399, %v325
        %401 = vadd.xlane.f32.xlu0 %v400
        %v402 = vpop.xlane.xlu0 %401
        %v403 = vadd.f32 %v326, %v327
        %v404 = vadd.f32 %v403, %v328
        %405 = vadd.xlane.f32.xlu0 %v404
        %v406 = vpop.xlane.xlu0 %405
        %v407 = vadd.f32 %v329, %v330
        %v408 = vadd.f32 %v407, %v331
        %409 = vadd.xlane.f32.xlu0 %v408
        %v410 = vpop.xlane.xlu0 %409
        %v411 = vadd.f32 %v332, %v333
        %v412 = vadd.f32 %v411, %v334
        %413 = vadd.xlane.f32.xlu0 %v412
        %v414 = vpop.xlane.xlu0 %413
        %v415 = vadd.f32 %v335, %v336
        %v416 = vadd.f32 %v415, %v337
        %417 = vadd.xlane.f32.xlu0 %v416
        %v418 = vpop.xlane.xlu0 %417
        %v419 = vadd.f32 %v338, %v339
        %v420 = vadd.f32 %v419, %v340
        %421 = vadd.xlane.f32.xlu0 %v420
        %v422 = vpop.xlane.xlu0 %421
        %v423 = vadd.f32 %v341, %v342
        %v424 = vadd.f32 %v423, %v343
        %425 = vadd.xlane.f32.xlu0 %v424
        %v426 = vpop.xlane.xlu0 %425
        %v427 = vadd.f32 %v344, %v345
        %v428 = vadd.f32 %v427, %v346
        %429 = vadd.xlane.f32.xlu0 %v428
        %v430 = vpop.xlane.xlu0 %429
        %v431 = vadd.f32 %v347, %v348
        %v432 = vadd.f32 %v431, %v349
        %433 = vadd.xlane.f32.xlu0 %v432
        %v434 = vpop.xlane.xlu0 %433
        %v435 = vadd.f32 %v350, %v351
        %v436 = vadd.f32 %v435, %v352
        %437 = vadd.xlane.f32.xlu0 %v436
        %v438 = vpop.xlane.xlu0 %437
        %v439 = vadd.f32 %v353, %v354
        %v440 = vadd.f32 %v439, %v355
        %441 = vadd.xlane.f32.xlu0 %v440
        %v442 = vpop.xlane.xlu0 %441
        %v443 = vadd.f32 %v356, %v357
        %v444 = vadd.f32 %v443, %v358
        %445 = vadd.xlane.f32.xlu0 %v444
        %v446 = vpop.xlane.xlu0 %445
        %v447 = vadd.f32 %v359, %v360
        %v448 = vadd.f32 %v447, %v361
        %449 = vadd.xlane.f32.xlu0 %v448
        %v450 = vpop.xlane.xlu0 %449
        %v451 = vadd.f32 %v362, %v363
        %v452 = vadd.f32 %v451, %v364
        %453 = vadd.xlane.f32.xlu0 %v452
        %v454 = vpop.xlane.xlu0 %453
        %v455 = vadd.f32 %v365, %v366
        %v456 = vadd.f32 %v455, %v367
        %457 = vadd.xlane.f32.xlu0 %v456
        %v458 = vpop.xlane.xlu0 %457
        %v459 = vadd.f32 %v368, %v369
        %v460 = vadd.f32 %v459, %v370
        %461 = vadd.xlane.f32.xlu0 %v460
        %v462 = vpop.xlane.xlu0 %461
        %v463 = vadd.f32 %v371, %v372
        %v464 = vadd.f32 %v463, %v373
        %465 = vadd.xlane.f32.xlu0 %v464
        %v466 = vpop.xlane.xlu0 %465
        %v467 = vadd.f32 %v374, %v375
        %v468 = vadd.f32 %v467, %v376
        %469 = vadd.xlane.f32.xlu0 %v468
        %v470 = vpop.xlane.xlu0 %469
        %v471 = vadd.f32 %v377, %v378
        %v472 = vadd.f32 %v471, %v379
        %473 = vadd.xlane.f32.xlu0 %v472
        %v474 = vpop.xlane.xlu0 %473
        %v475 = vadd.f32 %v380, %v381
        %v476 = vadd.f32 %v475, %v382
        %477 = vadd.xlane.f32.xlu0 %v476
        %v478 = vpop.xlane.xlu0 %477
        %v479 = vadd.f32 %v383, %v384
        %v480 = vadd.f32 %v479, %v385
        %481 = vadd.xlane.f32.xlu0 %v480
        %v482 = vpop.xlane.xlu0 %481
        %v483 = vadd.f32 %v386, %v387
        %v484 = vadd.f32 %v483, %v388
        %485 = vadd.xlane.f32.xlu0 %v484
        %v486 = vpop.xlane.xlu0 %485
        %v487 = vadd.f32 %v389, %v390
        %v488 = vadd.f32 %v487, %v391
        %489 = vadd.xlane.f32.xlu0 %v488
        %v490 = vpop.xlane.xlu0 %489
        %vm491 = vcmask 1043456
        %v492 = vsel %vm491, %v392, 0.0
        %v493 = vsel %vm491, %v393, 0.0
        %v494 = vadd.f32 %v492, %v493
        %v495 = vsel %vm491, %v394, 0.0
        %v496 = vadd.f32 %v494, %v495
        %497 = vadd.xlane.f32.xlu0 %v496
        %v498 = vpop.xlane.xlu0 %497
        %v499 = vrcp.pop 384.0
        %v500 = vmul.f32 %v398, %v499
        %v501 = vmul.f32 %v402, %v499
        %v502 = vmul.f32 %v406, %v499
        %v503 = vmul.f32 %v410, %v499
        %v504 = vmul.f32 %v414, %v499
        %v505 = vmul.f32 %v418, %v499
        %v506 = vmul.f32 %v422, %v499
        %v507 = vmul.f32 %v426, %v499
        %v508 = vmul.f32 %v430, %v499
        %v509 = vmul.f32 %v434, %v499
        %v510 = vmul.f32 %v438, %v499
        %v511 = vmul.f32 %v442, %v499
        %v512 = vmul.f32 %v446, %v499
        %v513 = vmul.f32 %v450, %v499
        %v514 = vmul.f32 %v454, %v499
        %v515 = vmul.f32 %v458, %v499
        %v516 = vmul.f32 %v462, %v499
        %v517 = vmul.f32 %v466, %v499
        %v518 = vmul.f32 %v470, %v499
        %v519 = vmul.f32 %v474, %v499
        %v520 = vmul.f32 %v478, %v499
        %v521 = vmul.f32 %v482, %v499
        %v522 = vmul.f32 %v486, %v499
        %v523 = vmul.f32 %v490, %v499
        %v524 = vmul.f32 %v498, %v499
        %v525 = vsub.f32 %v320, %v500
        %v526 = vsub.f32 %v321, %v500
        %v527 = vsub.f32 %v322, %v500
        %v528 = vsub.f32 %v323, %v501
        %v529 = vsub.f32 %v324, %v501
        %v530 = vsub.f32 %v325, %v501
        %v531 = vsub.f32 %v326, %v502
        %v532 = vsub.f32 %v327, %v502
        %v533 = vsub.f32 %v328, %v502
        %v534 = vsub.f32 %v329, %v503
        %v535 = vsub.f32 %v330, %v503
        %v536 = vsub.f32 %v331, %v503
        %v537 = vsub.f32 %v332, %v504
        %v538 = vsub.f32 %v333, %v504
        %v539 = vsub.f32 %v334, %v504
        %v540 = vsub.f32 %v335, %v505
        %v541 = vsub.f32 %v336, %v505
        %v542 = vsub.f32 %v337, %v505
        %v543 = vsub.f32 %v338, %v506
        %v544 = vsub.f32 %v339, %v506
        %v545 = vsub.f32 %v340, %v506
        %v546 = vsub.f32 %v341, %v507
        %v547 = vsub.f32 %v342, %v507
        %v548 = vsub.f32 %v343, %v507
        %v549 = vsub.f32 %v344, %v508
        %v550 = vsub.f32 %v345, %v508
        %v551 = vsub.f32 %v346, %v508
        %v552 = vsub.f32 %v347, %v509
        %v553 = vsub.f32 %v348, %v509
        %v554 = vsub.f32 %v349, %v509
        %v555 = vsub.f32 %v350, %v510
        %v556 = vsub.f32 %v351, %v510
        %v557 = vsub.f32 %v352, %v510
        %v558 = vsub.f32 %v353, %v511
        %v559 = vsub.f32 %v354, %v511
        %v560 = vsub.f32 %v355, %v511
        %v561 = vsub.f32 %v356, %v512
        %v562 = vsub.f32 %v357, %v512
        %v563 = vsub.f32 %v358, %v512
        %v564 = vsub.f32 %v359, %v513
        %v565 = vsub.f32 %v360, %v513
        %v566 = vsub.f32 %v361, %v513
        %v567 = vsub.f32 %v362, %v514
        %v568 = vsub.f32 %v363, %v514
        %v569 = vsub.f32 %v364, %v514
        %v570 = vsub.f32 %v365, %v515
        %v571 = vsub.f32 %v366, %v515
        %v572 = vsub.f32 %v367, %v515
        %v573 = vsub.f32 %v368, %v516
        %v574 = vsub.f32 %v369, %v516
        %v575 = vsub.f32 %v370, %v516
        %v576 = vsub.f32 %v371, %v517
        %v577 = vsub.f32 %v372, %v517
        %v578 = vsub.f32 %v373, %v517
        %v579 = vsub.f32 %v374, %v518
        %v580 = vsub.f32 %v375, %v518
        %v581 = vsub.f32 %v376, %v518
        %v582 = vsub.f32 %v377, %v519
        %v583 = vsub.f32 %v378, %v519
        %v584 = vsub.f32 %v379, %v519
        %v585 = vsub.f32 %v380, %v520
        %v586 = vsub.f32 %v381, %v520
        %v587 = vsub.f32 %v382, %v520
        %v588 = vsub.f32 %v383, %v521
        %v589 = vsub.f32 %v384, %v521
        %v590 = vsub.f32 %v385, %v521
        %v591 = vsub.f32 %v386, %v522
        %v592 = vsub.f32 %v387, %v522
        %v593 = vsub.f32 %v388, %v522
        %v594 = vsub.f32 %v389, %v523
        %v595 = vsub.f32 %v390, %v523
        %v596 = vsub.f32 %v391, %v523
        %v597 = vsub.f32 %v392, %v524
        %v598 = vsub.f32 %v393, %v524
        %v599 = vsub.f32 %v394, %v524
        %v600 = vmul.f32 %v525, %v525
        %v601 = vmul.f32 %v526, %v526
        %v602 = vmul.f32 %v527, %v527
        %v603 = vmul.f32 %v528, %v528
        %v604 = vmul.f32 %v529, %v529
        %v605 = vmul.f32 %v530, %v530
        %v606 = vmul.f32 %v531, %v531
        %v607 = vmul.f32 %v532, %v532
        %v608 = vmul.f32 %v533, %v533
        %v609 = vmul.f32 %v534, %v534
        %v610 = vmul.f32 %v535, %v535
        %v611 = vmul.f32 %v536, %v536
        %v612 = vmul.f32 %v537, %v537
        %v613 = vmul.f32 %v538, %v538
        %v614 = vmul.f32 %v539, %v539
        %v615 = vmul.f32 %v540, %v540
        %v616 = vmul.f32 %v541, %v541
        %v617 = vmul.f32 %v542, %v542
        %v618 = vmul.f32 %v543, %v543
        %v619 = vmul.f32 %v544, %v544
        %v620 = vmul.f32 %v545, %v545
        %v621 = vmul.f32 %v546, %v546
        %v622 = vmul.f32 %v547, %v547
        %v623 = vmul.f32 %v548, %v548
        %v624 = vmul.f32 %v549, %v549
        %v625 = vmul.f32 %v550, %v550
        %v626 = vmul.f32 %v551, %v551
        %v627 = vmul.f32 %v552, %v552
        %v628 = vmul.f32 %v553, %v553
        %v629 = vmul.f32 %v554, %v554
        %v630 = vmul.f32 %v555, %v555
        %v631 = vmul.f32 %v556, %v556
        %v632 = vmul.f32 %v557, %v557
        %v633 = vmul.f32 %v558, %v558
        %v634 = vmul.f32 %v559, %v559
        %v635 = vmul.f32 %v560, %v560
        %v636 = vmul.f32 %v561, %v561
        %v637 = vmul.f32 %v562, %v562
        %v638 = vmul.f32 %v563, %v563
        %v639 = vmul.f32 %v564, %v564
        %v640 = vmul.f32 %v565, %v565
        %v641 = vmul.f32 %v566, %v566
        %v642 = vmul.f32 %v567, %v567
        %v643 = vmul.f32 %v568, %v568
        %v644 = vmul.f32 %v569, %v569
        %v645 = vmul.f32 %v570, %v570
        %v646 = vmul.f32 %v571, %v571
        %v647 = vmul.f32 %v572, %v572
        %v648 = vmul.f32 %v573, %v573
        %v649 = vmul.f32 %v574, %v574
        %v650 = vmul.f32 %v575, %v575
        %v651 = vmul.f32 %v576, %v576
        %v652 = vmul.f32 %v577, %v577
        %v653 = vmul.f32 %v578, %v578
        %v654 = vmul.f32 %v579, %v579
        %v655 = vmul.f32 %v580, %v580
        %v656 = vmul.f32 %v581, %v581
        %v657 = vmul.f32 %v582, %v582
        %v658 = vmul.f32 %v583, %v583
        %v659 = vmul.f32 %v584, %v584
        %v660 = vmul.f32 %v585, %v585
        %v661 = vmul.f32 %v586, %v586
        %v662 = vmul.f32 %v587, %v587
        %v663 = vmul.f32 %v588, %v588
        %v664 = vmul.f32 %v589, %v589
        %v665 = vmul.f32 %v590, %v590
        %v666 = vmul.f32 %v591, %v591
        %v667 = vmul.f32 %v592, %v592
        %v668 = vmul.f32 %v593, %v593
        %v669 = vmul.f32 %v594, %v594
        %v670 = vmul.f32 %v595, %v595
        %v671 = vmul.f32 %v596, %v596
        %v672 = vmul.f32 %v597, %v597
        %v673 = vmul.f32 %v598, %v598
        %v674 = vmul.f32 %v599, %v599
        %v675 = vadd.f32 %v600, %v601
        %v676 = vadd.f32 %v675, %v602
        %677 = vadd.xlane.f32.xlu0 %v676
        %v678 = vpop.xlane.xlu0 %677
        %v679 = vadd.f32 %v603, %v604
        %v680 = vadd.f32 %v679, %v605
        %681 = vadd.xlane.f32.xlu0 %v680
        %v682 = vpop.xlane.xlu0 %681
        %v683 = vadd.f32 %v606, %v607
        %v684 = vadd.f32 %v683, %v608
        %685 = vadd.xlane.f32.xlu0 %v684
        %v686 = vpop.xlane.xlu0 %685
        %v687 = vadd.f32 %v609, %v610
        %v688 = vadd.f32 %v687, %v611
        %689 = vadd.xlane.f32.xlu0 %v688
        %v690 = vpop.xlane.xlu0 %689
        %v691 = vadd.f32 %v612, %v613
        %v692 = vadd.f32 %v691, %v614
        %693 = vadd.xlane.f32.xlu0 %v692
        %v694 = vpop.xlane.xlu0 %693
        %v695 = vadd.f32 %v615, %v616
        %v696 = vadd.f32 %v695, %v617
        %697 = vadd.xlane.f32.xlu0 %v696
        %v698 = vpop.xlane.xlu0 %697
        %v699 = vadd.f32 %v618, %v619
        %v700 = vadd.f32 %v699, %v620
        %701 = vadd.xlane.f32.xlu0 %v700
        %v702 = vpop.xlane.xlu0 %701
        %v703 = vadd.f32 %v621, %v622
        %v704 = vadd.f32 %v703, %v623
        %705 = vadd.xlane.f32.xlu0 %v704
        %v706 = vpop.xlane.xlu0 %705
        %v707 = vadd.f32 %v624, %v625
        %v708 = vadd.f32 %v707, %v626
        %709 = vadd.xlane.f32.xlu0 %v708
        %v710 = vpop.xlane.xlu0 %709
        %v711 = vadd.f32 %v627, %v628
        %v712 = vadd.f32 %v711, %v629
        %713 = vadd.xlane.f32.xlu0 %v712
        %v714 = vpop.xlane.xlu0 %713
        %v715 = vadd.f32 %v630, %v631
        %v716 = vadd.f32 %v715, %v632
        %717 = vadd.xlane.f32.xlu0 %v716
        %v718 = vpop.xlane.xlu0 %717
        %v719 = vadd.f32 %v633, %v634
        %v720 = vadd.f32 %v719, %v635
        %721 = vadd.xlane.f32.xlu0 %v720
        %v722 = vpop.xlane.xlu0 %721
        %v723 = vadd.f32 %v636, %v637
        %v724 = vadd.f32 %v723, %v638
        %725 = vadd.xlane.f32.xlu0 %v724
        %v726 = vpop.xlane.xlu0 %725
        %v727 = vadd.f32 %v639, %v640
        %v728 = vadd.f32 %v727, %v641
        %729 = vadd.xlane.f32.xlu0 %v728
        %v730 = vpop.xlane.xlu0 %729
        %v731 = vadd.f32 %v642, %v643
        %v732 = vadd.f32 %v731, %v644
        %733 = vadd.xlane.f32.xlu0 %v732
        %v734 = vpop.xlane.xlu0 %733
        %v735 = vadd.f32 %v645, %v646
        %v736 = vadd.f32 %v735, %v647
        %737 = vadd.xlane.f32.xlu0 %v736
        %v738 = vpop.xlane.xlu0 %737
        %v739 = vadd.f32 %v648, %v649
        %v740 = vadd.f32 %v739, %v650
        %741 = vadd.xlane.f32.xlu0 %v740
        %v742 = vpop.xlane.xlu0 %741
        %v743 = vadd.f32 %v651, %v652
        %v744 = vadd.f32 %v743, %v653
        %745 = vadd.xlane.f32.xlu0 %v744
        %v746 = vpop.xlane.xlu0 %745
        %v747 = vadd.f32 %v654, %v655
        %v748 = vadd.f32 %v747, %v656
        %749 = vadd.xlane.f32.xlu0 %v748
        %v750 = vpop.xlane.xlu0 %749
        %v751 = vadd.f32 %v657, %v658
        %v752 = vadd.f32 %v751, %v659
        %753 = vadd.xlane.f32.xlu0 %v752
        %v754 = vpop.xlane.xlu0 %753
        %v755 = vadd.f32 %v660, %v661
        %v756 = vadd.f32 %v755, %v662
        %757 = vadd.xlane.f32.xlu0 %v756
        %v758 = vpop.xlane.xlu0 %757
        %v759 = vadd.f32 %v663, %v664
        %v760 = vadd.f32 %v759, %v665
        %761 = vadd.xlane.f32.xlu0 %v760
        %v762 = vpop.xlane.xlu0 %761
        %v763 = vadd.f32 %v666, %v667
        %v764 = vadd.f32 %v763, %v668
        %765 = vadd.xlane.f32.xlu0 %v764
        %v766 = vpop.xlane.xlu0 %765
        %v767 = vadd.f32 %v669, %v670
        %v768 = vadd.f32 %v767, %v671
        %769 = vadd.xlane.f32.xlu0 %v768
        %v770 = vpop.xlane.xlu0 %769
        %v771 = vsel %vm491, %v672, 0.0
        %v772 = vsel %vm491, %v673, 0.0
        %v773 = vadd.f32 %v771, %v772
        %v774 = vsel %vm491, %v674, 0.0
        %v775 = vadd.f32 %v773, %v774
        %776 = vadd.xlane.f32.xlu0 %v775
        %v777 = vpop.xlane.xlu0 %776
        %v778 = vmul.f32 %v678, %v499
        %v779 = vmul.f32 %v682, %v499
        %v780 = vmul.f32 %v686, %v499
        %v781 = vmul.f32 %v690, %v499
        %v782 = vmul.f32 %v694, %v499
        %v783 = vmul.f32 %v698, %v499
        %v784 = vmul.f32 %v702, %v499
        %v785 = vmul.f32 %v706, %v499
        %v786 = vmul.f32 %v710, %v499
        %v787 = vmul.f32 %v714, %v499
        %v788 = vmul.f32 %v718, %v499
        %v789 = vmul.f32 %v722, %v499
        %v790 = vmul.f32 %v726, %v499
        %v791 = vmul.f32 %v730, %v499
        %v792 = vmul.f32 %v734, %v499
        %v793 = vmul.f32 %v738, %v499
        %v794 = vmul.f32 %v742, %v499
        %v795 = vmul.f32 %v746, %v499
        %v796 = vmul.f32 %v750, %v499
        %v797 = vmul.f32 %v754, %v499
        %v798 = vmul.f32 %v758, %v499
        %v799 = vmul.f32 %v762, %v499
        %v800 = vmul.f32 %v766, %v499
        %v801 = vmul.f32 %v770, %v499
        %v802 = vmul.f32 %v777, %v499
        %v803 = vadd.f32 %v778, 1e-06
        %v804 = vadd.f32 %v779, 1e-06
        %v805 = vadd.f32 %v780, 1e-06
        %v806 = vadd.f32 %v781, 1e-06
        %v807 = vadd.f32 %v782, 1e-06
        %v808 = vadd.f32 %v783, 1e-06
        %v809 = vadd.f32 %v784, 1e-06
        %v810 = vadd.f32 %v785, 1e-06
        %v811 = vadd.f32 %v786, 1e-06
        %v812 = vadd.f32 %v787, 1e-06
        %v813 = vadd.f32 %v788, 1e-06
        %v814 = vadd.f32 %v789, 1e-06
        %v815 = vadd.f32 %v790, 1e-06
        %v816 = vadd.f32 %v791, 1e-06
        %v817 = vadd.f32 %v792, 1e-06
        %v818 = vadd.f32 %v793, 1e-06
        %v819 = vadd.f32 %v794, 1e-06
        %v820 = vadd.f32 %v795, 1e-06
        %v821 = vadd.f32 %v796, 1e-06
        %v822 = vadd.f32 %v797, 1e-06
        %v823 = vadd.f32 %v798, 1e-06
        %v824 = vadd.f32 %v799, 1e-06
        %v825 = vadd.f32 %v800, 1e-06
        %v826 = vadd.f32 %v801, 1e-06
        %v827 = vadd.f32 %v802, 1e-06
        %v828 = vrsqrt.pop %v803
        %v829 = vrsqrt.pop %v804
        %v830 = vrsqrt.pop %v805
        %v831 = vrsqrt.pop %v806
        %v832 = vrsqrt.pop %v807
        %v833 = vrsqrt.pop %v808
        %v834 = vrsqrt.pop %v809
        %v835 = vrsqrt.pop %v810
        %v836 = vrsqrt.pop %v811
        %v837 = vrsqrt.pop %v812
        %v838 = vrsqrt.pop %v813
        %v839 = vrsqrt.pop %v814
        %v840 = vrsqrt.pop %v815
        %v841 = vrsqrt.pop %v816
        %v842 = vrsqrt.pop %v817
        %v843 = vrsqrt.pop %v818
        %v844 = vrsqrt.pop %v819
        %v845 = vrsqrt.pop %v820
        %v846 = vrsqrt.pop %v821
        %v847 = vrsqrt.pop %v822
        %v848 = vrsqrt.pop %v823
        %v849 = vrsqrt.pop %v824
        %v850 = vrsqrt.pop %v825
        %v851 = vrsqrt.pop %v826
        %v852 = vrsqrt.pop %v827
        %v853 = vmul.f32 %v525, %v828
        %v854 = vmul.f32 %v526, %v828
        %v855 = vmul.f32 %v527, %v828
        %v856 = vmul.f32 %v528, %v829
        %v857 = vmul.f32 %v529, %v829
        %v858 = vmul.f32 %v530, %v829
        %v859 = vmul.f32 %v531, %v830
        %v860 = vmul.f32 %v532, %v830
        %v861 = vmul.f32 %v533, %v830
        %v862 = vmul.f32 %v534, %v831
        %v863 = vmul.f32 %v535, %v831
        %v864 = vmul.f32 %v536, %v831
        %v865 = vmul.f32 %v537, %v832
        %v866 = vmul.f32 %v538, %v832
        %v867 = vmul.f32 %v539, %v832
        %v868 = vmul.f32 %v540, %v833
        %v869 = vmul.f32 %v541, %v833
        %v870 = vmul.f32 %v542, %v833
        %v871 = vmul.f32 %v543, %v834
        %v872 = vmul.f32 %v544, %v834
        %v873 = vmul.f32 %v545, %v834
        %v874 = vmul.f32 %v546, %v835
        %v875 = vmul.f32 %v547, %v835
        %v876 = vmul.f32 %v548, %v835
        %v877 = vmul.f32 %v549, %v836
        %v878 = vmul.f32 %v550, %v836
        %v879 = vmul.f32 %v551, %v836
        %v880 = vmul.f32 %v552, %v837
        %v881 = vmul.f32 %v553, %v837
        %v882 = vmul.f32 %v554, %v837
        %v883 = vmul.f32 %v555, %v838
        %v884 = vmul.f32 %v556, %v838
        %v885 = vmul.f32 %v557, %v838
        %v886 = vmul.f32 %v558, %v839
        %v887 = vmul.f32 %v559, %v839
        %v888 = vmul.f32 %v560, %v839
        %v889 = vmul.f32 %v561, %v840
        %v890 = vmul.f32 %v562, %v840
        %v891 = vmul.f32 %v563, %v840
        %v892 = vmul.f32 %v564, %v841
        %v893 = vmul.f32 %v565, %v841
        %v894 = vmul.f32 %v566, %v841
        %v895 = vmul.f32 %v567, %v842
        %v896 = vmul.f32 %v568, %v842
        %v897 = vmul.f32 %v569, %v842
        %v898 = vmul.f32 %v570, %v843
        %v899 = vmul.f32 %v571, %v843
        %v900 = vmul.f32 %v572, %v843
        %v901 = vmul.f32 %v573, %v844
        %v902 = vmul.f32 %v574, %v844
        %v903 = vmul.f32 %v575, %v844
        %v904 = vmul.f32 %v576, %v845
        %v905 = vmul.f32 %v577, %v845
        %v906 = vmul.f32 %v578, %v845
        %v907 = vmul.f32 %v579, %v846
        %v908 = vmul.f32 %v580, %v846
        %v909 = vmul.f32 %v581, %v846
        %v910 = vmul.f32 %v582, %v847
        %v911 = vmul.f32 %v583, %v847
        %v912 = vmul.f32 %v584, %v847
        %v913 = vmul.f32 %v585, %v848
        %v914 = vmul.f32 %v586, %v848
        %v915 = vmul.f32 %v587, %v848
        %v916 = vmul.f32 %v588, %v849
        %v917 = vmul.f32 %v589, %v849
        %v918 = vmul.f32 %v590, %v849
        %v919 = vmul.f32 %v591, %v850
        %v920 = vmul.f32 %v592, %v850
        %v921 = vmul.f32 %v593, %v850
        %v922 = vmul.f32 %v594, %v851
        %v923 = vmul.f32 %v595, %v851
        %v924 = vmul.f32 %v596, %v851
        %v925 = vmul.f32 %v597, %v852
        %v926 = vmul.f32 %v598, %v852
        %v927 = vmul.f32 %v599, %v852
        %v928 = vld [vmem:[#allocation5] sm:$0x7]
        %v930 = vlaneseq
        %v931 = vshrl.u32 %v930, 7
        %v932 = vsub.s32 0, %v931
        %v933 = vrot.slane %v928, %v932
        %v934 = vlaneseq
        %v935 = vshrl.u32 %v934, 7
        %v936 = vsub.s32 1, %v935
        %v937 = vrot.slane %v928, %v936
        %v938 = vlaneseq
        %v939 = vshrl.u32 %v938, 7
        %v940 = vsub.s32 2, %v939
        %v941 = vrot.slane %v928, %v940
        %v945 = vmul.f32 %v853, %v933
        %v946 = vmul.f32 %v854, %v937
        %v947 = vmul.f32 %v855, %v941
        %v948 = vmul.f32 %v856, %v933
        %v949 = vmul.f32 %v857, %v937
        %v950 = vmul.f32 %v858, %v941
        %v951 = vmul.f32 %v859, %v933
        %v952 = vmul.f32 %v860, %v937
        %v953 = vmul.f32 %v861, %v941
        %v954 = vmul.f32 %v862, %v933
        %v955 = vmul.f32 %v863, %v937
        %v956 = vmul.f32 %v864, %v941
        %v957 = vmul.f32 %v865, %v933
        %v958 = vmul.f32 %v866, %v937
        %v959 = vmul.f32 %v867, %v941
        %v960 = vmul.f32 %v868, %v933
        %v961 = vmul.f32 %v869, %v937
        %v962 = vmul.f32 %v870, %v941
        %v963 = vmul.f32 %v871, %v933
        %v964 = vmul.f32 %v872, %v937
        %v965 = vmul.f32 %v873, %v941
        %v966 = vmul.f32 %v874, %v933
        %v967 = vmul.f32 %v875, %v937
        %v968 = vmul.f32 %v876, %v941
        %v969 = vmul.f32 %v877, %v933
        %v970 = vmul.f32 %v878, %v937
        %v971 = vmul.f32 %v879, %v941
        %v972 = vmul.f32 %v880, %v933
        %v973 = vmul.f32 %v881, %v937
        %v974 = vmul.f32 %v882, %v941
        %v975 = vmul.f32 %v883, %v933
        %v976 = vmul.f32 %v884, %v937
        %v977 = vmul.f32 %v885, %v941
        %v978 = vmul.f32 %v886, %v933
        %v979 = vmul.f32 %v887, %v937
        %v980 = vmul.f32 %v888, %v941
        %v981 = vmul.f32 %v889, %v933
        %v982 = vmul.f32 %v890, %v937
        %v983 = vmul.f32 %v891, %v941
        %v984 = vmul.f32 %v892, %v933
        %v985 = vmul.f32 %v893, %v937
        %v986 = vmul.f32 %v894, %v941
        %v987 = vmul.f32 %v895, %v933
        %v988 = vmul.f32 %v896, %v937
        %v989 = vmul.f32 %v897, %v941
        %v990 = vmul.f32 %v898, %v933
        %v991 = vmul.f32 %v899, %v937
        %v992 = vmul.f32 %v900, %v941
        %v993 = vmul.f32 %v901, %v933
        %v994 = vmul.f32 %v902, %v937
        %v995 = vmul.f32 %v903, %v941
        %v996 = vmul.f32 %v904, %v933
        %v997 = vmul.f32 %v905, %v937
        %v998 = vmul.f32 %v906, %v941
        %v999 = vmul.f32 %v907, %v933
        %v1000 = vmul.f32 %v908, %v937
        %v1001 = vmul.f32 %v909, %v941
        %v1002 = vmul.f32 %v910, %v933
        %v1003 = vmul.f32 %v911, %v937
        %v1004 = vmul.f32 %v912, %v941
        %v1005 = vmul.f32 %v913, %v933
        %v1006 = vmul.f32 %v914, %v937
        %v1007 = vmul.f32 %v915, %v941
        %v1008 = vmul.f32 %v916, %v933
        %v1009 = vmul.f32 %v917, %v937
        %v1010 = vmul.f32 %v918, %v941
        %v1011 = vmul.f32 %v919, %v933
        %v1012 = vmul.f32 %v920, %v937
        %v1013 = vmul.f32 %v921, %v941
        %v1014 = vmul.f32 %v922, %v933
        %v1015 = vmul.f32 %v923, %v937
        %v1016 = vmul.f32 %v924, %v941
        %v1017 = vmul.f32 %v925, %v933
        %v1018 = vmul.f32 %v926, %v937
        %v1019 = vmul.f32 %v927, %v941
        %v1020 = vld [vmem:[#allocation7] sm:$0x7]
        %v1022 = vlaneseq
        %v1023 = vshrl.u32 %v1022, 7
        %v1024 = vsub.s32 0, %v1023
        %v1025 = vrot.slane %v1020, %v1024
        %v1026 = vlaneseq
        %v1027 = vshrl.u32 %v1026, 7
        %v1028 = vsub.s32 1, %v1027
        %v1029 = vrot.slane %v1020, %v1028
        %v1030 = vlaneseq
        %v1031 = vshrl.u32 %v1030, 7
        %v1032 = vsub.s32 2, %v1031
        %v1033 = vrot.slane %v1020, %v1032
        %v1037 = vadd.f32 %v945, %v1025
        %v1038 = vadd.f32 %v946, %v1029
        %v1039 = vadd.f32 %v947, %v1033
        %v1040 = vadd.f32 %v948, %v1025
        %v1041 = vadd.f32 %v949, %v1029
        %v1042 = vadd.f32 %v950, %v1033
        %v1043 = vadd.f32 %v951, %v1025
        %v1044 = vadd.f32 %v952, %v1029
        %v1045 = vadd.f32 %v953, %v1033
        %v1046 = vadd.f32 %v954, %v1025
        %v1047 = vadd.f32 %v955, %v1029
        %v1048 = vadd.f32 %v956, %v1033
        %v1049 = vadd.f32 %v957, %v1025
        %v1050 = vadd.f32 %v958, %v1029
        %v1051 = vadd.f32 %v959, %v1033
        %v1052 = vadd.f32 %v960, %v1025
        %v1053 = vadd.f32 %v961, %v1029
        %v1054 = vadd.f32 %v962, %v1033
        %v1055 = vadd.f32 %v963, %v1025
        %v1056 = vadd.f32 %v964, %v1029
        %v1057 = vadd.f32 %v965, %v1033
        %v1058 = vadd.f32 %v966, %v1025
        %v1059 = vadd.f32 %v967, %v1029
        %v1060 = vadd.f32 %v968, %v1033
        %v1061 = vadd.f32 %v969, %v1025
        %v1062 = vadd.f32 %v970, %v1029
        %v1063 = vadd.f32 %v971, %v1033
        %v1064 = vadd.f32 %v972, %v1025
        %v1065 = vadd.f32 %v973, %v1029
        %v1066 = vadd.f32 %v974, %v1033
        %v1067 = vadd.f32 %v975, %v1025
        %v1068 = vadd.f32 %v976, %v1029
        %v1069 = vadd.f32 %v977, %v1033
        %v1070 = vadd.f32 %v978, %v1025
        %v1071 = vadd.f32 %v979, %v1029
        %v1072 = vadd.f32 %v980, %v1033
        %v1073 = vadd.f32 %v981, %v1025
        %v1074 = vadd.f32 %v982, %v1029
        %v1075 = vadd.f32 %v983, %v1033
        %v1076 = vadd.f32 %v984, %v1025
        %v1077 = vadd.f32 %v985, %v1029
        %v1078 = vadd.f32 %v986, %v1033
        %v1079 = vadd.f32 %v987, %v1025
        %v1080 = vadd.f32 %v988, %v1029
        %v1081 = vadd.f32 %v989, %v1033
        %v1082 = vadd.f32 %v990, %v1025
        %v1083 = vadd.f32 %v991, %v1029
        %v1084 = vadd.f32 %v992, %v1033
        %v1085 = vadd.f32 %v993, %v1025
        %v1086 = vadd.f32 %v994, %v1029
        %v1087 = vadd.f32 %v995, %v1033
        %v1088 = vadd.f32 %v996, %v1025
        %v1089 = vadd.f32 %v997, %v1029
        %v1090 = vadd.f32 %v998, %v1033
        %v1091 = vadd.f32 %v999, %v1025
        %v1092 = vadd.f32 %v1000, %v1029
        %v1093 = vadd.f32 %v1001, %v1033
        %v1094 = vadd.f32 %v1002, %v1025
        %v1095 = vadd.f32 %v1003, %v1029
        %v1096 = vadd.f32 %v1004, %v1033
        %v1097 = vadd.f32 %v1005, %v1025
        %v1098 = vadd.f32 %v1006, %v1029
        %v1099 = vadd.f32 %v1007, %v1033
        %v1100 = vadd.f32 %v1008, %v1025
        %v1101 = vadd.f32 %v1009, %v1029
        %v1102 = vadd.f32 %v1010, %v1033
        %v1103 = vadd.f32 %v1011, %v1025
        %v1104 = vadd.f32 %v1012, %v1029
        %v1105 = vadd.f32 %v1013, %v1033
        %v1106 = vadd.f32 %v1014, %v1025
        %v1107 = vadd.f32 %v1015, %v1029
        %v1108 = vadd.f32 %v1016, %v1033
        %v1109 = vadd.f32 %v1017, %v1025
        %v1110 = vadd.f32 %v1018, %v1029
        %v1111 = vadd.f32 %v1019, %v1033
        %v1112 = vld [vmem:[%s277] sm:$0xff]
        %v1113 = vld [vmem:[%s277 + $0x8] sm:$0xff]
        %v1114 = vld [vmem:[%s277 + $0x10] sm:$0xff]
        %v1115 = vld [vmem:[%s277 + $0x18] sm:$0xff]
        %v1116 = vld [vmem:[%s277 + $0x20] sm:$0xff]
        %v1117 = vld [vmem:[%s277 + $0x28] sm:$0xff]
        %v1118 = vld [vmem:[%s277 + $0x30] sm:$0xff]
        %v1119 = vld [vmem:[%s277 + $0x38] sm:$0xff]
        %v1120 = vld [vmem:[%s277 + $0x40] sm:$0xff]
        %v1121 = vld [vmem:[%s277 + $0x48] sm:$0xff]
        %v1122 = vld [vmem:[%s277 + $0x50] sm:$0xff]
        %v1123 = vld [vmem:[%s277 + $0x58] sm:$0xff]
        %v1124 = vld [vmem:[%s277 + $0x60] sm:$0xff]
        %v1125 = vld [vmem:[%s277 + $0x68] sm:$0xff]
        %v1126 = vld [vmem:[%s277 + $0x70] sm:$0xff]
        %v1127 = vld [vmem:[%s277 + $0x78] sm:$0xff]
        %v1128 = vld [vmem:[%s277 + $0x80] sm:$0xff]
        %v1129 = vld [vmem:[%s277 + $0x88] sm:$0xff]
        %v1130 = vld [vmem:[%s277 + $0x90] sm:$0xff]
        %v1131 = vld [vmem:[%s277 + $0x98] sm:$0xff]
        %v1132 = vld [vmem:[%s277 + $0xa0] sm:$0xff]
        %v1133 = vld [vmem:[%s277 + $0xa8] sm:$0xff]
        %v1134 = vld [vmem:[%s277 + $0xb0] sm:$0xff]
        %v1135 = vld [vmem:[%s277 + $0xb8] sm:$0xff]
        %v1136 = vld [vmem:[%s277 + $0xc0] sm:$0xff]
        %v1137 = vld [vmem:[%s277 + $0xc8] sm:$0xff]
        %v1138 = vld [vmem:[%s277 + $0xd0] sm:$0xff]
        %v1139 = vld [vmem:[%s277 + $0xd8] sm:$0xff]
        %v1140 = vld [vmem:[%s277 + $0xe0] sm:$0xff]
        %v1141 = vld [vmem:[%s277 + $0xe8] sm:$0xff]
        %v1142 = vld [vmem:[%s277 + $0xf0] sm:$0xff]
        %v1143 = vld [vmem:[%s277 + $0xf8] sm:$0xff]
        %v1144 = vld [vmem:[%s277 + $0x100] sm:$0xff]
        %v1145 = vld [vmem:[%s277 + $0x108] sm:$0xff]
        %v1146 = vld [vmem:[%s277 + $0x110] sm:$0xff]
        %v1147 = vld [vmem:[%s277 + $0x118] sm:$0xff]
        %v1148 = vld [vmem:[%s277 + $0x120] sm:$0xff]
        %v1149 = vld [vmem:[%s277 + $0x128] sm:$0xff]
        %v1150 = vld [vmem:[%s277 + $0x130] sm:$0xff]
        %v1151 = vld [vmem:[%s277 + $0x138] sm:$0xff]
        %v1152 = vld [vmem:[%s277 + $0x140] sm:$0xff]
        %v1153 = vld [vmem:[%s277 + $0x148] sm:$0xff]
        %v1154 = vld [vmem:[%s277 + $0x150] sm:$0xff]
        %v1155 = vld [vmem:[%s277 + $0x158] sm:$0xff]
        %v1156 = vld [vmem:[%s277 + $0x160] sm:$0xff]
        %v1157 = vld [vmem:[%s277 + $0x168] sm:$0xff]
        %v1158 = vld [vmem:[%s277 + $0x170] sm:$0xff]
        %v1159 = vld [vmem:[%s277 + $0x178] sm:$0xff]
        %v1160 = vld [vmem:[%s277 + $0x180] sm:$0xff]
        %v1161 = vld [vmem:[%s277 + $0x188] sm:$0xff]
        %v1162 = vld [vmem:[%s277 + $0x190] sm:$0xff]
        %v1163 = vld [vmem:[%s277 + $0x198] sm:$0xff]
        %v1164 = vld [vmem:[%s277 + $0x1a0] sm:$0xff]
        %v1165 = vld [vmem:[%s277 + $0x1a8] sm:$0xff]
        %v1166 = vld [vmem:[%s277 + $0x1b0] sm:$0xff]
        %v1167 = vld [vmem:[%s277 + $0x1b8] sm:$0xff]
        %v1168 = vld [vmem:[%s277 + $0x1c0] sm:$0xff]
        %v1169 = vld [vmem:[%s277 + $0x1c8] sm:$0xff]
        %v1170 = vld [vmem:[%s277 + $0x1d0] sm:$0xff]
        %v1171 = vld [vmem:[%s277 + $0x1d8] sm:$0xff]
        %v1172 = vld [vmem:[%s277 + $0x1e0] sm:$0xff]
        %v1173 = vld [vmem:[%s277 + $0x1e8] sm:$0xff]
        %v1174 = vld [vmem:[%s277 + $0x1f0] sm:$0xff]
        %v1175 = vld [vmem:[%s277 + $0x1f8] sm:$0xff]
        %v1176 = vld [vmem:[%s277 + $0x200] sm:$0xff]
        %v1177 = vld [vmem:[%s277 + $0x208] sm:$0xff]
        %v1178 = vld [vmem:[%s277 + $0x210] sm:$0xff]
        %v1179 = vld [vmem:[%s277 + $0x218] sm:$0xff]
        %v1180 = vld [vmem:[%s277 + $0x220] sm:$0xff]
        %v1181 = vld [vmem:[%s277 + $0x228] sm:$0xff]
        %v1182 = vld [vmem:[%s277 + $0x230] sm:$0xff]
        %v1183 = vld [vmem:[%s277 + $0x238] sm:$0xff]
        %v1184 = vld [vmem:[%s277 + $0x240] sm:$0xff]
        %v1185 = vld [vmem:[%s277 + $0x248] sm:$0xff]
        %v1186 = vld [vmem:[%s277 + $0x250] sm:$0xff]
        %v1187 = vld [vmem:[%s277 + $0x258] sm:$0xff]
        %v1188 = vld [vmem:[%s277 + $0x260] sm:$0xff]
        %v1189 = vld [vmem:[%s277 + $0x268] sm:$0xff]
        %v1190 = vld [vmem:[%s277 + $0x270] sm:$0xff]
        %v1191 = vld [vmem:[%s277 + $0x278] sm:$0xff]
        %v1192 = vld [vmem:[%s277 + $0x280] sm:$0xff]
        %v1193 = vld [vmem:[%s277 + $0x288] sm:$0xff]
        %v1194 = vld [vmem:[%s277 + $0x290] sm:$0xff]
        %v1195 = vld [vmem:[%s277 + $0x298] sm:$0xff]
        %v1196 = vld [vmem:[%s277 + $0x2a0] sm:$0xff]
        %v1197 = vld [vmem:[%s277 + $0x2a8] sm:$0xff]
        %v1198 = vld [vmem:[%s277 + $0x2b0] sm:$0xff]
        %v1199 = vld [vmem:[%s277 + $0x2b8] sm:$0xff]
        %v1200 = vld [vmem:[%s277 + $0x2c0] sm:$0xff]
        %v1201 = vld [vmem:[%s277 + $0x2c8] sm:$0xff]
        %v1202 = vld [vmem:[%s277 + $0x2d0] sm:$0xff]
        %v1203 = vld [vmem:[%s277 + $0x2d8] sm:$0xff]
        %v1204 = vld [vmem:[%s277 + $0x2e0] sm:$0xff]
        %v1205 = vld [vmem:[%s277 + $0x2e8] sm:$0xff]
        %v1206 = vld [vmem:[%s277 + $0x2f0] sm:$0xff]
        %v1207 = vld [vmem:[%s277 + $0x2f8] sm:$0xff]
        %v1208 = vld [vmem:[%s277 + $0x300] sm:$0xff]
        %v1209 = vld [vmem:[%s277 + $0x308] sm:$0xff]
        %v1210 = vld [vmem:[%s277 + $0x310] sm:$0xff]
        %v1211 = vld [vmem:[%s277 + $0x318] sm:$0xff]
        %v1212 = vld [vmem:[%s277 + $0x320] sm:$0xff]
        %v1213 = vld [vmem:[%s277 + $0x328] sm:$0xff]
        %v1214 = vld [vmem:[%s277 + $0x330] sm:$0xff]
        %v1215 = vld [vmem:[%s277 + $0x338] sm:$0xff]
        %v1216 = vld [vmem:[%s277 + $0x340] sm:$0xff]
        %v1217 = vld [vmem:[%s277 + $0x348] sm:$0xff]
        %v1218 = vld [vmem:[%s277 + $0x350] sm:$0xff]
        %v1219 = vld [vmem:[%s277 + $0x358] sm:$0xff]
        %v1220 = vld [vmem:[%s277 + $0x360] sm:$0xff]
        %v1221 = vld [vmem:[%s277 + $0x368] sm:$0xff]
        %v1222 = vld [vmem:[%s277 + $0x370] sm:$0xff]
        %v1223 = vld [vmem:[%s277 + $0x378] sm:$0xff]
        %v1224 = vld [vmem:[%s277 + $0x380] sm:$0xff]
        %v1225 = vld [vmem:[%s277 + $0x388] sm:$0xff]
        %v1226 = vld [vmem:[%s277 + $0x390] sm:$0xff]
        %v1227 = vld [vmem:[%s277 + $0x398] sm:$0xff]
        %v1228 = vld [vmem:[%s277 + $0x3a0] sm:$0xff]
        %v1229 = vld [vmem:[%s277 + $0x3a8] sm:$0xff]
        %v1230 = vld [vmem:[%s277 + $0x3b0] sm:$0xff]
        %v1231 = vld [vmem:[%s277 + $0x3b8] sm:$0xff]
        %v1232 = vld [vmem:[%s277 + $0x3c0] sm:$0xff]
        %v1233 = vld [vmem:[%s277 + $0x3c8] sm:$0xff]
        %v1234 = vld [vmem:[%s277 + $0x3d0] sm:$0xff]
        %v1235 = vld [vmem:[%s277 + $0x3d8] sm:$0xff]
        %v1236 = vld [vmem:[%s277 + $0x3e0] sm:$0xff]
        %v1237 = vld [vmem:[%s277 + $0x3e8] sm:$0xff]
        %v1238 = vld [vmem:[%s277 + $0x3f0] sm:$0xff]
        %v1239 = vld [vmem:[%s277 + $0x3f8] sm:$0xff]
        %v1240 = vld [vmem:[%s277 + $0x400] sm:$0xff]
        %v1241 = vld [vmem:[%s277 + $0x408] sm:$0xff]
        %v1242 = vld [vmem:[%s277 + $0x410] sm:$0xff]
        %v1243 = vld [vmem:[%s277 + $0x418] sm:$0xff]
        %v1244 = vld [vmem:[%s277 + $0x420] sm:$0xff]
        %v1245 = vld [vmem:[%s277 + $0x428] sm:$0xff]
        %v1246 = vld [vmem:[%s277 + $0x430] sm:$0xff]
        %v1247 = vld [vmem:[%s277 + $0x438] sm:$0xff]
        %v1248 = vld [vmem:[%s277 + $0x440] sm:$0xff]
        %v1249 = vld [vmem:[%s277 + $0x448] sm:$0xff]
        %v1250 = vld [vmem:[%s277 + $0x450] sm:$0xff]
        %v1251 = vld [vmem:[%s277 + $0x458] sm:$0xff]
        %v1252 = vld [vmem:[%s277 + $0x460] sm:$0xff]
        %v1253 = vld [vmem:[%s277 + $0x468] sm:$0xff]
        %v1254 = vld [vmem:[%s277 + $0x470] sm:$0xff]
        %v1255 = vld [vmem:[%s277 + $0x478] sm:$0xff]
        %v1256 = vld [vmem:[%s277 + $0x480] sm:$0xff]
        %v1257 = vld [vmem:[%s277 + $0x488] sm:$0xff]
        %v1258 = vld [vmem:[%s277 + $0x490] sm:$0xff]
        %v1259 = vld [vmem:[%s277 + $0x498] sm:$0xff]
        %v1260 = vld [vmem:[%s277 + $0x4a0] sm:$0xff]
        %v1261 = vld [vmem:[%s277 + $0x4a8] sm:$0xff]
        %v1262 = vld [vmem:[%s277 + $0x4b0] sm:$0xff]
        %v1263 = vld [vmem:[%s277 + $0x4b8] sm:$0xff]
        %v1264 = vld [vmem:[%s277 + $0x4c0] sm:$0xff]
        %v1265 = vld [vmem:[%s277 + $0x4c8] sm:$0xff]
        %v1266 = vld [vmem:[%s277 + $0x4d0] sm:$0xff]
        %v1267 = vld [vmem:[%s277 + $0x4d8] sm:$0xff]
        %v1268 = vld [vmem:[%s277 + $0x4e0] sm:$0xff]
        %v1269 = vld [vmem:[%s277 + $0x4e8] sm:$0xff]
        %v1270 = vld [vmem:[%s277 + $0x4f0] sm:$0xff]
        %v1271 = vld [vmem:[%s277 + $0x4f8] sm:$0xff]
        %v1272 = vld [vmem:[%s277 + $0x500] sm:$0xff]
        %v1273 = vld [vmem:[%s277 + $0x508] sm:$0xff]
        %v1274 = vld [vmem:[%s277 + $0x510] sm:$0xff]
        %v1275 = vld [vmem:[%s277 + $0x518] sm:$0xff]
        %v1276 = vld [vmem:[%s277 + $0x520] sm:$0xff]
        %v1277 = vld [vmem:[%s277 + $0x528] sm:$0xff]
        %v1278 = vld [vmem:[%s277 + $0x530] sm:$0xff]
        %v1279 = vld [vmem:[%s277 + $0x538] sm:$0xff]
        %v1280 = vld [vmem:[%s277 + $0x540] sm:$0xff]
        %v1281 = vld [vmem:[%s277 + $0x548] sm:$0xff]
        %v1282 = vld [vmem:[%s277 + $0x550] sm:$0xff]
        %v1283 = vld [vmem:[%s277 + $0x558] sm:$0xff]
        %v1284 = vld [vmem:[%s277 + $0x560] sm:$0xff]
        %v1285 = vld [vmem:[%s277 + $0x568] sm:$0xff]
        %v1286 = vld [vmem:[%s277 + $0x570] sm:$0xff]
        %v1287 = vld [vmem:[%s277 + $0x578] sm:$0xff]
        %v1288 = vld [vmem:[%s277 + $0x580] sm:$0xff]
        %v1289 = vld [vmem:[%s277 + $0x588] sm:$0xff]
        %v1290 = vld [vmem:[%s277 + $0x590] sm:$0xff]
        %v1291 = vld [vmem:[%s277 + $0x598] sm:$0xff]
        %v1292 = vld [vmem:[%s277 + $0x5a0] sm:$0xff]
        %v1293 = vld [vmem:[%s277 + $0x5a8] sm:$0xff]
        %v1294 = vld [vmem:[%s277 + $0x5b0] sm:$0xff]
        %v1295 = vld [vmem:[%s277 + $0x5b8] sm:$0xff]
        %v1296 = vld [vmem:[%s277 + $0x5c0] sm:$0xff]
        %v1297 = vld [vmem:[%s277 + $0x5c8] sm:$0xff]
        %v1298 = vld [vmem:[%s277 + $0x5d0] sm:$0xff]
        %v1299 = vld [vmem:[%s277 + $0x5d8] sm:$0xff]
        %v1300 = vld [vmem:[%s277 + $0x5e0] sm:$0xff]
        %v1301 = vld [vmem:[%s277 + $0x5e8] sm:$0xff]
        %v1302 = vld [vmem:[%s277 + $0x5f0] sm:$0xff]
        %v1303 = vld [vmem:[%s277 + $0x5f8] sm:$0xff]
        %v1304 = vld [vmem:[%s277 + $0x600] sm:$0xff]
        %v1305 = vld [vmem:[%s277 + $0x608] sm:$0xff]
        %v1306 = vld [vmem:[%s277 + $0x610] sm:$0xff]
        %v1307 = vld [vmem:[%s277 + $0x618] sm:$0xff]
        %v1308 = vld [vmem:[%s277 + $0x620] sm:$0xff]
        %v1309 = vld [vmem:[%s277 + $0x628] sm:$0xff]
        %v1310 = vld [vmem:[%s277 + $0x630] sm:$0xff]
        %v1311 = vld [vmem:[%s277 + $0x638] sm:$0xff]
        %v1312 = vld [vmem:[%s277 + $0x640] sm:$0xff]
        %v1313 = vld [vmem:[%s277 + $0x648] sm:$0xff]
        %v1314 = vld [vmem:[%s277 + $0x650] sm:$0xff]
        %v1315 = vld [vmem:[%s277 + $0x658] sm:$0xff]
        %v1316 = vld [vmem:[%s277 + $0x660] sm:$0xff]
        %v1317 = vld [vmem:[%s277 + $0x668] sm:$0xff]
        %v1318 = vld [vmem:[%s277 + $0x670] sm:$0xff]
        %v1319 = vld [vmem:[%s277 + $0x678] sm:$0xff]
        %v1320 = vld [vmem:[%s277 + $0x680] sm:$0xff]
        %v1321 = vld [vmem:[%s277 + $0x688] sm:$0xff]
        %v1322 = vld [vmem:[%s277 + $0x690] sm:$0xff]
        %v1323 = vld [vmem:[%s277 + $0x698] sm:$0xff]
        %v1324 = vld [vmem:[%s277 + $0x6a0] sm:$0xff]
        %v1325 = vld [vmem:[%s277 + $0x6a8] sm:$0xff]
        %v1326 = vld [vmem:[%s277 + $0x6b0] sm:$0xff]
        %v1327 = vld [vmem:[%s277 + $0x6b8] sm:$0xff]
        %v1328 = vld [vmem:[%s277 + $0x6c0] sm:$0xff]
        %v1329 = vld [vmem:[%s277 + $0x6c8] sm:$0xff]
        %v1330 = vld [vmem:[%s277 + $0x6d0] sm:$0xff]
        %v1331 = vld [vmem:[%s277 + $0x6d8] sm:$0xff]
        %v1332 = vld [vmem:[%s277 + $0x6e0] sm:$0xff]
        %v1333 = vld [vmem:[%s277 + $0x6e8] sm:$0xff]
        %v1334 = vld [vmem:[%s277 + $0x6f0] sm:$0xff]
        %v1335 = vld [vmem:[%s277 + $0x6f8] sm:$0xff]
        %v1336 = vld [vmem:[%s277 + $0x700] sm:$0xff]
        %v1337 = vld [vmem:[%s277 + $0x708] sm:$0xff]
        %v1338 = vld [vmem:[%s277 + $0x710] sm:$0xff]
        %v1339 = vld [vmem:[%s277 + $0x718] sm:$0xff]
        %v1340 = vld [vmem:[%s277 + $0x720] sm:$0xff]
        %v1341 = vld [vmem:[%s277 + $0x728] sm:$0xff]
        %v1342 = vld [vmem:[%s277 + $0x730] sm:$0xff]
        %v1343 = vld [vmem:[%s277 + $0x738] sm:$0xff]
        %v1344 = vld [vmem:[%s277 + $0x740] sm:$0xff]
        %v1345 = vld [vmem:[%s277 + $0x748] sm:$0xff]
        %v1346 = vld [vmem:[%s277 + $0x750] sm:$0xff]
        %v1347 = vld [vmem:[%s277 + $0x758] sm:$0xff]
        %v1348 = vld [vmem:[%s277 + $0x760] sm:$0xff]
        %v1349 = vld [vmem:[%s277 + $0x768] sm:$0xff]
        %v1350 = vld [vmem:[%s277 + $0x770] sm:$0xff]
        %v1351 = vld [vmem:[%s277 + $0x778] sm:$0xff]
        %v1352 = vld [vmem:[%s277 + $0x780] sm:$0xff]
        %v1353 = vld [vmem:[%s277 + $0x788] sm:$0xff]
        %v1354 = vld [vmem:[%s277 + $0x790] sm:$0xff]
        %v1355 = vld [vmem:[%s277 + $0x798] sm:$0xff]
        %v1356 = vld [vmem:[%s277 + $0x7a0] sm:$0xff]
        %v1357 = vld [vmem:[%s277 + $0x7a8] sm:$0xff]
        %v1358 = vld [vmem:[%s277 + $0x7b0] sm:$0xff]
        %v1359 = vld [vmem:[%s277 + $0x7b8] sm:$0xff]
        %v1360 = vld [vmem:[%s277 + $0x7c0] sm:$0xff]
        %v1361 = vld [vmem:[%s277 + $0x7c8] sm:$0xff]
        %v1362 = vld [vmem:[%s277 + $0x7d0] sm:$0xff]
        %v1363 = vld [vmem:[%s277 + $0x7d8] sm:$0xff]
        %v1364 = vld [vmem:[%s277 + $0x7e0] sm:$0xff]
        %v1365 = vld [vmem:[%s277 + $0x7e8] sm:$0xff]
        %v1366 = vld [vmem:[%s277 + $0x7f0] sm:$0xff]
        %v1367 = vld [vmem:[%s277 + $0x7f8] sm:$0xff]
        %v1368 = vld [vmem:[%s277 + $0x800] sm:$0xff]
        %v1369 = vld [vmem:[%s277 + $0x808] sm:$0xff]
        %v1370 = vld [vmem:[%s277 + $0x810] sm:$0xff]
        %v1371 = vld [vmem:[%s277 + $0x818] sm:$0xff]
        %v1372 = vld [vmem:[%s277 + $0x820] sm:$0xff]
        %v1373 = vld [vmem:[%s277 + $0x828] sm:$0xff]
        %v1374 = vld [vmem:[%s277 + $0x830] sm:$0xff]
        %v1375 = vld [vmem:[%s277 + $0x838] sm:$0xff]
        %v1376 = vld [vmem:[%s277 + $0x840] sm:$0xff]
        %v1377 = vld [vmem:[%s277 + $0x848] sm:$0xff]
        %v1378 = vld [vmem:[%s277 + $0x850] sm:$0xff]
        %v1379 = vld [vmem:[%s277 + $0x858] sm:$0xff]
        %v1380 = vld [vmem:[%s277 + $0x860] sm:$0xff]
        %v1381 = vld [vmem:[%s277 + $0x868] sm:$0xff]
        %v1382 = vld [vmem:[%s277 + $0x870] sm:$0xff]
        %v1383 = vld [vmem:[%s277 + $0x878] sm:$0xff]
        %v1384 = vld [vmem:[%s277 + $0x880] sm:$0xff]
        %v1385 = vld [vmem:[%s277 + $0x888] sm:$0xff]
        %v1386 = vld [vmem:[%s277 + $0x890] sm:$0xff]
        %v1387 = vld [vmem:[%s277 + $0x898] sm:$0xff]
        %v1388 = vld [vmem:[%s277 + $0x8a0] sm:$0xff]
        %v1389 = vld [vmem:[%s277 + $0x8a8] sm:$0xff]
        %v1390 = vld [vmem:[%s277 + $0x8b0] sm:$0xff]
        %v1391 = vld [vmem:[%s277 + $0x8b8] sm:$0xff]
        %v1392 = vld [vmem:[%s277 + $0x8c0] sm:$0xff]
        %v1393 = vld [vmem:[%s277 + $0x8c8] sm:$0xff]
        %v1394 = vld [vmem:[%s277 + $0x8d0] sm:$0xff]
        %v1395 = vld [vmem:[%s277 + $0x8d8] sm:$0xff]
        %v1396 = vld [vmem:[%s277 + $0x8e0] sm:$0xff]
        %v1397 = vld [vmem:[%s277 + $0x8e8] sm:$0xff]
        %v1398 = vld [vmem:[%s277 + $0x8f0] sm:$0xff]
        %v1399 = vld [vmem:[%s277 + $0x8f8] sm:$0xff]
        %v1400 = vld [vmem:[%s286] sm:$0x3f]
        %v1402 = vlaneseq
        %v1403 = vshrl.u32 %v1402, 7
        %v1404 = vsub.s32 0, %v1403
        %v1405 = vrot.slane %v1400, %v1404
        %v1406 = vlaneseq
        %v1407 = vshrl.u32 %v1406, 7
        %v1408 = vsub.s32 1, %v1407
        %v1409 = vrot.slane %v1400, %v1408
        %v1410 = vlaneseq
        %v1411 = vshrl.u32 %v1410, 7
        %v1412 = vsub.s32 2, %v1411
        %v1413 = vrot.slane %v1400, %v1412
        %v1414 = vlaneseq
        %v1415 = vshrl.u32 %v1414, 7
        %v1416 = vsub.s32 3, %v1415
        %v1417 = vrot.slane %v1400, %v1416
        %v1418 = vlaneseq
        %v1419 = vshrl.u32 %v1418, 7
        %v1420 = vsub.s32 4, %v1419
        %v1421 = vrot.slane %v1400, %v1420
        %v1422 = vlaneseq
        %v1423 = vshrl.u32 %v1422, 7
        %v1424 = vsub.s32 5, %v1423
        %v1425 = vrot.slane %v1400, %v1424
        %1432 = vmatprep.subr.mxu0 %v1113
        %1433 = vmatpush1.msra.mxu0 %v1112
        %1434 = vmatprep.subr.mxu0 %v1119
        %1435 = vmatpush1.msra.mxu0 %v1118
        %1436 = vmatprep.subr.mxu0 %v1125
        %1437 = vmatpush1.msra.mxu0 %v1124
        %1438 = vmatprep.subr.mxu0 %v1131
        %1439 = vmatpush1.msra.mxu0 %v1130
        %1440 = vmatprep.subr.mxu0 %v1137
        %1441 = vmatpush1.msra.mxu0 %v1136
        %1442 = vmatprep.subr.mxu0 %v1143
        %1443 = vmatpush1.msra.mxu0 %v1142
        %1444 = vmatprep.subr.mxu0 %v1149
        %1445 = vmatpush1.msra.mxu0 %v1148
        %1446 = vmatprep.subr.mxu0 %v1155
        %1447 = vmatpush1.msra.mxu0 %v1154
        %1448 = vmatprep.subr.mxu0 %v1161
        %1449 = vmatpush1.msra.mxu0 %v1160
        %1450 = vmatprep.subr.mxu0 %v1167
        %1451 = vmatpush1.msra.mxu0 %v1166
        %1452 = vmatprep.subr.mxu0 %v1173
        %1453 = vmatpush1.msra.mxu0 %v1172
        %1454 = vmatprep.subr.mxu0 %v1179
        %1455 = vmatpush1.msra.mxu0 %v1178
        %1456 = vmatprep.subr.mxu0 %v1185
        %1457 = vmatpush1.msra.mxu0 %v1184
        %1458 = vmatprep.subr.mxu0 %v1191
        %1459 = vmatpush1.msra.mxu0 %v1190
        %1460 = vmatprep.subr.mxu0 %v1197
        %1461 = vmatpush1.msra.mxu0 %v1196
        %1462 = vmatprep.subr.mxu0 %v1203
        %1463 = vmatpush1.msra.mxu0 %v1202
        %1464 = vmatprep.subr.mxu0 %v1209
        %1465 = vmatpush1.msra.mxu0 %v1208
        %1466 = vmatprep.subr.mxu0 %v1215
        %1467 = vmatpush1.msra.mxu0 %v1214
        %1468 = vmatprep.subr.mxu0 %v1221
        %1469 = vmatpush1.msra.mxu0 %v1220
        %1470 = vmatprep.subr.mxu0 %v1227
        %1471 = vmatpush1.msra.mxu0 %v1226
        %1472 = vmatprep.subr.mxu0 %v1233
        %1473 = vmatpush1.msra.mxu0 %v1232
        %1474 = vmatprep.subr.mxu0 %v1239
        %1475 = vmatpush1.msra.mxu0 %v1238
        %1476 = vmatprep.subr.mxu0 %v1245
        %1477 = vmatpush1.msra.mxu0 %v1244
        %1478 = vmatprep.subr.mxu0 %v1251
        %1479 = vmatpush1.msra.mxu0 %v1250
        %1480 = vmatprep.subr.mxu0 %v1257
        %1481 = vmatpush1.msra.mxu0 %v1256
        %1482 = vmatprep.subr.mxu0 %v1263
        %1483 = vmatpush1.msra.mxu0 %v1262
        %1484 = vmatprep.subr.mxu0 %v1269
        %1485 = vmatpush1.msra.mxu0 %v1268
        %1486 = vmatprep.subr.mxu0 %v1275
        %1487 = vmatpush1.msra.mxu0 %v1274
        %1488 = vmatprep.subr.mxu0 %v1281
        %1489 = vmatpush1.msra.mxu0 %v1280
        %1490 = vmatprep.subr.mxu0 %v1287
        %1491 = vmatpush1.msra.mxu0 %v1286
        %1492 = vmatprep.subr.mxu0 %v1293
        %1493 = vmatpush1.msra.mxu0 %v1292
        %1494 = vmatprep.subr.mxu0 %v1299
        %1495 = vmatpush1.msra.mxu0 %v1298
        %1496 = vmatprep.mubr.f32.mxu0 %v1038
        %1497 = vmatmul.mubr.f32.gmra.mrb[0].mxu0 %v1037
        %v1498 = vpop.f32.mrb[0].mxu0
        %v1499 = vadd.f32 %v1405, %v1498
        %v1500 = vpop.f32.mrb[0].mxu0
        %v1501 = vadd.f32 %v1409, %v1500
        %1502 = vmatprep.mubr.f32.mxu0 %v1041
        %1503 = vmatmul.mubr.f32.gmra.mrb[0].mxu0 %v1040
        %v1504 = vpop.f32.mrb[0].mxu0
        %v1505 = vadd.f32 %v1405, %v1504
        %v1506 = vpop.f32.mrb[0].mxu0
        %v1507 = vadd.f32 %v1409, %v1506
        %1508 = vmatprep.mubr.f32.mxu0 %v1044
        %1509 = vmatmul.mubr.f32.gmra.mrb[0].mxu0 %v1043
        %v1510 = vpop.f32.mrb[0].mxu0
        %v1511 = vadd.f32 %v1405, %v1510
        %v1512 = vpop.f32.mrb[0].mxu0
        %v1513 = vadd.f32 %v1409, %v1512
        %1514 = vmatprep.mubr.f32.mxu0 %v1047
        %1515 = vmatmul.mubr.f32.gmra.mrb[0].mxu0 %v1046
        %v1516 = vpop.f32.mrb[0].mxu0
        %v1517 = vadd.f32 %v1405, %v1516
        %v1518 = vpop.f32.mrb[0].mxu0
        %v1519 = vadd.f32 %v1409, %v1518
        %1520 = vmatprep.mubr.f32.mxu0 %v1050
        %1521 = vmatmul.mubr.f32.gmra.mrb[0].mxu0 %v1049
        %v1522 = vpop.f32.mrb[0].mxu0
        %v1523 = vadd.f32 %v1405, %v1522
        %v1524 = vpop.f32.mrb[0].mxu0
        %v1525 = vadd.f32 %v1409, %v1524
        %1526 = vmatprep.mubr.f32.mxu0 %v1053
        %1527 = vmatmul.mubr.f32.gmra.mrb[0].mxu0 %v1052
        %v1528 = vpop.f32.mrb[0].mxu0
        %v1529 = vadd.f32 %v1405, %v1528
        %v1530 = vpop.f32.mrb[0].mxu0
        %v1531 = vadd.f32 %v1409, %v1530
        %1532 = vmatprep.mubr.f32.mxu0 %v1056
        %1533 = vmatmul.mubr.f32.gmra.mrb[0].mxu0 %v1055
        %v1534 = vpop.f32.mrb[0].mxu0
        %v1535 = vadd.f32 %v1405, %v1534
        %v1536 = vpop.f32.mrb[0].mxu0
        %v1537 = vadd.f32 %v1409, %v1536
        %1538 = vmatprep.mubr.f32.mxu0 %v1059
        %1539 = vmatmul.mubr.f32.gmra.mrb[0].mxu0 %v1058
        %v1540 = vpop.f32.mrb[0].mxu0
        %v1541 = vadd.f32 %v1405, %v1540
        %v1542 = vpop.f32.mrb[0].mxu0
        %v1543 = vadd.f32 %v1409, %v1542
        %1544 = vmatprep.mubr.f32.mxu0 %v1062
        %1545 = vmatmul.mubr.f32.gmra.mrb[0].mxu0 %v1061
        %v1546 = vpop.f32.mrb[0].mxu0
        %v1547 = vadd.f32 %v1405, %v1546
        %v1548 = vpop.f32.mrb[0].mxu0
        %v1549 = vadd.f32 %v1409, %v1548
        %1550 = vmatprep.mubr.f32.mxu0 %v1065
        %1551 = vmatmul.mubr.f32.gmra.mrb[0].mxu0 %v1064
        %v1552 = vpop.f32.mrb[0].mxu0
        %v1553 = vadd.f32 %v1405, %v1552
        %v1554 = vpop.f32.mrb[0].mxu0
        %v1555 = vadd.f32 %v1409, %v1554
        %1556 = vmatprep.mubr.f32.mxu0 %v1068
        %1557 = vmatmul.mubr.f32.gmra.mrb[0].mxu0 %v1067
        %v1558 = vpop.f32.mrb[0].mxu0
        %v1559 = vadd.f32 %v1405, %v1558
        %v1560 = vpop.f32.mrb[0].mxu0
        %v1561 = vadd.f32 %v1409, %v1560
        %1562 = vmatprep.mubr.f32.mxu0 %v1071
        %1563 = vmatmul.mubr.f32.gmra.mrb[0].mxu0 %v1070
        %v1564 = vpop.f32.mrb[0].mxu0
        %v1565 = vadd.f32 %v1405, %v1564
        %v1566 = vpop.f32.mrb[0].mxu0
        %v1567 = vadd.f32 %v1409, %v1566
        %1568 = vmatprep.mubr.f32.mxu0 %v1074
        %1569 = vmatmul.mubr.f32.gmra.mrb[0].mxu0 %v1073
        %v1570 = vpop.f32.mrb[0].mxu0
        %v1571 = vadd.f32 %v1405, %v1570
        %v1572 = vpop.f32.mrb[0].mxu0
        %v1573 = vadd.f32 %v1409, %v1572
        %1574 = vmatprep.mubr.f32.mxu0 %v1077
        %1575 = vmatmul.mubr.f32.gmra.mrb[0].mxu0 %v1076
        %v1576 = vpop.f32.mrb[0].mxu0
        %v1577 = vadd.f32 %v1405, %v1576
        %v1578 = vpop.f32.mrb[0].mxu0
        %v1579 = vadd.f32 %v1409, %v1578
        %1580 = vmatprep.mubr.f32.mxu0 %v1080
        %1581 = vmatmul.mubr.f32.gmra.mrb[0].mxu0 %v1079
        %v1582 = vpop.f32.mrb[0].mxu0
        %v1583 = vadd.f32 %v1405, %v1582
        %v1584 = vpop.f32.mrb[0].mxu0
        %v1585 = vadd.f32 %v1409, %v1584
        %1586 = vmatprep.mubr.f32.mxu0 %v1083
        %1587 = vmatmul.mubr.f32.gmra.mrb[0].mxu0 %v1082
        %v1588 = vpop.f32.mrb[0].mxu0
        %v1589 = vadd.f32 %v1405, %v1588
        %v1590 = vpop.f32.mrb[0].mxu0
        %v1591 = vadd.f32 %v1409, %v1590
        %1592 = vmatprep.mubr.f32.mxu0 %v1086
        %1593 = vmatmul.mubr.f32.gmra.mrb[0].mxu0 %v1085
        %v1594 = vpop.f32.mrb[0].mxu0
        %v1595 = vadd.f32 %v1405, %v1594
        %v1596 = vpop.f32.mrb[0].mxu0
        %v1597 = vadd.f32 %v1409, %v1596
        %1598 = vmatprep.mubr.f32.mxu0 %v1089
        %1599 = vmatmul.mubr.f32.gmra.mrb[0].mxu0 %v1088
        %v1600 = vpop.f32.mrb[0].mxu0
        %v1601 = vadd.f32 %v1405, %v1600
        %v1602 = vpop.f32.mrb[0].mxu0
        %v1603 = vadd.f32 %v1409, %v1602
        %1604 = vmatprep.mubr.f32.mxu0 %v1092
        %1605 = vmatmul.mubr.f32.gmra.mrb[0].mxu0 %v1091
        %v1606 = vpop.f32.mrb[0].mxu0
        %v1607 = vadd.f32 %v1405, %v1606
        %v1608 = vpop.f32.mrb[0].mxu0
        %v1609 = vadd.f32 %v1409, %v1608
        %1610 = vmatprep.mubr.f32.mxu0 %v1095
        %1611 = vmatmul.mubr.f32.gmra.mrb[0].mxu0 %v1094
        %v1612 = vpop.f32.mrb[0].mxu0
        %v1613 = vadd.f32 %v1405, %v1612
        %v1614 = vpop.f32.mrb[0].mxu0
        %v1615 = vadd.f32 %v1409, %v1614
        %1616 = vmatprep.mubr.f32.mxu0 %v1098
        %1617 = vmatmul.mubr.f32.gmra.mrb[0].mxu0 %v1097
        %v1618 = vpop.f32.mrb[0].mxu0
        %v1619 = vadd.f32 %v1405, %v1618
        %v1620 = vpop.f32.mrb[0].mxu0
        %v1621 = vadd.f32 %v1409, %v1620
        %1622 = vmatprep.mubr.f32.mxu0 %v1101
        %1623 = vmatmul.mubr.f32.gmra.mrb[0].mxu0 %v1100
        %v1624 = vpop.f32.mrb[0].mxu0
        %v1625 = vadd.f32 %v1405, %v1624
        %v1626 = vpop.f32.mrb[0].mxu0
        %v1627 = vadd.f32 %v1409, %v1626
        %1628 = vmatprep.mubr.f32.mxu0 %v1104
        %1629 = vmatmul.mubr.f32.gmra.mrb[0].mxu0 %v1103
        %v1630 = vpop.f32.mrb[0].mxu0
        %v1631 = vadd.f32 %v1405, %v1630
        %v1632 = vpop.f32.mrb[0].mxu0
        %v1633 = vadd.f32 %v1409, %v1632
        %1634 = vmatprep.mubr.f32.mxu0 %v1107
        %1635 = vmatmul.mubr.f32.gmra.mrb[0].mxu0 %v1106
        %v1636 = vpop.f32.mrb[0].mxu0
        %v1637 = vadd.f32 %v1405, %v1636
        %v1638 = vpop.f32.mrb[0].mxu0
        %v1639 = vadd.f32 %v1409, %v1638
        %1640 = vmatprep.mubr.f32.mxu0 %v1110
        %1641 = vmatmul.mubr.f32.gmra.mrb[0].mxu0 %v1109
        %v1642 = vpop.f32.mrb[0].mxu0
        %v1643 = vadd.f32 %v1405, %v1642
        %v1644 = vpop.f32.mrb[0].mxu0
        %v1645 = vadd.f32 %v1409, %v1644
        %1646 = vdwg.mxu0
        %1647 = vmatprep.subr.mxu0 %v1305
        %1648 = vmatpush1.msra.mxu0 %v1304
        %1649 = vmatprep.subr.mxu0 %v1311
        %1650 = vmatpush1.msra.mxu0 %v1310
        %1651 = vmatprep.subr.mxu0 %v1317
        %1652 = vmatpush1.msra.mxu0 %v1316
        %1653 = vmatprep.subr.mxu0 %v1323
        %1654 = vmatpush1.msra.mxu0 %v1322
        %1655 = vmatprep.subr.mxu0 %v1329
        %1656 = vmatpush1.msra.mxu0 %v1328
        %1657 = vmatprep.subr.mxu0 %v1335
        %1658 = vmatpush1.msra.mxu0 %v1334
        %1659 = vmatprep.subr.mxu0 %v1341
        %1660 = vmatpush1.msra.mxu0 %v1340
        %1661 = vmatprep.subr.mxu0 %v1347
        %1662 = vmatpush1.msra.mxu0 %v1346
        %1663 = vmatprep.subr.mxu0 %v1353
        %1664 = vmatpush1.msra.mxu0 %v1352
        %1665 = vmatprep.subr.mxu0 %v1359
        %1666 = vmatpush1.msra.mxu0 %v1358
        %1667 = vmatprep.subr.mxu0 %v1365
        %1668 = vmatpush1.msra.mxu0 %v1364
        %1669 = vmatprep.subr.mxu0 %v1371
        %1670 = vmatpush1.msra.mxu0 %v1370
        %1671 = vmatprep.subr.mxu0 %v1377
        %1672 = vmatpush1.msra.mxu0 %v1376
        %1673 = vmatprep.subr.mxu0 %v1383
        %1674 = vmatpush1.msra.mxu0 %v1382
        %1675 = vmatprep.subr.mxu0 %v1389
        %1676 = vmatpush1.msra.mxu0 %v1388
        %1677 = vmatprep.subr.mxu0 %v1395
        %1678 = vmatpush1.msra.mxu0 %v1394
        %1679 = vmatprep.subr.mxu0 0.0
        %1680 = vmatpush1.msra.mxu0 0.0
        %1681 = vmatprep.subr.mxu0 0.0
        %1682 = vmatpush1.msra.mxu0 0.0
        %1683 = vmatprep.subr.mxu0 0.0
        %1684 = vmatpush1.msra.mxu0 0.0
        %1685 = vmatprep.subr.mxu0 0.0
        %1686 = vmatpush1.msra.mxu0 0.0
        %1687 = vmatprep.subr.mxu0 0.0
        %1688 = vmatpush1.msra.mxu0 0.0
        %1689 = vmatprep.subr.mxu0 0.0
        %1690 = vmatpush1.msra.mxu0 0.0
        %1691 = vmatprep.subr.mxu0 0.0
        %1692 = vmatpush1.msra.mxu0 0.0
        %1693 = vmatprep.subr.mxu0 0.0
        %1694 = vmatpush1.msra.mxu0 0.0
        %1695 = vmatprep.subr.mxu0 0.0
        %1696 = vmatpush1.msra.mxu0 0.0
        %1697 = vmatprep.subr.mxu0 0.0
        %1698 = vmatpush1.msra.mxu0 0.0
        %1699 = vmatprep.subr.mxu0 0.0
        %1700 = vmatpush1.msra.mxu0 0.0
        %1701 = vmatprep.subr.mxu0 0.0
        %1702 = vmatpush1.msra.mxu0 0.0
        %1703 = vmatprep.subr.mxu0 0.0
        %1704 = vmatpush1.msra.mxu0 0.0
        %1705 = vmatprep.subr.mxu0 0.0
        %1706 = vmatpush1.msra.mxu0 0.0
        %1707 = vmatprep.subr.mxu0 0.0
        %1708 = vmatpush1.msra.mxu0 0.0
        %1709 = vmatprep.subr.mxu0 0.0
        %1710 = vmatpush1.msra.mxu0 0.0
        %1711 = vmatprep.mubr.f32.mxu0 0.0
        %1712 = vmatmul.mubr.f32.gmra.mrb[0].mxu0 %v1039
        %v1713 = vpop.f32.mrb[0].mxu0
        %v1714 = vadd.f32 %v1499, %v1713
        %v1715 = vpop.f32.mrb[0].mxu0
        %v1716 = vadd.f32 %v1501, %v1715
        %1717 = vmatprep.mubr.f32.mxu0 0.0
        %1718 = vmatmul.mubr.f32.gmra.mrb[0].mxu0 %v1042
        %v1719 = vpop.f32.mrb[0].mxu0
        %v1720 = vadd.f32 %v1505, %v1719
        %v1721 = vpop.f32.mrb[0].mxu0
        %v1722 = vadd.f32 %v1507, %v1721
        %1723 = vmatprep.mubr.f32.mxu0 0.0
        %1724 = vmatmul.mubr.f32.gmra.mrb[0].mxu0 %v1045
        %v1725 = vpop.f32.mrb[0].mxu0
        %v1726 = vadd.f32 %v1511, %v1725
        %v1727 = vpop.f32.mrb[0].mxu0
        %v1728 = vadd.f32 %v1513, %v1727
        %1729 = vmatprep.mubr.f32.mxu0 0.0
        %1730 = vmatmul.mubr.f32.gmra.mrb[0].mxu0 %v1048
        %v1731 = vpop.f32.mrb[0].mxu0
        %v1732 = vadd.f32 %v1517, %v1731
        %v1733 = vpop.f32.mrb[0].mxu0
        %v1734 = vadd.f32 %v1519, %v1733
        %1735 = vmatprep.mubr.f32.mxu0 0.0
        %1736 = vmatmul.mubr.f32.gmra.mrb[0].mxu0 %v1051
        %v1737 = vpop.f32.mrb[0].mxu0
        %v1738 = vadd.f32 %v1523, %v1737
        %v1739 = vpop.f32.mrb[0].mxu0
        %v1740 = vadd.f32 %v1525, %v1739
        %1741 = vmatprep.mubr.f32.mxu0 0.0
        %1742 = vmatmul.mubr.f32.gmra.mrb[0].mxu0 %v1054
        %v1743 = vpop.f32.mrb[0].mxu0
        %v1744 = vadd.f32 %v1529, %v1743
        %v1745 = vpop.f32.mrb[0].mxu0
        %v1746 = vadd.f32 %v1531, %v1745
        %1747 = vmatprep.mubr.f32.mxu0 0.0
        %1748 = vmatmul.mubr.f32.gmra.mrb[0].mxu0 %v1057
        %v1749 = vpop.f32.mrb[0].mxu0
        %v1750 = vadd.f32 %v1535, %v1749
        %v1751 = vpop.f32.mrb[0].mxu0
        %v1752 = vadd.f32 %v1537, %v1751
        %1753 = vmatprep.mubr.f32.mxu0 0.0
        %1754 = vmatmul.mubr.f32.gmra.mrb[0].mxu0 %v1060
        %v1755 = vpop.f32.mrb[0].mxu0
        %v1756 = vadd.f32 %v1541, %v1755
        %v1757 = vpop.f32.mrb[0].mxu0
        %v1758 = vadd.f32 %v1543, %v1757
        %1759 = vmatprep.mubr.f32.mxu0 0.0
        %1760 = vmatmul.mubr.f32.gmra.mrb[0].mxu0 %v1063
        %v1761 = vpop.f32.mrb[0].mxu0
        %v1762 = vadd.f32 %v1547, %v1761
        %v1763 = vpop.f32.mrb[0].mxu0
        %v1764 = vadd.f32 %v1549, %v1763
        %1765 = vmatprep.mubr.f32.mxu0 0.0
        %1766 = vmatmul.mubr.f32.gmra.mrb[0].mxu0 %v1066
        %v1767 = vpop.f32.mrb[0].mxu0
        %v1768 = vadd.f32 %v1553, %v1767
        %v1769 = vpop.f32.mrb[0].mxu0
        %v1770 = vadd.f32 %v1555, %v1769
        %1771 = vmatprep.mubr.f32.mxu0 0.0
        %1772 = vmatmul.mubr.f32.gmra.mrb[0].mxu0 %v1069
        %v1773 = vpop.f32.mrb[0].mxu0
        %v1774 = vadd.f32 %v1559, %v1773
        %v1775 = vpop.f32.mrb[0].mxu0
        %v1776 = vadd.f32 %v1561, %v1775
        %1777 = vmatprep.mubr.f32.mxu0 0.0
        %1778 = vmatmul.mubr.f32.gmra.mrb[0].mxu0 %v1072
        %v1779 = vpop.f32.mrb[0].mxu0
        %v1780 = vadd.f32 %v1565, %v1779
        %v1781 = vpop.f32.mrb[0].mxu0
        %v1782 = vadd.f32 %v1567, %v1781
        %1783 = vmatprep.mubr.f32.mxu0 0.0
        %1784 = vmatmul.mubr.f32.gmra.mrb[0].mxu0 %v1075
        %v1785 = vpop.f32.mrb[0].mxu0
        %v1786 = vadd.f32 %v1571, %v1785
        %v1787 = vpop.f32.mrb[0].mxu0
        %v1788 = vadd.f32 %v1573, %v1787
        %1789 = vmatprep.mubr.f32.mxu0 0.0
        %1790 = vmatmul.mubr.f32.gmra.mrb[0].mxu0 %v1078
        %v1791 = vpop.f32.mrb[0].mxu0
        %v1792 = vadd.f32 %v1577, %v1791
        %v1793 = vpop.f32.mrb[0].mxu0
        %v1794 = vadd.f32 %v1579, %v1793
        %1795 = vmatprep.mubr.f32.mxu0 0.0
        %1796 = vmatmul.mubr.f32.gmra.mrb[0].mxu0 %v1081
        %v1797 = vpop.f32.mrb[0].mxu0
        %v1798 = vadd.f32 %v1583, %v1797
        %v1799 = vpop.f32.mrb[0].mxu0
        %v1800 = vadd.f32 %v1585, %v1799
        %1801 = vmatprep.mubr.f32.mxu0 0.0
        %1802 = vmatmul.mubr.f32.gmra.mrb[0].mxu0 %v1084
        %v1803 = vpop.f32.mrb[0].mxu0
        %v1804 = vadd.f32 %v1589, %v1803
        %v1805 = vpop.f32.mrb[0].mxu0
        %v1806 = vadd.f32 %v1591, %v1805
        %1807 = vmatprep.mubr.f32.mxu0 0.0
        %1808 = vmatmul.mubr.f32.gmra.mrb[0].mxu0 %v1087
        %v1809 = vpop.f32.mrb[0].mxu0
        %v1810 = vadd.f32 %v1595, %v1809
        %v1811 = vpop.f32.mrb[0].mxu0
        %v1812 = vadd.f32 %v1597, %v1811
        %1813 = vmatprep.mubr.f32.mxu0 0.0
        %1814 = vmatmul.mubr.f32.gmra.mrb[0].mxu0 %v1090
        %v1815 = vpop.f32.mrb[0].mxu0
        %v1816 = vadd.f32 %v1601, %v1815
        %v1817 = vpop.f32.mrb[0].mxu0
        %v1818 = vadd.f32 %v1603, %v1817
        %1819 = vmatprep.mubr.f32.mxu0 0.0
        %1820 = vmatmul.mubr.f32.gmra.mrb[0].mxu0 %v1093
        %v1821 = vpop.f32.mrb[0].mxu0
        %v1822 = vadd.f32 %v1607, %v1821
        %v1823 = vpop.f32.mrb[0].mxu0
        %v1824 = vadd.f32 %v1609, %v1823
        %1825 = vmatprep.mubr.f32.mxu0 0.0
        %1826 = vmatmul.mubr.f32.gmra.mrb[0].mxu0 %v1096
        %v1827 = vpop.f32.mrb[0].mxu0
        %v1828 = vadd.f32 %v1613, %v1827
        %v1829 = vpop.f32.mrb[0].mxu0
        %v1830 = vadd.f32 %v1615, %v1829
        %1831 = vmatprep.mubr.f32.mxu0 0.0
        %1832 = vmatmul.mubr.f32.gmra.mrb[0].mxu0 %v1099
        %v1833 = vpop.f32.mrb[0].mxu0
        %v1834 = vadd.f32 %v1619, %v1833
        %v1835 = vpop.f32.mrb[0].mxu0
        %v1836 = vadd.f32 %v1621, %v1835
        %1837 = vmatprep.mubr.f32.mxu0 0.0
        %1838 = vmatmul.mubr.f32.gmra.mrb[0].mxu0 %v1102
        %v1839 = vpop.f32.mrb[0].mxu0
        %v1840 = vadd.f32 %v1625, %v1839
        %v1841 = vpop.f32.mrb[0].mxu0
        %v1842 = vadd.f32 %v1627, %v1841
        %1843 = vmatprep.mubr.f32.mxu0 0.0
        %1844 = vmatmul.mubr.f32.gmra.mrb[0].mxu0 %v1105
        %v1845 = vpop.f32.mrb[0].mxu0
        %v1846 = vadd.f32 %v1631, %v1845
        %v1847 = vpop.f32.mrb[0].mxu0
        %v1848 = vadd.f32 %v1633, %v1847
        %1849 = vmatprep.mubr.f32.mxu0 0.0
        %1850 = vmatmul.mubr.f32.gmra.mrb[0].mxu0 %v1108
        %v1851 = vpop.f32.mrb[0].mxu0
        %v1852 = vadd.f32 %v1637, %v1851
        %v1853 = vpop.f32.mrb[0].mxu0
        %v1854 = vadd.f32 %v1639, %v1853
        %1855 = vmatprep.mubr.f32.mxu0 0.0
        %1856 = vmatmul.mubr.f32.gmra.mrb[0].mxu0 %v1111
        %v1857 = vpop.f32.mrb[0].mxu0
        %v1858 = vadd.f32 %v1643, %v1857
        %v1859 = vpop.f32.mrb[0].mxu0
        %v1860 = vadd.f32 %v1645, %v1859
        %1861 = vdwg.mxu0
        %1862 = vmatprep.subr.mxu0 %v1115
        %1863 = vmatpush1.msra.mxu0 %v1114
        %1864 = vmatprep.subr.mxu0 %v1121
        %1865 = vmatpush1.msra.mxu0 %v1120
        %1866 = vmatprep.subr.mxu0 %v1127
        %1867 = vmatpush1.msra.mxu0 %v1126
        %1868 = vmatprep.subr.mxu0 %v1133
        %1869 = vmatpush1.msra.mxu0 %v1132
        %1870 = vmatprep.subr.mxu0 %v1139
        %1871 = vmatpush1.msra.mxu0 %v1138
        %1872 = vmatprep.subr.mxu0 %v1145
        %1873 = vmatpush1.msra.mxu0 %v1144
        %1874 = vmatprep.subr.mxu0 %v1151
        %1875 = vmatpush1.msra.mxu0 %v1150
        %1876 = vmatprep.subr.mxu0 %v1157
        %1877 = vmatpush1.msra.mxu0 %v1156
        %1878 = vmatprep.subr.mxu0 %v1163
        %1879 = vmatpush1.msra.mxu0 %v1162
        %1880 = vmatprep.subr.mxu0 %v1169
        %1881 = vmatpush1.msra.mxu0 %v1168
        %1882 = vmatprep.subr.mxu0 %v1175
        %1883 = vmatpush1.msra.mxu0 %v1174
        %1884 = vmatprep.subr.mxu0 %v1181
        %1885 = vmatpush1.msra.mxu0 %v1180
        %1886 = vmatprep.subr.mxu0 %v1187
        %1887 = vmatpush1.msra.mxu0 %v1186
        %1888 = vmatprep.subr.mxu0 %v1193
        %1889 = vmatpush1.msra.mxu0 %v1192
        %1890 = vmatprep.subr.mxu0 %v1199
        %1891 = vmatpush1.msra.mxu0 %v1198
        %1892 = vmatprep.subr.mxu0 %v1205
        %1893 = vmatpush1.msra.mxu0 %v1204
        %1894 = vmatprep.subr.mxu0 %v1211
        %1895 = vmatpush1.msra.mxu0 %v1210
        %1896 = vmatprep.subr.mxu0 %v1217
        %1897 = vmatpush1.msra.mxu0 %v1216
        %1898 = vmatprep.subr.mxu0 %v1223
        %1899 = vmatpush1.msra.mxu0 %v1222
        %1900 = vmatprep.subr.mxu0 %v1229
        %1901 = vmatpush1.msra.mxu0 %v1228
        %1902 = vmatprep.subr.mxu0 %v1235
        %1903 = vmatpush1.msra.mxu0 %v1234
        %1904 = vmatprep.subr.mxu0 %v1241
        %1905 = vmatpush1.msra.mxu0 %v1240
        %1906 = vmatprep.subr.mxu0 %v1247
        %1907 = vmatpush1.msra.mxu0 %v1246
        %1908 = vmatprep.subr.mxu0 %v1253
        %1909 = vmatpush1.msra.mxu0 %v1252
        %1910 = vmatprep.subr.mxu0 %v1259
        %1911 = vmatpush1.msra.mxu0 %v1258
        %1912 = vmatprep.subr.mxu0 %v1265
        %1913 = vmatpush1.msra.mxu0 %v1264
        %1914 = vmatprep.subr.mxu0 %v1271
        %1915 = vmatpush1.msra.mxu0 %v1270
        %1916 = vmatprep.subr.mxu0 %v1277
        %1917 = vmatpush1.msra.mxu0 %v1276
        %1918 = vmatprep.subr.mxu0 %v1283
        %1919 = vmatpush1.msra.mxu0 %v1282
        %1920 = vmatprep.subr.mxu0 %v1289
        %1921 = vmatpush1.msra.mxu0 %v1288
        %1922 = vmatprep.subr.mxu0 %v1295
        %1923 = vmatpush1.msra.mxu0 %v1294
        %1924 = vmatprep.subr.mxu0 %v1301
        %1925 = vmatpush1.msra.mxu0 %v1300
        %1926 = vmatprep.mubr.f32.mxu0 %v1038
        %1927 = vmatmul.mubr.f32.gmra.mrb[0].mxu0 %v1037
        %v1928 = vpop.f32.mrb[0].mxu0
        %v1929 = vadd.f32 %v1413, %v1928
        %v1930 = vpop.f32.mrb[0].mxu0
        %v1931 = vadd.f32 %v1417, %v1930
        %1932 = vmatprep.mubr.f32.mxu0 %v1041
        %1933 = vmatmul.mubr.f32.gmra.mrb[0].mxu0 %v1040
        %v1934 = vpop.f32.mrb[0].mxu0
        %v1935 = vadd.f32 %v1413, %v1934
        %v1936 = vpop.f32.mrb[0].mxu0
        %v1937 = vadd.f32 %v1417, %v1936
        %1938 = vmatprep.mubr.f32.mxu0 %v1044
        %1939 = vmatmul.mubr.f32.gmra.mrb[0].mxu0 %v1043
        %v1940 = vpop.f32.mrb[0].mxu0
        %v1941 = vadd.f32 %v1413, %v1940
        %v1942 = vpop.f32.mrb[0].mxu0
        %v1943 = vadd.f32 %v1417, %v1942
        %1944 = vmatprep.mubr.f32.mxu0 %v1047
        %1945 = vmatmul.mubr.f32.gmra.mrb[0].mxu0 %v1046
        %v1946 = vpop.f32.mrb[0].mxu0
        %v1947 = vadd.f32 %v1413, %v1946
        %v1948 = vpop.f32.mrb[0].mxu0
        %v1949 = vadd.f32 %v1417, %v1948
        %1950 = vmatprep.mubr.f32.mxu0 %v1050
        %1951 = vmatmul.mubr.f32.gmra.mrb[0].mxu0 %v1049
        %v1952 = vpop.f32.mrb[0].mxu0
        %v1953 = vadd.f32 %v1413, %v1952
        %v1954 = vpop.f32.mrb[0].mxu0
        %v1955 = vadd.f32 %v1417, %v1954
        %1956 = vmatprep.mubr.f32.mxu0 %v1053
        %1957 = vmatmul.mubr.f32.gmra.mrb[0].mxu0 %v1052
        %v1958 = vpop.f32.mrb[0].mxu0
        %v1959 = vadd.f32 %v1413, %v1958
        %v1960 = vpop.f32.mrb[0].mxu0
        %v1961 = vadd.f32 %v1417, %v1960
        %1962 = vmatprep.mubr.f32.mxu0 %v1056
        %1963 = vmatmul.mubr.f32.gmra.mrb[0].mxu0 %v1055
        %v1964 = vpop.f32.mrb[0].mxu0
        %v1965 = vadd.f32 %v1413, %v1964
        %v1966 = vpop.f32.mrb[0].mxu0
        %v1967 = vadd.f32 %v1417, %v1966
        %1968 = vmatprep.mubr.f32.mxu0 %v1059
        %1969 = vmatmul.mubr.f32.gmra.mrb[0].mxu0 %v1058
        %v1970 = vpop.f32.mrb[0].mxu0
        %v1971 = vadd.f32 %v1413, %v1970
        %v1972 = vpop.f32.mrb[0].mxu0
        %v1973 = vadd.f32 %v1417, %v1972
        %1974 = vmatprep.mubr.f32.mxu0 %v1062
        %1975 = vmatmul.mubr.f32.gmra.mrb[0].mxu0 %v1061
        %v1976 = vpop.f32.mrb[0].mxu0
        %v1977 = vadd.f32 %v1413, %v1976
        %v1978 = vpop.f32.mrb[0].mxu0
        %v1979 = vadd.f32 %v1417, %v1978
        %1980 = vmatprep.mubr.f32.mxu0 %v1065
        %1981 = vmatmul.mubr.f32.gmra.mrb[0].mxu0 %v1064
        %v1982 = vpop.f32.mrb[0].mxu0
        %v1983 = vadd.f32 %v1413, %v1982
        %v1984 = vpop.f32.mrb[0].mxu0
        %v1985 = vadd.f32 %v1417, %v1984
        %1986 = vmatprep.mubr.f32.mxu0 %v1068
        %1987 = vmatmul.mubr.f32.gmra.mrb[0].mxu0 %v1067
        %v1988 = vpop.f32.mrb[0].mxu0
        %v1989 = vadd.f32 %v1413, %v1988
        %v1990 = vpop.f32.mrb[0].mxu0
        %v1991 = vadd.f32 %v1417, %v1990
        %1992 = vmatprep.mubr.f32.mxu0 %v1071
        %1993 = vmatmul.mubr.f32.gmra.mrb[0].mxu0 %v1070
        %v1994 = vpop.f32.mrb[0].mxu0
        %v1995 = vadd.f32 %v1413, %v1994
        %v1996 = vpop.f32.mrb[0].mxu0
        %v1997 = vadd.f32 %v1417, %v1996
        %1998 = vmatprep.mubr.f32.mxu0 %v1074
        %1999 = vmatmul.mubr.f32.gmra.mrb[0].mxu0 %v1073
        %v2000 = vpop.f32.mrb[0].mxu0
        %v2001 = vadd.f32 %v1413, %v2000
        %v2002 = vpop.f32.mrb[0].mxu0
        %v2003 = vadd.f32 %v1417, %v2002
        %2004 = vmatprep.mubr.f32.mxu0 %v1077
        %2005 = vmatmul.mubr.f32.gmra.mrb[0].mxu0 %v1076
        %v2006 = vpop.f32.mrb[0].mxu0
        %v2007 = vadd.f32 %v1413, %v2006
        %v2008 = vpop.f32.mrb[0].mxu0
        %v2009 = vadd.f32 %v1417, %v2008
        %2010 = vmatprep.mubr.f32.mxu0 %v1080
        %2011 = vmatmul.mubr.f32.gmra.mrb[0].mxu0 %v1079
        %v2012 = vpop.f32.mrb[0].mxu0
        %v2013 = vadd.f32 %v1413, %v2012
        %v2014 = vpop.f32.mrb[0].mxu0
        %v2015 = vadd.f32 %v1417, %v2014
        %2016 = vmatprep.mubr.f32.mxu0 %v1083
        %2017 = vmatmul.mubr.f32.gmra.mrb[0].mxu0 %v1082
        %v2018 = vpop.f32.mrb[0].mxu0
        %v2019 = vadd.f32 %v1413, %v2018
        %v2020 = vpop.f32.mrb[0].mxu0
        %v2021 = vadd.f32 %v1417, %v2020
        %2022 = vmatprep.mubr.f32.mxu0 %v1086
        %2023 = vmatmul.mubr.f32.gmra.mrb[0].mxu0 %v1085
        %v2024 = vpop.f32.mrb[0].mxu0
        %v2025 = vadd.f32 %v1413, %v2024
        %v2026 = vpop.f32.mrb[0].mxu0
        %v2027 = vadd.f32 %v1417, %v2026
        %2028 = vmatprep.mubr.f32.mxu0 %v1089
        %2029 = vmatmul.mubr.f32.gmra.mrb[0].mxu0 %v1088
        %v2030 = vpop.f32.mrb[0].mxu0
        %v2031 = vadd.f32 %v1413, %v2030
        %v2032 = vpop.f32.mrb[0].mxu0
        %v2033 = vadd.f32 %v1417, %v2032
        %2034 = vmatprep.mubr.f32.mxu0 %v1092
        %2035 = vmatmul.mubr.f32.gmra.mrb[0].mxu0 %v1091
        %v2036 = vpop.f32.mrb[0].mxu0
        %v2037 = vadd.f32 %v1413, %v2036
        %v2038 = vpop.f32.mrb[0].mxu0
        %v2039 = vadd.f32 %v1417, %v2038
        %2040 = vmatprep.mubr.f32.mxu0 %v1095
        %2041 = vmatmul.mubr.f32.gmra.mrb[0].mxu0 %v1094
        %v2042 = vpop.f32.mrb[0].mxu0
        %v2043 = vadd.f32 %v1413, %v2042
        %v2044 = vpop.f32.mrb[0].mxu0
        %v2045 = vadd.f32 %v1417, %v2044
        %2046 = vmatprep.mubr.f32.mxu0 %v1098
        %2047 = vmatmul.mubr.f32.gmra.mrb[0].mxu0 %v1097
        %v2048 = vpop.f32.mrb[0].mxu0
        %v2049 = vadd.f32 %v1413, %v2048
        %v2050 = vpop.f32.mrb[0].mxu0
        %v2051 = vadd.f32 %v1417, %v2050
        %2052 = vmatprep.mubr.f32.mxu0 %v1101
        %2053 = vmatmul.mubr.f32.gmra.mrb[0].mxu0 %v1100
        %v2054 = vpop.f32.mrb[0].mxu0
        %v2055 = vadd.f32 %v1413, %v2054
        %v2056 = vpop.f32.mrb[0].mxu0
        %v2057 = vadd.f32 %v1417, %v2056
        %2058 = vmatprep.mubr.f32.mxu0 %v1104
        %2059 = vmatmul.mubr.f32.gmra.mrb[0].mxu0 %v1103
        %v2060 = vpop.f32.mrb[0].mxu0
        %v2061 = vadd.f32 %v1413, %v2060
        %v2062 = vpop.f32.mrb[0].mxu0
        %v2063 = vadd.f32 %v1417, %v2062
        %2064 = vmatprep.mubr.f32.mxu0 %v1107
        %2065 = vmatmul.mubr.f32.gmra.mrb[0].mxu0 %v1106
        %v2066 = vpop.f32.mrb[0].mxu0
        %v2067 = vadd.f32 %v1413, %v2066
        %v2068 = vpop.f32.mrb[0].mxu0
        %v2069 = vadd.f32 %v1417, %v2068
        %2070 = vmatprep.mubr.f32.mxu0 %v1110
        %2071 = vmatmul.mubr.f32.gmra.mrb[0].mxu0 %v1109
        %v2072 = vpop.f32.mrb[0].mxu0
        %v2073 = vadd.f32 %v1413, %v2072
        %v2074 = vpop.f32.mrb[0].mxu0
        %v2075 = vadd.f32 %v1417, %v2074
        %2076 = vdwg.mxu0
        %2077 = vmatprep.subr.mxu0 %v1307
        %2078 = vmatpush1.msra.mxu0 %v1306
        %2079 = vmatprep.subr.mxu0 %v1313
        %2080 = vmatpush1.msra.mxu0 %v1312
        %2081 = vmatprep.subr.mxu0 %v1319
        %2082 = vmatpush1.msra.mxu0 %v1318
        %2083 = vmatprep.subr.mxu0 %v1325
        %2084 = vmatpush1.msra.mxu0 %v1324
        %2085 = vmatprep.subr.mxu0 %v1331
        %2086 = vmatpush1.msra.mxu0 %v1330
        %2087 = vmatprep.subr.mxu0 %v1337
        %2088 = vmatpush1.msra.mxu0 %v1336
        %2089 = vmatprep.subr.mxu0 %v1343
        %2090 = vmatpush1.msra.mxu0 %v1342
        %2091 = vmatprep.subr.mxu0 %v1349
        %2092 = vmatpush1.msra.mxu0 %v1348
        %2093 = vmatprep.subr.mxu0 %v1355
        %2094 = vmatpush1.msra.mxu0 %v1354
        %2095 = vmatprep.subr.mxu0 %v1361
        %2096 = vmatpush1.msra.mxu0 %v1360
        %2097 = vmatprep.subr.mxu0 %v1367
        %2098 = vmatpush1.msra.mxu0 %v1366
        %2099 = vmatprep.subr.mxu0 %v1373
        %2100 = vmatpush1.msra.mxu0 %v1372
        %2101 = vmatprep.subr.mxu0 %v1379
        %2102 = vmatpush1.msra.mxu0 %v1378
        %2103 = vmatprep.subr.mxu0 %v1385
        %2104 = vmatpush1.msra.mxu0 %v1384
        %2105 = vmatprep.subr.mxu0 %v1391
        %2106 = vmatpush1.msra.mxu0 %v1390
        %2107 = vmatprep.subr.mxu0 %v1397
        %2108 = vmatpush1.msra.mxu0 %v1396
        %2109 = vmatprep.subr.mxu0 0.0
        %2110 = vmatpush1.msra.mxu0 0.0
        %2111 = vmatprep.subr.mxu0 0.0
        %2112 = vmatpush1.msra.mxu0 0.0
        %2113 = vmatprep.subr.mxu0 0.0
        %2114 = vmatpush1.msra.mxu0 0.0
        %2115 = vmatprep.subr.mxu0 0.0
        %2116 = vmatpush1.msra.mxu0 0.0
        %2117 = vmatprep.subr.mxu0 0.0
        %2118 = vmatpush1.msra.mxu0 0.0
        %2119 = vmatprep.subr.mxu0 0.0
        %2120 = vmatpush1.msra.mxu0 0.0
        %2121 = vmatprep.subr.mxu0 0.0
        %2122 = vmatpush1.msra.mxu0 0.0
        %2123 = vmatprep.subr.mxu0 0.0
        %2124 = vmatpush1.msra.mxu0 0.0
        %2125 = vmatprep.subr.mxu0 0.0
        %2126 = vmatpush1.msra.mxu0 0.0
        %2127 = vmatprep.subr.mxu0 0.0
        %2128 = vmatpush1.msra.mxu0 0.0
        %2129 = vmatprep.subr.mxu0 0.0
        %2130 = vmatpush1.msra.mxu0 0.0
        %2131 = vmatprep.subr.mxu0 0.0
        %2132 = vmatpush1.msra.mxu0 0.0
        %2133 = vmatprep.subr.mxu0 0.0
        %2134 = vmatpush1.msra.mxu0 0.0
        %2135 = vmatprep.subr.mxu0 0.0
        %2136 = vmatpush1.msra.mxu0 0.0
        %2137 = vmatprep.subr.mxu0 0.0
        %2138 = vmatpush1.msra.mxu0 0.0
        %2139 = vmatprep.subr.mxu0 0.0
        %2140 = vmatpush1.msra.mxu0 0.0
        %2141 = vmatprep.mubr.f32.mxu0 0.0
        %2142 = vmatmul.mubr.f32.gmra.mrb[0].mxu0 %v1039
        %v2143 = vpop.f32.mrb[0].mxu0
        %v2144 = vadd.f32 %v1929, %v2143
        %v2145 = vpop.f32.mrb[0].mxu0
        %v2146 = vadd.f32 %v1931, %v2145
        %2147 = vmatprep.mubr.f32.mxu0 0.0
        %2148 = vmatmul.mubr.f32.gmra.mrb[0].mxu0 %v1042
        %v2149 = vpop.f32.mrb[0].mxu0
        %v2150 = vadd.f32 %v1935, %v2149
        %v2151 = vpop.f32.mrb[0].mxu0
        %v2152 = vadd.f32 %v1937, %v2151
        %2153 = vmatprep.mubr.f32.mxu0 0.0
        %2154 = vmatmul.mubr.f32.gmra.mrb[0].mxu0 %v1045
        %v2155 = vpop.f32.mrb[0].mxu0
        %v2156 = vadd.f32 %v1941, %v2155
        %v2157 = vpop.f32.mrb[0].mxu0
        %v2158 = vadd.f32 %v1943, %v2157
        %2159 = vmatprep.mubr.f32.mxu0 0.0
        %2160 = vmatmul.mubr.f32.gmra.mrb[0].mxu0 %v1048
        %v2161 = vpop.f32.mrb[0].mxu0
        %v2162 = vadd.f32 %v1947, %v2161
        %v2163 = vpop.f32.mrb[0].mxu0
        %v2164 = vadd.f32 %v1949, %v2163
        %2165 = vmatprep.mubr.f32.mxu0 0.0
        %2166 = vmatmul.mubr.f32.gmra.mrb[0].mxu0 %v1051
        %v2167 = vpop.f32.mrb[0].mxu0
        %v2168 = vadd.f32 %v1953, %v2167
        %v2169 = vpop.f32.mrb[0].mxu0
        %v2170 = vadd.f32 %v1955, %v2169
        %2171 = vmatprep.mubr.f32.mxu0 0.0
        %2172 = vmatmul.mubr.f32.gmra.mrb[0].mxu0 %v1054
        %v2173 = vpop.f32.mrb[0].mxu0
        %v2174 = vadd.f32 %v1959, %v2173
        %v2175 = vpop.f32.mrb[0].mxu0
        %v2176 = vadd.f32 %v1961, %v2175
        %2177 = vmatprep.mubr.f32.mxu0 0.0
        %2178 = vmatmul.mubr.f32.gmra.mrb[0].mxu0 %v1057
        %v2179 = vpop.f32.mrb[0].mxu0
        %v2180 = vadd.f32 %v1965, %v2179
        %v2181 = vpop.f32.mrb[0].mxu0
        %v2182 = vadd.f32 %v1967, %v2181
        %2183 = vmatprep.mubr.f32.mxu0 0.0
        %2184 = vmatmul.mubr.f32.gmra.mrb[0].mxu0 %v1060
        %v2185 = vpop.f32.mrb[0].mxu0
        %v2186 = vadd.f32 %v1971, %v2185
        %v2187 = vpop.f32.mrb[0].mxu0
        %v2188 = vadd.f32 %v1973, %v2187
        %2189 = vmatprep.mubr.f32.mxu0 0.0
        %2190 = vmatmul.mubr.f32.gmra.mrb[0].mxu0 %v1063
        %v2191 = vpop.f32.mrb[0].mxu0
        %v2192 = vadd.f32 %v1977, %v2191
        %v2193 = vpop.f32.mrb[0].mxu0
        %v2194 = vadd.f32 %v1979, %v2193
        %2195 = vmatprep.mubr.f32.mxu0 0.0
        %2196 = vmatmul.mubr.f32.gmra.mrb[0].mxu0 %v1066
        %v2197 = vpop.f32.mrb[0].mxu0
        %v2198 = vadd.f32 %v1983, %v2197
        %v2199 = vpop.f32.mrb[0].mxu0
        %v2200 = vadd.f32 %v1985, %v2199
        %2201 = vmatprep.mubr.f32.mxu0 0.0
        %2202 = vmatmul.mubr.f32.gmra.mrb[0].mxu0 %v1069
        %v2203 = vpop.f32.mrb[0].mxu0
        %v2204 = vadd.f32 %v1989, %v2203
        %v2205 = vpop.f32.mrb[0].mxu0
        %v2206 = vadd.f32 %v1991, %v2205
        %2207 = vmatprep.mubr.f32.mxu0 0.0
        %2208 = vmatmul.mubr.f32.gmra.mrb[0].mxu0 %v1072
        %v2209 = vpop.f32.mrb[0].mxu0
        %v2210 = vadd.f32 %v1995, %v2209
        %v2211 = vpop.f32.mrb[0].mxu0
        %v2212 = vadd.f32 %v1997, %v2211
        %2213 = vmatprep.mubr.f32.mxu0 0.0
        %2214 = vmatmul.mubr.f32.gmra.mrb[0].mxu0 %v1075
        %v2215 = vpop.f32.mrb[0].mxu0
        %v2216 = vadd.f32 %v2001, %v2215
        %v2217 = vpop.f32.mrb[0].mxu0
        %v2218 = vadd.f32 %v2003, %v2217
        %2219 = vmatprep.mubr.f32.mxu0 0.0
        %2220 = vmatmul.mubr.f32.gmra.mrb[0].mxu0 %v1078
        %v2221 = vpop.f32.mrb[0].mxu0
        %v2222 = vadd.f32 %v2007, %v2221
        %v2223 = vpop.f32.mrb[0].mxu0
        %v2224 = vadd.f32 %v2009, %v2223
        %2225 = vmatprep.mubr.f32.mxu0 0.0
        %2226 = vmatmul.mubr.f32.gmra.mrb[0].mxu0 %v1081
        %v2227 = vpop.f32.mrb[0].mxu0
        %v2228 = vadd.f32 %v2013, %v2227
        %v2229 = vpop.f32.mrb[0].mxu0
        %v2230 = vadd.f32 %v2015, %v2229
        %2231 = vmatprep.mubr.f32.mxu0 0.0
        %2232 = vmatmul.mubr.f32.gmra.mrb[0].mxu0 %v1084
        %v2233 = vpop.f32.mrb[0].mxu0
        %v2234 = vadd.f32 %v2019, %v2233
        %v2235 = vpop.f32.mrb[0].mxu0
        %v2236 = vadd.f32 %v2021, %v2235
        %2237 = vmatprep.mubr.f32.mxu0 0.0
        %2238 = vmatmul.mubr.f32.gmra.mrb[0].mxu0 %v1087
        %v2239 = vpop.f32.mrb[0].mxu0
        %v2240 = vadd.f32 %v2025, %v2239
        %v2241 = vpop.f32.mrb[0].mxu0
        %v2242 = vadd.f32 %v2027, %v2241
        %2243 = vmatprep.mubr.f32.mxu0 0.0
        %2244 = vmatmul.mubr.f32.gmra.mrb[0].mxu0 %v1090
        %v2245 = vpop.f32.mrb[0].mxu0
        %v2246 = vadd.f32 %v2031, %v2245
        %v2247 = vpop.f32.mrb[0].mxu0
        %v2248 = vadd.f32 %v2033, %v2247
        %2249 = vmatprep.mubr.f32.mxu0 0.0
        %2250 = vmatmul.mubr.f32.gmra.mrb[0].mxu0 %v1093
        %v2251 = vpop.f32.mrb[0].mxu0
        %v2252 = vadd.f32 %v2037, %v2251
        %v2253 = vpop.f32.mrb[0].mxu0
        %v2254 = vadd.f32 %v2039, %v2253
        %2255 = vmatprep.mubr.f32.mxu0 0.0
        %2256 = vmatmul.mubr.f32.gmra.mrb[0].mxu0 %v1096
        %v2257 = vpop.f32.mrb[0].mxu0
        %v2258 = vadd.f32 %v2043, %v2257
        %v2259 = vpop.f32.mrb[0].mxu0
        %v2260 = vadd.f32 %v2045, %v2259
        %2261 = vmatprep.mubr.f32.mxu0 0.0
        %2262 = vmatmul.mubr.f32.gmra.mrb[0].mxu0 %v1099
        %v2263 = vpop.f32.mrb[0].mxu0
        %v2264 = vadd.f32 %v2049, %v2263
        %v2265 = vpop.f32.mrb[0].mxu0
        %v2266 = vadd.f32 %v2051, %v2265
        %2267 = vmatprep.mubr.f32.mxu0 0.0
        %2268 = vmatmul.mubr.f32.gmra.mrb[0].mxu0 %v1102
        %v2269 = vpop.f32.mrb[0].mxu0
        %v2270 = vadd.f32 %v2055, %v2269
        %v2271 = vpop.f32.mrb[0].mxu0
        %v2272 = vadd.f32 %v2057, %v2271
        %2273 = vmatprep.mubr.f32.mxu0 0.0
        %2274 = vmatmul.mubr.f32.gmra.mrb[0].mxu0 %v1105
        %v2275 = vpop.f32.mrb[0].mxu0
        %v2276 = vadd.f32 %v2061, %v2275
        %v2277 = vpop.f32.mrb[0].mxu0
        %v2278 = vadd.f32 %v2063, %v2277
        %2279 = vmatprep.mubr.f32.mxu0 0.0
        %2280 = vmatmul.mubr.f32.gmra.mrb[0].mxu0 %v1108
        %v2281 = vpop.f32.mrb[0].mxu0
        %v2282 = vadd.f32 %v2067, %v2281
        %v2283 = vpop.f32.mrb[0].mxu0
        %v2284 = vadd.f32 %v2069, %v2283
        %2285 = vmatprep.mubr.f32.mxu0 0.0
        %2286 = vmatmul.mubr.f32.gmra.mrb[0].mxu0 %v1111
        %v2287 = vpop.f32.mrb[0].mxu0
        %v2288 = vadd.f32 %v2073, %v2287
        %v2289 = vpop.f32.mrb[0].mxu0
        %v2290 = vadd.f32 %v2075, %v2289
        %2291 = vdwg.mxu0
        %2292 = vmatprep.subr.mxu0 %v1117
        %2293 = vmatpush1.msra.mxu0 %v1116
        %2294 = vmatprep.subr.mxu0 %v1123
        %2295 = vmatpush1.msra.mxu0 %v1122
        %2296 = vmatprep.subr.mxu0 %v1129
        %2297 = vmatpush1.msra.mxu0 %v1128
        %2298 = vmatprep.subr.mxu0 %v1135
        %2299 = vmatpush1.msra.mxu0 %v1134
        %2300 = vmatprep.subr.mxu0 %v1141
        %2301 = vmatpush1.msra.mxu0 %v1140
        %2302 = vmatprep.subr.mxu0 %v1147
        %2303 = vmatpush1.msra.mxu0 %v1146
        %2304 = vmatprep.subr.mxu0 %v1153
        %2305 = vmatpush1.msra.mxu0 %v1152
        %2306 = vmatprep.subr.mxu0 %v1159
        %2307 = vmatpush1.msra.mxu0 %v1158
        %2308 = vmatprep.subr.mxu0 %v1165
        %2309 = vmatpush1.msra.mxu0 %v1164
        %2310 = vmatprep.subr.mxu0 %v1171
        %2311 = vmatpush1.msra.mxu0 %v1170
        %2312 = vmatprep.subr.mxu0 %v1177
        %2313 = vmatpush1.msra.mxu0 %v1176
        %2314 = vmatprep.subr.mxu0 %v1183
        %2315 = vmatpush1.msra.mxu0 %v1182
        %2316 = vmatprep.subr.mxu0 %v1189
        %2317 = vmatpush1.msra.mxu0 %v1188
        %2318 = vmatprep.subr.mxu0 %v1195
        %2319 = vmatpush1.msra.mxu0 %v1194
        %2320 = vmatprep.subr.mxu0 %v1201
        %2321 = vmatpush1.msra.mxu0 %v1200
        %2322 = vmatprep.subr.mxu0 %v1207
        %2323 = vmatpush1.msra.mxu0 %v1206
        %2324 = vmatprep.subr.mxu0 %v1213
        %2325 = vmatpush1.msra.mxu0 %v1212
        %2326 = vmatprep.subr.mxu0 %v1219
        %2327 = vmatpush1.msra.mxu0 %v1218
        %2328 = vmatprep.subr.mxu0 %v1225
        %2329 = vmatpush1.msra.mxu0 %v1224
        %2330 = vmatprep.subr.mxu0 %v1231
        %2331 = vmatpush1.msra.mxu0 %v1230
        %2332 = vmatprep.subr.mxu0 %v1237
        %2333 = vmatpush1.msra.mxu0 %v1236
        %2334 = vmatprep.subr.mxu0 %v1243
        %2335 = vmatpush1.msra.mxu0 %v1242
        %2336 = vmatprep.subr.mxu0 %v1249
        %2337 = vmatpush1.msra.mxu0 %v1248
        %2338 = vmatprep.subr.mxu0 %v1255
        %2339 = vmatpush1.msra.mxu0 %v1254
        %2340 = vmatprep.subr.mxu0 %v1261
        %2341 = vmatpush1.msra.mxu0 %v1260
        %2342 = vmatprep.subr.mxu0 %v1267
        %2343 = vmatpush1.msra.mxu0 %v1266
        %2344 = vmatprep.subr.mxu0 %v1273
        %2345 = vmatpush1.msra.mxu0 %v1272
        %2346 = vmatprep.subr.mxu0 %v1279
        %2347 = vmatpush1.msra.mxu0 %v1278
        %2348 = vmatprep.subr.mxu0 %v1285
        %2349 = vmatpush1.msra.mxu0 %v1284
        %2350 = vmatprep.subr.mxu0 %v1291
        %2351 = vmatpush1.msra.mxu0 %v1290
        %2352 = vmatprep.subr.mxu0 %v1297
        %2353 = vmatpush1.msra.mxu0 %v1296
        %2354 = vmatprep.subr.mxu0 %v1303
        %2355 = vmatpush1.msra.mxu0 %v1302
        %2356 = vmatprep.mubr.f32.mxu0 %v1038
        %2357 = vmatmul.mubr.f32.gmra.mrb[0].mxu0 %v1037
        %v2358 = vpop.f32.mrb[0].mxu0
        %v2359 = vadd.f32 %v1421, %v2358
        %v2360 = vpop.f32.mrb[0].mxu0
        %v2361 = vadd.f32 %v1425, %v2360
        %2362 = vmatprep.mubr.f32.mxu0 %v1041
        %2363 = vmatmul.mubr.f32.gmra.mrb[0].mxu0 %v1040
        %v2364 = vpop.f32.mrb[0].mxu0
        %v2365 = vadd.f32 %v1421, %v2364
        %v2366 = vpop.f32.mrb[0].mxu0
        %v2367 = vadd.f32 %v1425, %v2366
        %2368 = vmatprep.mubr.f32.mxu0 %v1044
        %2369 = vmatmul.mubr.f32.gmra.mrb[0].mxu0 %v1043
        %v2370 = vpop.f32.mrb[0].mxu0
        %v2371 = vadd.f32 %v1421, %v2370
        %v2372 = vpop.f32.mrb[0].mxu0
        %v2373 = vadd.f32 %v1425, %v2372
        %2374 = vmatprep.mubr.f32.mxu0 %v1047
        %2375 = vmatmul.mubr.f32.gmra.mrb[0].mxu0 %v1046
        %v2376 = vpop.f32.mrb[0].mxu0
        %v2377 = vadd.f32 %v1421, %v2376
        %v2378 = vpop.f32.mrb[0].mxu0
        %v2379 = vadd.f32 %v1425, %v2378
        %2380 = vmatprep.mubr.f32.mxu0 %v1050
        %2381 = vmatmul.mubr.f32.gmra.mrb[0].mxu0 %v1049
        %v2382 = vpop.f32.mrb[0].mxu0
        %v2383 = vadd.f32 %v1421, %v2382
        %v2384 = vpop.f32.mrb[0].mxu0
        %v2385 = vadd.f32 %v1425, %v2384
        %2386 = vmatprep.mubr.f32.mxu0 %v1053
        %2387 = vmatmul.mubr.f32.gmra.mrb[0].mxu0 %v1052
        %v2388 = vpop.f32.mrb[0].mxu0
        %v2389 = vadd.f32 %v1421, %v2388
        %v2390 = vpop.f32.mrb[0].mxu0
        %v2391 = vadd.f32 %v1425, %v2390
        %2392 = vmatprep.mubr.f32.mxu0 %v1056
        %2393 = vmatmul.mubr.f32.gmra.mrb[0].mxu0 %v1055
        %v2394 = vpop.f32.mrb[0].mxu0
        %v2395 = vadd.f32 %v1421, %v2394
        %v2396 = vpop.f32.mrb[0].mxu0
        %v2397 = vadd.f32 %v1425, %v2396
        %2398 = vmatprep.mubr.f32.mxu0 %v1059
        %2399 = vmatmul.mubr.f32.gmra.mrb[0].mxu0 %v1058
        %v2400 = vpop.f32.mrb[0].mxu0
        %v2401 = vadd.f32 %v1421, %v2400
        %v2402 = vpop.f32.mrb[0].mxu0
        %v2403 = vadd.f32 %v1425, %v2402
        %2404 = vmatprep.mubr.f32.mxu0 %v1062
        %2405 = vmatmul.mubr.f32.gmra.mrb[0].mxu0 %v1061
        %v2406 = vpop.f32.mrb[0].mxu0
        %v2407 = vadd.f32 %v1421, %v2406
        %v2408 = vpop.f32.mrb[0].mxu0
        %v2409 = vadd.f32 %v1425, %v2408
        %2410 = vmatprep.mubr.f32.mxu0 %v1065
        %2411 = vmatmul.mubr.f32.gmra.mrb[0].mxu0 %v1064
        %v2412 = vpop.f32.mrb[0].mxu0
        %v2413 = vadd.f32 %v1421, %v2412
        %v2414 = vpop.f32.mrb[0].mxu0
        %v2415 = vadd.f32 %v1425, %v2414
        %2416 = vmatprep.mubr.f32.mxu0 %v1068
        %2417 = vmatmul.mubr.f32.gmra.mrb[0].mxu0 %v1067
        %v2418 = vpop.f32.mrb[0].mxu0
        %v2419 = vadd.f32 %v1421, %v2418
        %v2420 = vpop.f32.mrb[0].mxu0
        %v2421 = vadd.f32 %v1425, %v2420
        %2422 = vmatprep.mubr.f32.mxu0 %v1071
        %2423 = vmatmul.mubr.f32.gmra.mrb[0].mxu0 %v1070
        %v2424 = vpop.f32.mrb[0].mxu0
        %v2425 = vadd.f32 %v1421, %v2424
        %v2426 = vpop.f32.mrb[0].mxu0
        %v2427 = vadd.f32 %v1425, %v2426
        %2428 = vmatprep.mubr.f32.mxu0 %v1074
        %2429 = vmatmul.mubr.f32.gmra.mrb[0].mxu0 %v1073
        %v2430 = vpop.f32.mrb[0].mxu0
        %v2431 = vadd.f32 %v1421, %v2430
        %v2432 = vpop.f32.mrb[0].mxu0
        %v2433 = vadd.f32 %v1425, %v2432
        %2434 = vmatprep.mubr.f32.mxu0 %v1077
        %2435 = vmatmul.mubr.f32.gmra.mrb[0].mxu0 %v1076
        %v2436 = vpop.f32.mrb[0].mxu0
        %v2437 = vadd.f32 %v1421, %v2436
        %v2438 = vpop.f32.mrb[0].mxu0
        %v2439 = vadd.f32 %v1425, %v2438
        %2440 = vmatprep.mubr.f32.mxu0 %v1080
        %2441 = vmatmul.mubr.f32.gmra.mrb[0].mxu0 %v1079
        %v2442 = vpop.f32.mrb[0].mxu0
        %v2443 = vadd.f32 %v1421, %v2442
        %v2444 = vpop.f32.mrb[0].mxu0
        %v2445 = vadd.f32 %v1425, %v2444
        %2446 = vmatprep.mubr.f32.mxu0 %v1083
        %2447 = vmatmul.mubr.f32.gmra.mrb[0].mxu0 %v1082
        %v2448 = vpop.f32.mrb[0].mxu0
        %v2449 = vadd.f32 %v1421, %v2448
        %v2450 = vpop.f32.mrb[0].mxu0
        %v2451 = vadd.f32 %v1425, %v2450
        %2452 = vmatprep.mubr.f32.mxu0 %v1086
        %2453 = vmatmul.mubr.f32.gmra.mrb[0].mxu0 %v1085
        %v2454 = vpop.f32.mrb[0].mxu0
        %v2455 = vadd.f32 %v1421, %v2454
        %v2456 = vpop.f32.mrb[0].mxu0
        %v2457 = vadd.f32 %v1425, %v2456
        %2458 = vmatprep.mubr.f32.mxu0 %v1089
        %2459 = vmatmul.mubr.f32.gmra.mrb[0].mxu0 %v1088
        %v2460 = vpop.f32.mrb[0].mxu0
        %v2461 = vadd.f32 %v1421, %v2460
        %v2462 = vpop.f32.mrb[0].mxu0
        %v2463 = vadd.f32 %v1425, %v2462
        %2464 = vmatprep.mubr.f32.mxu0 %v1092
        %2465 = vmatmul.mubr.f32.gmra.mrb[0].mxu0 %v1091
        %v2466 = vpop.f32.mrb[0].mxu0
        %v2467 = vadd.f32 %v1421, %v2466
        %v2468 = vpop.f32.mrb[0].mxu0
        %v2469 = vadd.f32 %v1425, %v2468
        %2470 = vmatprep.mubr.f32.mxu0 %v1095
        %2471 = vmatmul.mubr.f32.gmra.mrb[0].mxu0 %v1094
        %v2472 = vpop.f32.mrb[0].mxu0
        %v2473 = vadd.f32 %v1421, %v2472
        %v2474 = vpop.f32.mrb[0].mxu0
        %v2475 = vadd.f32 %v1425, %v2474
        %2476 = vmatprep.mubr.f32.mxu0 %v1098
        %2477 = vmatmul.mubr.f32.gmra.mrb[0].mxu0 %v1097
        %v2478 = vpop.f32.mrb[0].mxu0
        %v2479 = vadd.f32 %v1421, %v2478
        %v2480 = vpop.f32.mrb[0].mxu0
        %v2481 = vadd.f32 %v1425, %v2480
        %2482 = vmatprep.mubr.f32.mxu0 %v1101
        %2483 = vmatmul.mubr.f32.gmra.mrb[0].mxu0 %v1100
        %v2484 = vpop.f32.mrb[0].mxu0
        %v2485 = vadd.f32 %v1421, %v2484
        %v2486 = vpop.f32.mrb[0].mxu0
        %v2487 = vadd.f32 %v1425, %v2486
        %2488 = vmatprep.mubr.f32.mxu0 %v1104
        %2489 = vmatmul.mubr.f32.gmra.mrb[0].mxu0 %v1103
        %v2490 = vpop.f32.mrb[0].mxu0
        %v2491 = vadd.f32 %v1421, %v2490
        %v2492 = vpop.f32.mrb[0].mxu0
        %v2493 = vadd.f32 %v1425, %v2492
        %2494 = vmatprep.mubr.f32.mxu0 %v1107
        %2495 = vmatmul.mubr.f32.gmra.mrb[0].mxu0 %v1106
        %v2496 = vpop.f32.mrb[0].mxu0
        %v2497 = vadd.f32 %v1421, %v2496
        %v2498 = vpop.f32.mrb[0].mxu0
        %v2499 = vadd.f32 %v1425, %v2498
        %2500 = vmatprep.mubr.f32.mxu0 %v1110
        %2501 = vmatmul.mubr.f32.gmra.mrb[0].mxu0 %v1109
        %v2502 = vpop.f32.mrb[0].mxu0
        %v2503 = vadd.f32 %v1421, %v2502
        %v2504 = vpop.f32.mrb[0].mxu0
        %v2505 = vadd.f32 %v1425, %v2504
        %2506 = vdwg.mxu0
        %2507 = vmatprep.subr.mxu0 %v1309
        %2508 = vmatpush1.msra.mxu0 %v1308
        %2509 = vmatprep.subr.mxu0 %v1315
        %2510 = vmatpush1.msra.mxu0 %v1314
        %2511 = vmatprep.subr.mxu0 %v1321
        %2512 = vmatpush1.msra.mxu0 %v1320
        %2513 = vmatprep.subr.mxu0 %v1327
        %2514 = vmatpush1.msra.mxu0 %v1326
        %2515 = vmatprep.subr.mxu0 %v1333
        %2516 = vmatpush1.msra.mxu0 %v1332
        %2517 = vmatprep.subr.mxu0 %v1339
        %2518 = vmatpush1.msra.mxu0 %v1338
        %2519 = vmatprep.subr.mxu0 %v1345
        %2520 = vmatpush1.msra.mxu0 %v1344
        %2521 = vmatprep.subr.mxu0 %v1351
        %2522 = vmatpush1.msra.mxu0 %v1350
        %2523 = vmatprep.subr.mxu0 %v1357
        %2524 = vmatpush1.msra.mxu0 %v1356
        %2525 = vmatprep.subr.mxu0 %v1363
        %2526 = vmatpush1.msra.mxu0 %v1362
        %2527 = vmatprep.subr.mxu0 %v1369
        %2528 = vmatpush1.msra.mxu0 %v1368
        %2529 = vmatprep.subr.mxu0 %v1375
        %2530 = vmatpush1.msra.mxu0 %v1374
        %2531 = vmatprep.subr.mxu0 %v1381
        %2532 = vmatpush1.msra.mxu0 %v1380
        %2533 = vmatprep.subr.mxu0 %v1387
        %2534 = vmatpush1.msra.mxu0 %v1386
        %2535 = vmatprep.subr.mxu0 %v1393
        %2536 = vmatpush1.msra.mxu0 %v1392
        %2537 = vmatprep.subr.mxu0 %v1399
        %2538 = vmatpush1.msra.mxu0 %v1398
        %2539 = vmatprep.subr.mxu0 0.0
        %2540 = vmatpush1.msra.mxu0 0.0
        %2541 = vmatprep.subr.mxu0 0.0
        %2542 = vmatpush1.msra.mxu0 0.0
        %2543 = vmatprep.subr.mxu0 0.0
        %2544 = vmatpush1.msra.mxu0 0.0
        %2545 = vmatprep.subr.mxu0 0.0
        %2546 = vmatpush1.msra.mxu0 0.0
        %2547 = vmatprep.subr.mxu0 0.0
        %2548 = vmatpush1.msra.mxu0 0.0
        %2549 = vmatprep.subr.mxu0 0.0
        %2550 = vmatpush1.msra.mxu0 0.0
        %2551 = vmatprep.subr.mxu0 0.0
        %2552 = vmatpush1.msra.mxu0 0.0
        %2553 = vmatprep.subr.mxu0 0.0
        %2554 = vmatpush1.msra.mxu0 0.0
        %2555 = vmatprep.subr.mxu0 0.0
        %2556 = vmatpush1.msra.mxu0 0.0
        %2557 = vmatprep.subr.mxu0 0.0
        %2558 = vmatpush1.msra.mxu0 0.0
        %2559 = vmatprep.subr.mxu0 0.0
        %2560 = vmatpush1.msra.mxu0 0.0
        %2561 = vmatprep.subr.mxu0 0.0
        %2562 = vmatpush1.msra.mxu0 0.0
        %2563 = vmatprep.subr.mxu0 0.0
        %2564 = vmatpush1.msra.mxu0 0.0
        %2565 = vmatprep.subr.mxu0 0.0
        %2566 = vmatpush1.msra.mxu0 0.0
        %2567 = vmatprep.subr.mxu0 0.0
        %2568 = vmatpush1.msra.mxu0 0.0
        %2569 = vmatprep.subr.mxu0 0.0
        %2570 = vmatpush1.msra.mxu0 0.0
        %2571 = vmatprep.mubr.f32.mxu0 0.0
        %2572 = vmatmul.mubr.f32.gmra.mrb[0].mxu0 %v1039
        %v2573 = vpop.f32.mrb[0].mxu0
        %v2574 = vadd.f32 %v2359, %v2573
        %v2575 = vpop.f32.mrb[0].mxu0
        %v2576 = vadd.f32 %v2361, %v2575
        %2577 = vmatprep.mubr.f32.mxu0 0.0
        %2578 = vmatmul.mubr.f32.gmra.mrb[0].mxu0 %v1042
        %v2579 = vpop.f32.mrb[0].mxu0
        %v2580 = vadd.f32 %v2365, %v2579
        %v2581 = vpop.f32.mrb[0].mxu0
        %v2582 = vadd.f32 %v2367, %v2581
        %2583 = vmatprep.mubr.f32.mxu0 0.0
        %2584 = vmatmul.mubr.f32.gmra.mrb[0].mxu0 %v1045
        %v2585 = vpop.f32.mrb[0].mxu0
        %v2586 = vadd.f32 %v2371, %v2585
        %v2587 = vpop.f32.mrb[0].mxu0
        %v2588 = vadd.f32 %v2373, %v2587
        %2589 = vmatprep.mubr.f32.mxu0 0.0
        %2590 = vmatmul.mubr.f32.gmra.mrb[0].mxu0 %v1048
        %v2591 = vpop.f32.mrb[0].mxu0
        %v2592 = vadd.f32 %v2377, %v2591
        %v2593 = vpop.f32.mrb[0].mxu0
        %v2594 = vadd.f32 %v2379, %v2593
        %2595 = vmatprep.mubr.f32.mxu0 0.0
        %2596 = vmatmul.mubr.f32.gmra.mrb[0].mxu0 %v1051
        %v2597 = vpop.f32.mrb[0].mxu0
        %v2598 = vadd.f32 %v2383, %v2597
        %v2599 = vpop.f32.mrb[0].mxu0
        %v2600 = vadd.f32 %v2385, %v2599
        %2601 = vmatprep.mubr.f32.mxu0 0.0
        %2602 = vmatmul.mubr.f32.gmra.mrb[0].mxu0 %v1054
        %v2603 = vpop.f32.mrb[0].mxu0
        %v2604 = vadd.f32 %v2389, %v2603
        %v2605 = vpop.f32.mrb[0].mxu0
        %v2606 = vadd.f32 %v2391, %v2605
        %2607 = vmatprep.mubr.f32.mxu0 0.0
        %2608 = vmatmul.mubr.f32.gmra.mrb[0].mxu0 %v1057
        %v2609 = vpop.f32.mrb[0].mxu0
        %v2610 = vadd.f32 %v2395, %v2609
        %v2611 = vpop.f32.mrb[0].mxu0
        %v2612 = vadd.f32 %v2397, %v2611
        %2613 = vmatprep.mubr.f32.mxu0 0.0
        %2614 = vmatmul.mubr.f32.gmra.mrb[0].mxu0 %v1060
        %v2615 = vpop.f32.mrb[0].mxu0
        %v2616 = vadd.f32 %v2401, %v2615
        %v2617 = vpop.f32.mrb[0].mxu0
        %v2618 = vadd.f32 %v2403, %v2617
        %2619 = vmatprep.mubr.f32.mxu0 0.0
        %2620 = vmatmul.mubr.f32.gmra.mrb[0].mxu0 %v1063
        %v2621 = vpop.f32.mrb[0].mxu0
        %v2622 = vadd.f32 %v2407, %v2621
        %v2623 = vpop.f32.mrb[0].mxu0
        %v2624 = vadd.f32 %v2409, %v2623
        %2625 = vmatprep.mubr.f32.mxu0 0.0
        %2626 = vmatmul.mubr.f32.gmra.mrb[0].mxu0 %v1066
        %v2627 = vpop.f32.mrb[0].mxu0
        %v2628 = vadd.f32 %v2413, %v2627
        %v2629 = vpop.f32.mrb[0].mxu0
        %v2630 = vadd.f32 %v2415, %v2629
        %2631 = vmatprep.mubr.f32.mxu0 0.0
        %2632 = vmatmul.mubr.f32.gmra.mrb[0].mxu0 %v1069
        %v2633 = vpop.f32.mrb[0].mxu0
        %v2634 = vadd.f32 %v2419, %v2633
        %v2635 = vpop.f32.mrb[0].mxu0
        %v2636 = vadd.f32 %v2421, %v2635
        %2637 = vmatprep.mubr.f32.mxu0 0.0
        %2638 = vmatmul.mubr.f32.gmra.mrb[0].mxu0 %v1072
        %v2639 = vpop.f32.mrb[0].mxu0
        %v2640 = vadd.f32 %v2425, %v2639
        %v2641 = vpop.f32.mrb[0].mxu0
        %v2642 = vadd.f32 %v2427, %v2641
        %2643 = vmatprep.mubr.f32.mxu0 0.0
        %2644 = vmatmul.mubr.f32.gmra.mrb[0].mxu0 %v1075
        %v2645 = vpop.f32.mrb[0].mxu0
        %v2646 = vadd.f32 %v2431, %v2645
        %v2647 = vpop.f32.mrb[0].mxu0
        %v2648 = vadd.f32 %v2433, %v2647
        %2649 = vmatprep.mubr.f32.mxu0 0.0
        %2650 = vmatmul.mubr.f32.gmra.mrb[0].mxu0 %v1078
        %v2651 = vpop.f32.mrb[0].mxu0
        %v2652 = vadd.f32 %v2437, %v2651
        %v2653 = vpop.f32.mrb[0].mxu0
        %v2654 = vadd.f32 %v2439, %v2653
        %2655 = vmatprep.mubr.f32.mxu0 0.0
        %2656 = vmatmul.mubr.f32.gmra.mrb[0].mxu0 %v1081
        %v2657 = vpop.f32.mrb[0].mxu0
        %v2658 = vadd.f32 %v2443, %v2657
        %v2659 = vpop.f32.mrb[0].mxu0
        %v2660 = vadd.f32 %v2445, %v2659
        %2661 = vmatprep.mubr.f32.mxu0 0.0
        %2662 = vmatmul.mubr.f32.gmra.mrb[0].mxu0 %v1084
        %v2663 = vpop.f32.mrb[0].mxu0
        %v2664 = vadd.f32 %v2449, %v2663
        %v2665 = vpop.f32.mrb[0].mxu0
        %v2666 = vadd.f32 %v2451, %v2665
        %2667 = vmatprep.mubr.f32.mxu0 0.0
        %2668 = vmatmul.mubr.f32.gmra.mrb[0].mxu0 %v1087
        %v2669 = vpop.f32.mrb[0].mxu0
        %v2670 = vadd.f32 %v2455, %v2669
        %v2671 = vpop.f32.mrb[0].mxu0
        %v2672 = vadd.f32 %v2457, %v2671
        %2673 = vmatprep.mubr.f32.mxu0 0.0
        %2674 = vmatmul.mubr.f32.gmra.mrb[0].mxu0 %v1090
        %v2675 = vpop.f32.mrb[0].mxu0
        %v2676 = vadd.f32 %v2461, %v2675
        %v2677 = vpop.f32.mrb[0].mxu0
        %v2678 = vadd.f32 %v2463, %v2677
        %2679 = vmatprep.mubr.f32.mxu0 0.0
        %2680 = vmatmul.mubr.f32.gmra.mrb[0].mxu0 %v1093
        %v2681 = vpop.f32.mrb[0].mxu0
        %v2682 = vadd.f32 %v2467, %v2681
        %v2683 = vpop.f32.mrb[0].mxu0
        %v2684 = vadd.f32 %v2469, %v2683
        %2685 = vmatprep.mubr.f32.mxu0 0.0
        %2686 = vmatmul.mubr.f32.gmra.mrb[0].mxu0 %v1096
        %v2687 = vpop.f32.mrb[0].mxu0
        %v2688 = vadd.f32 %v2473, %v2687
        %v2689 = vpop.f32.mrb[0].mxu0
        %v2690 = vadd.f32 %v2475, %v2689
        %2691 = vmatprep.mubr.f32.mxu0 0.0
        %2692 = vmatmul.mubr.f32.gmra.mrb[0].mxu0 %v1099
        %v2693 = vpop.f32.mrb[0].mxu0
        %v2694 = vadd.f32 %v2479, %v2693
        %v2695 = vpop.f32.mrb[0].mxu0
        %v2696 = vadd.f32 %v2481, %v2695
        %2697 = vmatprep.mubr.f32.mxu0 0.0
        %2698 = vmatmul.mubr.f32.gmra.mrb[0].mxu0 %v1102
        %v2699 = vpop.f32.mrb[0].mxu0
        %v2700 = vadd.f32 %v2485, %v2699
        %v2701 = vpop.f32.mrb[0].mxu0
        %v2702 = vadd.f32 %v2487, %v2701
        %2703 = vmatprep.mubr.f32.mxu0 0.0
        %2704 = vmatmul.mubr.f32.gmra.mrb[0].mxu0 %v1105
        %v2705 = vpop.f32.mrb[0].mxu0
        %v2706 = vadd.f32 %v2491, %v2705
        %v2707 = vpop.f32.mrb[0].mxu0
        %v2708 = vadd.f32 %v2493, %v2707
        %2709 = vmatprep.mubr.f32.mxu0 0.0
        %2710 = vmatmul.mubr.f32.gmra.mrb[0].mxu0 %v1108
        %v2711 = vpop.f32.mrb[0].mxu0
        %v2712 = vadd.f32 %v2497, %v2711
        %v2713 = vpop.f32.mrb[0].mxu0
        %v2714 = vadd.f32 %v2499, %v2713
        %2715 = vmatprep.mubr.f32.mxu0 0.0
        %2716 = vmatmul.mubr.f32.gmra.mrb[0].mxu0 %v1111
        %v2717 = vpop.f32.mrb[0].mxu0
        %v2718 = vadd.f32 %v2503, %v2717
        %v2719 = vpop.f32.mrb[0].mxu0
        %v2720 = vadd.f32 %v2505, %v2719
        %2721 = vdwg.mxu0
        %v2722 = vmul.f32 %v1714, 0.5
        %v2723 = vmul.f32 %v1716, 0.5
        %v2724 = vmul.f32 %v2144, 0.5
        %v2725 = vmul.f32 %v2146, 0.5
        %v2726 = vmul.f32 %v2574, 0.5
        %v2727 = vmul.f32 %v2576, 0.5
        %v2728 = vmul.f32 %v1720, 0.5
        %v2729 = vmul.f32 %v1722, 0.5
        %v2730 = vmul.f32 %v2150, 0.5
        %v2731 = vmul.f32 %v2152, 0.5
        %v2732 = vmul.f32 %v2580, 0.5
        %v2733 = vmul.f32 %v2582, 0.5
        %v2734 = vmul.f32 %v1726, 0.5
        %v2735 = vmul.f32 %v1728, 0.5
        %v2736 = vmul.f32 %v2156, 0.5
        %v2737 = vmul.f32 %v2158, 0.5
        %v2738 = vmul.f32 %v2586, 0.5
        %v2739 = vmul.f32 %v2588, 0.5
        %v2740 = vmul.f32 %v1732, 0.5
        %v2741 = vmul.f32 %v1734, 0.5
        %v2742 = vmul.f32 %v2162, 0.5
        %v2743 = vmul.f32 %v2164, 0.5
        %v2744 = vmul.f32 %v2592, 0.5
        %v2745 = vmul.f32 %v2594, 0.5
        %v2746 = vmul.f32 %v1738, 0.5
        %v2747 = vmul.f32 %v1740, 0.5
        %v2748 = vmul.f32 %v2168, 0.5
        %v2749 = vmul.f32 %v2170, 0.5
        %v2750 = vmul.f32 %v2598, 0.5
        %v2751 = vmul.f32 %v2600, 0.5
        %v2752 = vmul.f32 %v1744, 0.5
        %v2753 = vmul.f32 %v1746, 0.5
        %v2754 = vmul.f32 %v2174, 0.5
        %v2755 = vmul.f32 %v2176, 0.5
        %v2756 = vmul.f32 %v2604, 0.5
        %v2757 = vmul.f32 %v2606, 0.5
        %v2758 = vmul.f32 %v1750, 0.5
        %v2759 = vmul.f32 %v1752, 0.5
        %v2760 = vmul.f32 %v2180, 0.5
        %v2761 = vmul.f32 %v2182, 0.5
        %v2762 = vmul.f32 %v2610, 0.5
        %v2763 = vmul.f32 %v2612, 0.5
        %v2764 = vmul.f32 %v1756, 0.5
        %v2765 = vmul.f32 %v1758, 0.5
        %v2766 = vmul.f32 %v2186, 0.5
        %v2767 = vmul.f32 %v2188, 0.5
        %v2768 = vmul.f32 %v2616, 0.5
        %v2769 = vmul.f32 %v2618, 0.5
        %v2770 = vmul.f32 %v1762, 0.5
        %v2771 = vmul.f32 %v1764, 0.5
        %v2772 = vmul.f32 %v2192, 0.5
        %v2773 = vmul.f32 %v2194, 0.5
        %v2774 = vmul.f32 %v2622, 0.5
        %v2775 = vmul.f32 %v2624, 0.5
        %v2776 = vmul.f32 %v1768, 0.5
        %v2777 = vmul.f32 %v1770, 0.5
        %v2778 = vmul.f32 %v2198, 0.5
        %v2779 = vmul.f32 %v2200, 0.5
        %v2780 = vmul.f32 %v2628, 0.5
        %v2781 = vmul.f32 %v2630, 0.5
        %v2782 = vmul.f32 %v1774, 0.5
        %v2783 = vmul.f32 %v1776, 0.5
        %v2784 = vmul.f32 %v2204, 0.5
        %v2785 = vmul.f32 %v2206, 0.5
        %v2786 = vmul.f32 %v2634, 0.5
        %v2787 = vmul.f32 %v2636, 0.5
        %v2788 = vmul.f32 %v1780, 0.5
        %v2789 = vmul.f32 %v1782, 0.5
        %v2790 = vmul.f32 %v2210, 0.5
        %v2791 = vmul.f32 %v2212, 0.5
        %v2792 = vmul.f32 %v2640, 0.5
        %v2793 = vmul.f32 %v2642, 0.5
        %v2794 = vmul.f32 %v1786, 0.5
        %v2795 = vmul.f32 %v1788, 0.5
        %v2796 = vmul.f32 %v2216, 0.5
        %v2797 = vmul.f32 %v2218, 0.5
        %v2798 = vmul.f32 %v2646, 0.5
        %v2799 = vmul.f32 %v2648, 0.5
        %v2800 = vmul.f32 %v1792, 0.5
        %v2801 = vmul.f32 %v1794, 0.5
        %v2802 = vmul.f32 %v2222, 0.5
        %v2803 = vmul.f32 %v2224, 0.5
        %v2804 = vmul.f32 %v2652, 0.5
        %v2805 = vmul.f32 %v2654, 0.5
        %v2806 = vmul.f32 %v1798, 0.5
        %v2807 = vmul.f32 %v1800, 0.5
        %v2808 = vmul.f32 %v2228, 0.5
        %v2809 = vmul.f32 %v2230, 0.5
        %v2810 = vmul.f32 %v2658, 0.5
        %v2811 = vmul.f32 %v2660, 0.5
        %v2812 = vmul.f32 %v1804, 0.5
        %v2813 = vmul.f32 %v1806, 0.5
        %v2814 = vmul.f32 %v2234, 0.5
        %v2815 = vmul.f32 %v2236, 0.5
        %v2816 = vmul.f32 %v2664, 0.5
        %v2817 = vmul.f32 %v2666, 0.5
        %v2818 = vmul.f32 %v1810, 0.5
        %v2819 = vmul.f32 %v1812, 0.5
        %v2820 = vmul.f32 %v2240, 0.5
        %v2821 = vmul.f32 %v2242, 0.5
        %v2822 = vmul.f32 %v2670, 0.5
        %v2823 = vmul.f32 %v2672, 0.5
        %v2824 = vmul.f32 %v1816, 0.5
        %v2825 = vmul.f32 %v1818, 0.5
        %v2826 = vmul.f32 %v2246, 0.5
        %v2827 = vmul.f32 %v2248, 0.5
        %v2828 = vmul.f32 %v2676, 0.5
        %v2829 = vmul.f32 %v2678, 0.5
        %v2830 = vmul.f32 %v1822, 0.5
        %v2831 = vmul.f32 %v1824, 0.5
        %v2832 = vmul.f32 %v2252, 0.5
        %v2833 = vmul.f32 %v2254, 0.5
        %v2834 = vmul.f32 %v2682, 0.5
        %v2835 = vmul.f32 %v2684, 0.5
        %v2836 = vmul.f32 %v1828, 0.5
        %v2837 = vmul.f32 %v1830, 0.5
        %v2838 = vmul.f32 %v2258, 0.5
        %v2839 = vmul.f32 %v2260, 0.5
        %v2840 = vmul.f32 %v2688, 0.5
        %v2841 = vmul.f32 %v2690, 0.5
        %v2842 = vmul.f32 %v1834, 0.5
        %v2843 = vmul.f32 %v1836, 0.5
        %v2844 = vmul.f32 %v2264, 0.5
        %v2845 = vmul.f32 %v2266, 0.5
        %v2846 = vmul.f32 %v2694, 0.5
        %v2847 = vmul.f32 %v2696, 0.5
        %v2848 = vmul.f32 %v1840, 0.5
        %v2849 = vmul.f32 %v1842, 0.5
        %v2850 = vmul.f32 %v2270, 0.5
        %v2851 = vmul.f32 %v2272, 0.5
        %v2852 = vmul.f32 %v2700, 0.5
        %v2853 = vmul.f32 %v2702, 0.5
        %v2854 = vmul.f32 %v1846, 0.5
        %v2855 = vmul.f32 %v1848, 0.5
        %v2856 = vmul.f32 %v2276, 0.5
        %v2857 = vmul.f32 %v2278, 0.5
        %v2858 = vmul.f32 %v2706, 0.5
        %v2859 = vmul.f32 %v2708, 0.5
        %v2860 = vmul.f32 %v1852, 0.5
        %v2861 = vmul.f32 %v1854, 0.5
        %v2862 = vmul.f32 %v2282, 0.5
        %v2863 = vmul.f32 %v2284, 0.5
        %v2864 = vmul.f32 %v2712, 0.5
        %v2865 = vmul.f32 %v2714, 0.5
        %v2866 = vmul.f32 %v1858, 0.5
        %v2867 = vmul.f32 %v1860, 0.5
        %v2868 = vmul.f32 %v2288, 0.5
        %v2869 = vmul.f32 %v2290, 0.5
        %v2870 = vmul.f32 %v2718, 0.5
        %v2871 = vmul.f32 %v2720, 0.5
        %v2872 = vmul.f32 %v1714, 0.70710677
        %v2873 = vmul.f32 %v1716, 0.70710677
        %v2874 = vmul.f32 %v2144, 0.70710677
        %v2875 = vmul.f32 %v2146, 0.70710677
        %v2876 = vmul.f32 %v2574, 0.70710677
        %v2877 = vmul.f32 %v2576, 0.70710677
        %v2878 = vmul.f32 %v1720, 0.70710677
        %v2879 = vmul.f32 %v1722, 0.70710677
        %v2880 = vmul.f32 %v2150, 0.70710677
        %v2881 = vmul.f32 %v2152, 0.70710677
        %v2882 = vmul.f32 %v2580, 0.70710677
        %v2883 = vmul.f32 %v2582, 0.70710677
        %v2884 = vmul.f32 %v1726, 0.70710677
        %v2885 = vmul.f32 %v1728, 0.70710677
        %v2886 = vmul.f32 %v2156, 0.70710677
        %v2887 = vmul.f32 %v2158, 0.70710677
        %v2888 = vmul.f32 %v2586, 0.70710677
        %v2889 = vmul.f32 %v2588, 0.70710677
        %v2890 = vmul.f32 %v1732, 0.70710677
        %v2891 = vmul.f32 %v1734, 0.70710677
        %v2892 = vmul.f32 %v2162, 0.70710677
        %v2893 = vmul.f32 %v2164, 0.70710677
        %v2894 = vmul.f32 %v2592, 0.70710677
        %v2895 = vmul.f32 %v2594, 0.70710677
        %v2896 = vmul.f32 %v1738, 0.70710677
        %v2897 = vmul.f32 %v1740, 0.70710677
        %v2898 = vmul.f32 %v2168, 0.70710677
        %v2899 = vmul.f32 %v2170, 0.70710677
        %v2900 = vmul.f32 %v2598, 0.70710677
        %v2901 = vmul.f32 %v2600, 0.70710677
        %v2902 = vmul.f32 %v1744, 0.70710677
        %v2903 = vmul.f32 %v1746, 0.70710677
        %v2904 = vmul.f32 %v2174, 0.70710677
        %v2905 = vmul.f32 %v2176, 0.70710677
        %v2906 = vmul.f32 %v2604, 0.70710677
        %v2907 = vmul.f32 %v2606, 0.70710677
        %v2908 = vmul.f32 %v1750, 0.70710677
        %v2909 = vmul.f32 %v1752, 0.70710677
        %v2910 = vmul.f32 %v2180, 0.70710677
        %v2911 = vmul.f32 %v2182, 0.70710677
        %v2912 = vmul.f32 %v2610, 0.70710677
        %v2913 = vmul.f32 %v2612, 0.70710677
        %v2914 = vmul.f32 %v1756, 0.70710677
        %v2915 = vmul.f32 %v1758, 0.70710677
        %v2916 = vmul.f32 %v2186, 0.70710677
        %v2917 = vmul.f32 %v2188, 0.70710677
        %v2918 = vmul.f32 %v2616, 0.70710677
        %v2919 = vmul.f32 %v2618, 0.70710677
        %v2920 = vmul.f32 %v1762, 0.70710677
        %v2921 = vmul.f32 %v1764, 0.70710677
        %v2922 = vmul.f32 %v2192, 0.70710677
        %v2923 = vmul.f32 %v2194, 0.70710677
        %v2924 = vmul.f32 %v2622, 0.70710677
        %v2925 = vmul.f32 %v2624, 0.70710677
        %v2926 = vmul.f32 %v1768, 0.70710677
        %v2927 = vmul.f32 %v1770, 0.70710677
        %v2928 = vmul.f32 %v2198, 0.70710677
        %v2929 = vmul.f32 %v2200, 0.70710677
        %v2930 = vmul.f32 %v2628, 0.70710677
        %v2931 = vmul.f32 %v2630, 0.70710677
        %v2932 = vmul.f32 %v1774, 0.70710677
        %v2933 = vmul.f32 %v1776, 0.70710677
        %v2934 = vmul.f32 %v2204, 0.70710677
        %v2935 = vmul.f32 %v2206, 0.70710677
        %v2936 = vmul.f32 %v2634, 0.70710677
        %v2937 = vmul.f32 %v2636, 0.70710677
        %v2938 = vmul.f32 %v1780, 0.70710677
        %v2939 = vmul.f32 %v1782, 0.70710677
        %v2940 = vmul.f32 %v2210, 0.70710677
        %v2941 = vmul.f32 %v2212, 0.70710677
        %v2942 = vmul.f32 %v2640, 0.70710677
        %v2943 = vmul.f32 %v2642, 0.70710677
        %v2944 = vmul.f32 %v1786, 0.70710677
        %v2945 = vmul.f32 %v1788, 0.70710677
        %v2946 = vmul.f32 %v2216, 0.70710677
        %v2947 = vmul.f32 %v2218, 0.70710677
        %v2948 = vmul.f32 %v2646, 0.70710677
        %v2949 = vmul.f32 %v2648, 0.70710677
        %v2950 = vmul.f32 %v1792, 0.70710677
        %v2951 = vmul.f32 %v1794, 0.70710677
        %v2952 = vmul.f32 %v2222, 0.70710677
        %v2953 = vmul.f32 %v2224, 0.70710677
        %v2954 = vmul.f32 %v2652, 0.70710677
        %v2955 = vmul.f32 %v2654, 0.70710677
        %v2956 = vmul.f32 %v1798, 0.70710677
        %v2957 = vmul.f32 %v1800, 0.70710677
        %v2958 = vmul.f32 %v2228, 0.70710677
        %v2959 = vmul.f32 %v2230, 0.70710677
        %v2960 = vmul.f32 %v2658, 0.70710677
        %v2961 = vmul.f32 %v2660, 0.70710677
        %v2962 = vmul.f32 %v1804, 0.70710677
        %v2963 = vmul.f32 %v1806, 0.70710677
        %v2964 = vmul.f32 %v2234, 0.70710677
        %v2965 = vmul.f32 %v2236, 0.70710677
        %v2966 = vmul.f32 %v2664, 0.70710677
        %v2967 = vmul.f32 %v2666, 0.70710677
        %v2968 = vmul.f32 %v1810, 0.70710677
        %v2969 = vmul.f32 %v1812, 0.70710677
        %v2970 = vmul.f32 %v2240, 0.70710677
        %v2971 = vmul.f32 %v2242, 0.70710677
        %v2972 = vmul.f32 %v2670, 0.70710677
        %v2973 = vmul.f32 %v2672, 0.70710677
        %v2974 = vmul.f32 %v1816, 0.70710677
        %v2975 = vmul.f32 %v1818, 0.70710677
        %v2976 = vmul.f32 %v2246, 0.70710677
        %v2977 = vmul.f32 %v2248, 0.70710677
        %v2978 = vmul.f32 %v2676, 0.70710677
        %v2979 = vmul.f32 %v2678, 0.70710677
        %v2980 = vmul.f32 %v1822, 0.70710677
        %v2981 = vmul.f32 %v1824, 0.70710677
        %v2982 = vmul.f32 %v2252, 0.70710677
        %v2983 = vmul.f32 %v2254, 0.70710677
        %v2984 = vmul.f32 %v2682, 0.70710677
        %v2985 = vmul.f32 %v2684, 0.70710677
        %v2986 = vmul.f32 %v1828, 0.70710677
        %v2987 = vmul.f32 %v1830, 0.70710677
        %v2988 = vmul.f32 %v2258, 0.70710677
        %v2989 = vmul.f32 %v2260, 0.70710677
        %v2990 = vmul.f32 %v2688, 0.70710677
        %v2991 = vmul.f32 %v2690, 0.70710677
        %v2992 = vmul.f32 %v1834, 0.70710677
        %v2993 = vmul.f32 %v1836, 0.70710677
        %v2994 = vmul.f32 %v2264, 0.70710677
        %v2995 = vmul.f32 %v2266, 0.70710677
        %v2996 = vmul.f32 %v2694, 0.70710677
        %v2997 = vmul.f32 %v2696, 0.70710677
        %v2998 = vmul.f32 %v1840, 0.70710677
        %v2999 = vmul.f32 %v1842, 0.70710677
        %v3000 = vmul.f32 %v2270, 0.70710677
        %v3001 = vmul.f32 %v2272, 0.70710677
        %v3002 = vmul.f32 %v2700, 0.70710677
        %v3003 = vmul.f32 %v2702, 0.70710677
        %v3004 = vmul.f32 %v1846, 0.70710677
        %v3005 = vmul.f32 %v1848, 0.70710677
        %v3006 = vmul.f32 %v2276, 0.70710677
        %v3007 = vmul.f32 %v2278, 0.70710677
        %v3008 = vmul.f32 %v2706, 0.70710677
        %v3009 = vmul.f32 %v2708, 0.70710677
        %v3010 = vmul.f32 %v1852, 0.70710677
        %v3011 = vmul.f32 %v1854, 0.70710677
        %v3012 = vmul.f32 %v2282, 0.70710677
        %v3013 = vmul.f32 %v2284, 0.70710677
        %v3014 = vmul.f32 %v2712, 0.70710677
        %v3015 = vmul.f32 %v2714, 0.70710677
        %v3016 = vmul.f32 %v1858, 0.70710677
        %v3017 = vmul.f32 %v1860, 0.70710677
        %v3018 = vmul.f32 %v2288, 0.70710677
        %v3019 = vmul.f32 %v2290, 0.70710677
        %v3020 = vmul.f32 %v2718, 0.70710677
        %v3021 = vmul.f32 %v2720, 0.70710677
        %v3022 = verf.f32.pop %v2872
        %v3023 = verf.f32.pop %v2873
        %v3024 = verf.f32.pop %v2874
        %v3025 = verf.f32.pop %v2875
        %v3026 = verf.f32.pop %v2876
        %v3027 = verf.f32.pop %v2877
        %v3028 = verf.f32.pop %v2878
        %v3029 = verf.f32.pop %v2879
        %v3030 = verf.f32.pop %v2880
        %v3031 = verf.f32.pop %v2881
        %v3032 = verf.f32.pop %v2882
        %v3033 = verf.f32.pop %v2883
        %v3034 = verf.f32.pop %v2884
        %v3035 = verf.f32.pop %v2885
        %v3036 = verf.f32.pop %v2886
        %v3037 = verf.f32.pop %v2887
        %v3038 = verf.f32.pop %v2888
        %v3039 = verf.f32.pop %v2889
        %v3040 = verf.f32.pop %v2890
        %v3041 = verf.f32.pop %v2891
        %v3042 = verf.f32.pop %v2892
        %v3043 = verf.f32.pop %v2893
        %v3044 = verf.f32.pop %v2894
        %v3045 = verf.f32.pop %v2895
        %v3046 = verf.f32.pop %v2896
        %v3047 = verf.f32.pop %v2897
        %v3048 = verf.f32.pop %v2898
        %v3049 = verf.f32.pop %v2899
        %v3050 = verf.f32.pop %v2900
        %v3051 = verf.f32.pop %v2901
        %v3052 = verf.f32.pop %v2902
        %v3053 = verf.f32.pop %v2903
        %v3054 = verf.f32.pop %v2904
        %v3055 = verf.f32.pop %v2905
        %v3056 = verf.f32.pop %v2906
        %v3057 = verf.f32.pop %v2907
        %v3058 = verf.f32.pop %v2908
        %v3059 = verf.f32.pop %v2909
        %v3060 = verf.f32.pop %v2910
        %v3061 = verf.f32.pop %v2911
        %v3062 = verf.f32.pop %v2912
        %v3063 = verf.f32.pop %v2913
        %v3064 = verf.f32.pop %v2914
        %v3065 = verf.f32.pop %v2915
        %v3066 = verf.f32.pop %v2916
        %v3067 = verf.f32.pop %v2917
        %v3068 = verf.f32.pop %v2918
        %v3069 = verf.f32.pop %v2919
        %v3070 = verf.f32.pop %v2920
        %v3071 = verf.f32.pop %v2921
        %v3072 = verf.f32.pop %v2922
        %v3073 = verf.f32.pop %v2923
        %v3074 = verf.f32.pop %v2924
        %v3075 = verf.f32.pop %v2925
        %v3076 = verf.f32.pop %v2926
        %v3077 = verf.f32.pop %v2927
        %v3078 = verf.f32.pop %v2928
        %v3079 = verf.f32.pop %v2929
        %v3080 = verf.f32.pop %v2930
        %v3081 = verf.f32.pop %v2931
        %v3082 = verf.f32.pop %v2932
        %v3083 = verf.f32.pop %v2933
        %v3084 = verf.f32.pop %v2934
        %v3085 = verf.f32.pop %v2935
        %v3086 = verf.f32.pop %v2936
        %v3087 = verf.f32.pop %v2937
        %v3088 = verf.f32.pop %v2938
        %v3089 = verf.f32.pop %v2939
        %v3090 = verf.f32.pop %v2940
        %v3091 = verf.f32.pop %v2941
        %v3092 = verf.f32.pop %v2942
        %v3093 = verf.f32.pop %v2943
        %v3094 = verf.f32.pop %v2944
        %v3095 = verf.f32.pop %v2945
        %v3096 = verf.f32.pop %v2946
        %v3097 = verf.f32.pop %v2947
        %v3098 = verf.f32.pop %v2948
        %v3099 = verf.f32.pop %v2949
        %v3100 = verf.f32.pop %v2950
        %v3101 = verf.f32.pop %v2951
        %v3102 = verf.f32.pop %v2952
        %v3103 = verf.f32.pop %v2953
        %v3104 = verf.f32.pop %v2954
        %v3105 = verf.f32.pop %v2955
        %v3106 = verf.f32.pop %v2956
        %v3107 = verf.f32.pop %v2957
        %v3108 = verf.f32.pop %v2958
        %v3109 = verf.f32.pop %v2959
        %v3110 = verf.f32.pop %v2960
        %v3111 = verf.f32.pop %v2961
        %v3112 = verf.f32.pop %v2962
        %v3113 = verf.f32.pop %v2963
        %v3114 = verf.f32.pop %v2964
        %v3115 = verf.f32.pop %v2965
        %v3116 = verf.f32.pop %v2966
        %v3117 = verf.f32.pop %v2967
        %v3118 = verf.f32.pop %v2968
        %v3119 = verf.f32.pop %v2969
        %v3120 = verf.f32.pop %v2970
        %v3121 = verf.f32.pop %v2971
        %v3122 = verf.f32.pop %v2972
        %v3123 = verf.f32.pop %v2973
        %v3124 = verf.f32.pop %v2974
        %v3125 = verf.f32.pop %v2975
        %v3126 = verf.f32.pop %v2976
        %v3127 = verf.f32.pop %v2977
        %v3128 = verf.f32.pop %v2978
        %v3129 = verf.f32.pop %v2979
        %v3130 = verf.f32.pop %v2980
        %v3131 = verf.f32.pop %v2981
        %v3132 = verf.f32.pop %v2982
        %v3133 = verf.f32.pop %v2983
        %v3134 = verf.f32.pop %v2984
        %v3135 = verf.f32.pop %v2985
        %v3136 = verf.f32.pop %v2986
        %v3137 = verf.f32.pop %v2987
        %v3138 = verf.f32.pop %v2988
        %v3139 = verf.f32.pop %v2989
        %v3140 = verf.f32.pop %v2990
        %v3141 = verf.f32.pop %v2991
        %v3142 = verf.f32.pop %v2992
        %v3143 = verf.f32.pop %v2993
        %v3144 = verf.f32.pop %v2994
        %v3145 = verf.f32.pop %v2995
        %v3146 = verf.f32.pop %v2996
        %v3147 = verf.f32.pop %v2997
        %v3148 = verf.f32.pop %v2998
        %v3149 = verf.f32.pop %v2999
        %v3150 = verf.f32.pop %v3000
        %v3151 = verf.f32.pop %v3001
        %v3152 = verf.f32.pop %v3002
        %v3153 = verf.f32.pop %v3003
        %v3154 = verf.f32.pop %v3004
        %v3155 = verf.f32.pop %v3005
        %v3156 = verf.f32.pop %v3006
        %v3157 = verf.f32.pop %v3007
        %v3158 = verf.f32.pop %v3008
        %v3159 = verf.f32.pop %v3009
        %v3160 = verf.f32.pop %v3010
        %v3161 = verf.f32.pop %v3011
        %v3162 = verf.f32.pop %v3012
        %v3163 = verf.f32.pop %v3013
        %v3164 = verf.f32.pop %v3014
        %v3165 = verf.f32.pop %v3015
        %v3166 = verf.f32.pop %v3016
        %v3167 = verf.f32.pop %v3017
        %v3168 = verf.f32.pop %v3018
        %v3169 = verf.f32.pop %v3019
        %v3170 = verf.f32.pop %v3020
        %v3171 = verf.f32.pop %v3021
        %v3172 = vadd.f32 %v3022, 1.0
        %v3173 = vadd.f32 %v3023, 1.0
        %v3174 = vadd.f32 %v3024, 1.0
        %v3175 = vadd.f32 %v3025, 1.0
        %v3176 = vadd.f32 %v3026, 1.0
        %v3177 = vadd.f32 %v3027, 1.0
        %v3178 = vadd.f32 %v3028, 1.0
        %v3179 = vadd.f32 %v3029, 1.0
        %v3180 = vadd.f32 %v3030, 1.0
        %v3181 = vadd.f32 %v3031, 1.0
        %v3182 = vadd.f32 %v3032, 1.0
        %v3183 = vadd.f32 %v3033, 1.0
        %v3184 = vadd.f32 %v3034, 1.0
        %v3185 = vadd.f32 %v3035, 1.0
        %v3186 = vadd.f32 %v3036, 1.0
        %v3187 = vadd.f32 %v3037, 1.0
        %v3188 = vadd.f32 %v3038, 1.0
        %v3189 = vadd.f32 %v3039, 1.0
        %v3190 = vadd.f32 %v3040, 1.0
        %v3191 = vadd.f32 %v3041, 1.0
        %v3192 = vadd.f32 %v3042, 1.0
        %v3193 = vadd.f32 %v3043, 1.0
        %v3194 = vadd.f32 %v3044, 1.0
        %v3195 = vadd.f32 %v3045, 1.0
        %v3196 = vadd.f32 %v3046, 1.0
        %v3197 = vadd.f32 %v3047, 1.0
        %v3198 = vadd.f32 %v3048, 1.0
        %v3199 = vadd.f32 %v3049, 1.0
        %v3200 = vadd.f32 %v3050, 1.0
        %v3201 = vadd.f32 %v3051, 1.0
        %v3202 = vadd.f32 %v3052, 1.0
        %v3203 = vadd.f32 %v3053, 1.0
        %v3204 = vadd.f32 %v3054, 1.0
        %v3205 = vadd.f32 %v3055, 1.0
        %v3206 = vadd.f32 %v3056, 1.0
        %v3207 = vadd.f32 %v3057, 1.0
        %v3208 = vadd.f32 %v3058, 1.0
        %v3209 = vadd.f32 %v3059, 1.0
        %v3210 = vadd.f32 %v3060, 1.0
        %v3211 = vadd.f32 %v3061, 1.0
        %v3212 = vadd.f32 %v3062, 1.0
        %v3213 = vadd.f32 %v3063, 1.0
        %v3214 = vadd.f32 %v3064, 1.0
        %v3215 = vadd.f32 %v3065, 1.0
        %v3216 = vadd.f32 %v3066, 1.0
        %v3217 = vadd.f32 %v3067, 1.0
        %v3218 = vadd.f32 %v3068, 1.0
        %v3219 = vadd.f32 %v3069, 1.0
        %v3220 = vadd.f32 %v3070, 1.0
        %v3221 = vadd.f32 %v3071, 1.0
        %v3222 = vadd.f32 %v3072, 1.0
        %v3223 = vadd.f32 %v3073, 1.0
        %v3224 = vadd.f32 %v3074, 1.0
        %v3225 = vadd.f32 %v3075, 1.0
        %v3226 = vadd.f32 %v3076, 1.0
        %v3227 = vadd.f32 %v3077, 1.0
        %v3228 = vadd.f32 %v3078, 1.0
        %v3229 = vadd.f32 %v3079, 1.0
        %v3230 = vadd.f32 %v3080, 1.0
        %v3231 = vadd.f32 %v3081, 1.0
        %v3232 = vadd.f32 %v3082, 1.0
        %v3233 = vadd.f32 %v3083, 1.0
        %v3234 = vadd.f32 %v3084, 1.0
        %v3235 = vadd.f32 %v3085, 1.0
        %v3236 = vadd.f32 %v3086, 1.0
        %v3237 = vadd.f32 %v3087, 1.0
        %v3238 = vadd.f32 %v3088, 1.0
        %v3239 = vadd.f32 %v3089, 1.0
        %v3240 = vadd.f32 %v3090, 1.0
        %v3241 = vadd.f32 %v3091, 1.0
        %v3242 = vadd.f32 %v3092, 1.0
        %v3243 = vadd.f32 %v3093, 1.0
        %v3244 = vadd.f32 %v3094, 1.0
        %v3245 = vadd.f32 %v3095, 1.0
        %v3246 = vadd.f32 %v3096, 1.0
        %v3247 = vadd.f32 %v3097, 1.0
        %v3248 = vadd.f32 %v3098, 1.0
        %v3249 = vadd.f32 %v3099, 1.0
        %v3250 = vadd.f32 %v3100, 1.0
        %v3251 = vadd.f32 %v3101, 1.0
        %v3252 = vadd.f32 %v3102, 1.0
        %v3253 = vadd.f32 %v3103, 1.0
        %v3254 = vadd.f32 %v3104, 1.0
        %v3255 = vadd.f32 %v3105, 1.0
        %v3256 = vadd.f32 %v3106, 1.0
        %v3257 = vadd.f32 %v3107, 1.0
        %v3258 = vadd.f32 %v3108, 1.0
        %v3259 = vadd.f32 %v3109, 1.0
        %v3260 = vadd.f32 %v3110, 1.0
        %v3261 = vadd.f32 %v3111, 1.0
        %v3262 = vadd.f32 %v3112, 1.0
        %v3263 = vadd.f32 %v3113, 1.0
        %v3264 = vadd.f32 %v3114, 1.0
        %v3265 = vadd.f32 %v3115, 1.0
        %v3266 = vadd.f32 %v3116, 1.0
        %v3267 = vadd.f32 %v3117, 1.0
        %v3268 = vadd.f32 %v3118, 1.0
        %v3269 = vadd.f32 %v3119, 1.0
        %v3270 = vadd.f32 %v3120, 1.0
        %v3271 = vadd.f32 %v3121, 1.0
        %v3272 = vadd.f32 %v3122, 1.0
        %v3273 = vadd.f32 %v3123, 1.0
        %v3274 = vadd.f32 %v3124, 1.0
        %v3275 = vadd.f32 %v3125, 1.0
        %v3276 = vadd.f32 %v3126, 1.0
        %v3277 = vadd.f32 %v3127, 1.0
        %v3278 = vadd.f32 %v3128, 1.0
        %v3279 = vadd.f32 %v3129, 1.0
        %v3280 = vadd.f32 %v3130, 1.0
        %v3281 = vadd.f32 %v3131, 1.0
        %v3282 = vadd.f32 %v3132, 1.0
        %v3283 = vadd.f32 %v3133, 1.0
        %v3284 = vadd.f32 %v3134, 1.0
        %v3285 = vadd.f32 %v3135, 1.0
        %v3286 = vadd.f32 %v3136, 1.0
        %v3287 = vadd.f32 %v3137, 1.0
        %v3288 = vadd.f32 %v3138, 1.0
        %v3289 = vadd.f32 %v3139, 1.0
        %v3290 = vadd.f32 %v3140, 1.0
        %v3291 = vadd.f32 %v3141, 1.0
        %v3292 = vadd.f32 %v3142, 1.0
        %v3293 = vadd.f32 %v3143, 1.0
        %v3294 = vadd.f32 %v3144, 1.0
        %v3295 = vadd.f32 %v3145, 1.0
        %v3296 = vadd.f32 %v3146, 1.0
        %v3297 = vadd.f32 %v3147, 1.0
        %v3298 = vadd.f32 %v3148, 1.0
        %v3299 = vadd.f32 %v3149, 1.0
        %v3300 = vadd.f32 %v3150, 1.0
        %v3301 = vadd.f32 %v3151, 1.0
        %v3302 = vadd.f32 %v3152, 1.0
        %v3303 = vadd.f32 %v3153, 1.0
        %v3304 = vadd.f32 %v3154, 1.0
        %v3305 = vadd.f32 %v3155, 1.0
        %v3306 = vadd.f32 %v3156, 1.0
        %v3307 = vadd.f32 %v3157, 1.0
        %v3308 = vadd.f32 %v3158, 1.0
        %v3309 = vadd.f32 %v3159, 1.0
        %v3310 = vadd.f32 %v3160, 1.0
        %v3311 = vadd.f32 %v3161, 1.0
        %v3312 = vadd.f32 %v3162, 1.0
        %v3313 = vadd.f32 %v3163, 1.0
        %v3314 = vadd.f32 %v3164, 1.0
        %v3315 = vadd.f32 %v3165, 1.0
        %v3316 = vadd.f32 %v3166, 1.0
        %v3317 = vadd.f32 %v3167, 1.0
        %v3318 = vadd.f32 %v3168, 1.0
        %v3319 = vadd.f32 %v3169, 1.0
        %v3320 = vadd.f32 %v3170, 1.0
        %v3321 = vadd.f32 %v3171, 1.0
        %v3322 = vmul.f32 %v2722, %v3172
        %v3323 = vmul.f32 %v2723, %v3173
        %v3324 = vmul.f32 %v2724, %v3174
        %v3325 = vmul.f32 %v2725, %v3175
        %v3326 = vmul.f32 %v2726, %v3176
        %v3327 = vmul.f32 %v2727, %v3177
        %v3328 = vmul.f32 %v2728, %v3178
        %v3329 = vmul.f32 %v2729, %v3179
        %v3330 = vmul.f32 %v2730, %v3180
        %v3331 = vmul.f32 %v2731, %v3181
        %v3332 = vmul.f32 %v2732, %v3182
        %v3333 = vmul.f32 %v2733, %v3183
        %v3334 = vmul.f32 %v2734, %v3184
        %v3335 = vmul.f32 %v2735, %v3185
        %v3336 = vmul.f32 %v2736, %v3186
        %v3337 = vmul.f32 %v2737, %v3187
        %v3338 = vmul.f32 %v2738, %v3188
        %v3339 = vmul.f32 %v2739, %v3189
        %v3340 = vmul.f32 %v2740, %v3190
        %v3341 = vmul.f32 %v2741, %v3191
        %v3342 = vmul.f32 %v2742, %v3192
        %v3343 = vmul.f32 %v2743, %v3193
        %v3344 = vmul.f32 %v2744, %v3194
        %v3345 = vmul.f32 %v2745, %v3195
        %v3346 = vmul.f32 %v2746, %v3196
        %v3347 = vmul.f32 %v2747, %v3197
        %v3348 = vmul.f32 %v2748, %v3198
        %v3349 = vmul.f32 %v2749, %v3199
        %v3350 = vmul.f32 %v2750, %v3200
        %v3351 = vmul.f32 %v2751, %v3201
        %v3352 = vmul.f32 %v2752, %v3202
        %v3353 = vmul.f32 %v2753, %v3203
        %v3354 = vmul.f32 %v2754, %v3204
        %v3355 = vmul.f32 %v2755, %v3205
        %v3356 = vmul.f32 %v2756, %v3206
        %v3357 = vmul.f32 %v2757, %v3207
        %v3358 = vmul.f32 %v2758, %v3208
        %v3359 = vmul.f32 %v2759, %v3209
        %v3360 = vmul.f32 %v2760, %v3210
        %v3361 = vmul.f32 %v2761, %v3211
        %v3362 = vmul.f32 %v2762, %v3212
        %v3363 = vmul.f32 %v2763, %v3213
        %v3364 = vmul.f32 %v2764, %v3214
        %v3365 = vmul.f32 %v2765, %v3215
        %v3366 = vmul.f32 %v2766, %v3216
        %v3367 = vmul.f32 %v2767, %v3217
        %v3368 = vmul.f32 %v2768, %v3218
        %v3369 = vmul.f32 %v2769, %v3219
        %v3370 = vmul.f32 %v2770, %v3220
        %v3371 = vmul.f32 %v2771, %v3221
        %v3372 = vmul.f32 %v2772, %v3222
        %v3373 = vmul.f32 %v2773, %v3223
        %v3374 = vmul.f32 %v2774, %v3224
        %v3375 = vmul.f32 %v2775, %v3225
        %v3376 = vmul.f32 %v2776, %v3226
        %v3377 = vmul.f32 %v2777, %v3227
        %v3378 = vmul.f32 %v2778, %v3228
        %v3379 = vmul.f32 %v2779, %v3229
        %v3380 = vmul.f32 %v2780, %v3230
        %v3381 = vmul.f32 %v2781, %v3231
        %v3382 = vmul.f32 %v2782, %v3232
        %v3383 = vmul.f32 %v2783, %v3233
        %v3384 = vmul.f32 %v2784, %v3234
        %v3385 = vmul.f32 %v2785, %v3235
        %v3386 = vmul.f32 %v2786, %v3236
        %v3387 = vmul.f32 %v2787, %v3237
        %v3388 = vmul.f32 %v2788, %v3238
        %v3389 = vmul.f32 %v2789, %v3239
        %v3390 = vmul.f32 %v2790, %v3240
        %v3391 = vmul.f32 %v2791, %v3241
        %v3392 = vmul.f32 %v2792, %v3242
        %v3393 = vmul.f32 %v2793, %v3243
        %v3394 = vmul.f32 %v2794, %v3244
        %v3395 = vmul.f32 %v2795, %v3245
        %v3396 = vmul.f32 %v2796, %v3246
        %v3397 = vmul.f32 %v2797, %v3247
        %v3398 = vmul.f32 %v2798, %v3248
        %v3399 = vmul.f32 %v2799, %v3249
        %v3400 = vmul.f32 %v2800, %v3250
        %v3401 = vmul.f32 %v2801, %v3251
        %v3402 = vmul.f32 %v2802, %v3252
        %v3403 = vmul.f32 %v2803, %v3253
        %v3404 = vmul.f32 %v2804, %v3254
        %v3405 = vmul.f32 %v2805, %v3255
        %v3406 = vmul.f32 %v2806, %v3256
        %v3407 = vmul.f32 %v2807, %v3257
        %v3408 = vmul.f32 %v2808, %v3258
        %v3409 = vmul.f32 %v2809, %v3259
        %v3410 = vmul.f32 %v2810, %v3260
        %v3411 = vmul.f32 %v2811, %v3261
        %v3412 = vmul.f32 %v2812, %v3262
        %v3413 = vmul.f32 %v2813, %v3263
        %v3414 = vmul.f32 %v2814, %v3264
        %v3415 = vmul.f32 %v2815, %v3265
        %v3416 = vmul.f32 %v2816, %v3266
        %v3417 = vmul.f32 %v2817, %v3267
        %v3418 = vmul.f32 %v2818, %v3268
        %v3419 = vmul.f32 %v2819, %v3269
        %v3420 = vmul.f32 %v2820, %v3270
        %v3421 = vmul.f32 %v2821, %v3271
        %v3422 = vmul.f32 %v2822, %v3272
        %v3423 = vmul.f32 %v2823, %v3273
        %v3424 = vmul.f32 %v2824, %v3274
        %v3425 = vmul.f32 %v2825, %v3275
        %v3426 = vmul.f32 %v2826, %v3276
        %v3427 = vmul.f32 %v2827, %v3277
        %v3428 = vmul.f32 %v2828, %v3278
        %v3429 = vmul.f32 %v2829, %v3279
        %v3430 = vmul.f32 %v2830, %v3280
        %v3431 = vmul.f32 %v2831, %v3281
        %v3432 = vmul.f32 %v2832, %v3282
        %v3433 = vmul.f32 %v2833, %v3283
        %v3434 = vmul.f32 %v2834, %v3284
        %v3435 = vmul.f32 %v2835, %v3285
        %v3436 = vmul.f32 %v2836, %v3286
        %v3437 = vmul.f32 %v2837, %v3287
        %v3438 = vmul.f32 %v2838, %v3288
        %v3439 = vmul.f32 %v2839, %v3289
        %v3440 = vmul.f32 %v2840, %v3290
        %v3441 = vmul.f32 %v2841, %v3291
        %v3442 = vmul.f32 %v2842, %v3292
        %v3443 = vmul.f32 %v2843, %v3293
        %v3444 = vmul.f32 %v2844, %v3294
        %v3445 = vmul.f32 %v2845, %v3295
        %v3446 = vmul.f32 %v2846, %v3296
        %v3447 = vmul.f32 %v2847, %v3297
        %v3448 = vmul.f32 %v2848, %v3298
        %v3449 = vmul.f32 %v2849, %v3299
        %v3450 = vmul.f32 %v2850, %v3300
        %v3451 = vmul.f32 %v2851, %v3301
        %v3452 = vmul.f32 %v2852, %v3302
        %v3453 = vmul.f32 %v2853, %v3303
        %v3454 = vmul.f32 %v2854, %v3304
        %v3455 = vmul.f32 %v2855, %v3305
        %v3456 = vmul.f32 %v2856, %v3306
        %v3457 = vmul.f32 %v2857, %v3307
        %v3458 = vmul.f32 %v2858, %v3308
        %v3459 = vmul.f32 %v2859, %v3309
        %v3460 = vmul.f32 %v2860, %v3310
        %v3461 = vmul.f32 %v2861, %v3311
        %v3462 = vmul.f32 %v2862, %v3312
        %v3463 = vmul.f32 %v2863, %v3313
        %v3464 = vmul.f32 %v2864, %v3314
        %v3465 = vmul.f32 %v2865, %v3315
        %v3466 = vmul.f32 %v2866, %v3316
        %v3467 = vmul.f32 %v2867, %v3317
        %v3468 = vmul.f32 %v2868, %v3318
        %v3469 = vmul.f32 %v2869, %v3319
        %v3470 = vmul.f32 %v2870, %v3320
        %v3471 = vmul.f32 %v2871, %v3321
        %3472 = vst [vmem:[%s317] sm:$0xff] %v3322
        %3473 = vst [vmem:[%s317 + $0x8] sm:$0xff] %v3323
        %3474 = vst [vmem:[%s317 + $0x10] sm:$0xff] %v3324
        %3475 = vst [vmem:[%s317 + $0x18] sm:$0xff] %v3325
        %3476 = vst [vmem:[%s317 + $0x20] sm:$0xff] %v3326
        %3477 = vst [vmem:[%s317 + $0x28] sm:$0xff] %v3327
        %3478 = vst [vmem:[%s317 + $0x30] sm:$0xff] %v3328
        %3479 = vst [vmem:[%s317 + $0x38] sm:$0xff] %v3329
        %3480 = vst [vmem:[%s317 + $0x40] sm:$0xff] %v3330
        %3481 = vst [vmem:[%s317 + $0x48] sm:$0xff] %v3331
        %3482 = vst [vmem:[%s317 + $0x50] sm:$0xff] %v3332
        %3483 = vst [vmem:[%s317 + $0x58] sm:$0xff] %v3333
        %3484 = vst [vmem:[%s317 + $0x60] sm:$0xff] %v3334
        %3485 = vst [vmem:[%s317 + $0x68] sm:$0xff] %v3335
        %3486 = vst [vmem:[%s317 + $0x70] sm:$0xff] %v3336
        %3487 = vst [vmem:[%s317 + $0x78] sm:$0xff] %v3337
        %3488 = vst [vmem:[%s317 + $0x80] sm:$0xff] %v3338
        %3489 = vst [vmem:[%s317 + $0x88] sm:$0xff] %v3339
        %3490 = vst [vmem:[%s317 + $0x90] sm:$0xff] %v3340
        %3491 = vst [vmem:[%s317 + $0x98] sm:$0xff] %v3341
        %3492 = vst [vmem:[%s317 + $0xa0] sm:$0xff] %v3342
        %3493 = vst [vmem:[%s317 + $0xa8] sm:$0xff] %v3343
        %3494 = vst [vmem:[%s317 + $0xb0] sm:$0xff] %v3344
        %3495 = vst [vmem:[%s317 + $0xb8] sm:$0xff] %v3345
        %3496 = vst [vmem:[%s317 + $0xc0] sm:$0xff] %v3346
        %3497 = vst [vmem:[%s317 + $0xc8] sm:$0xff] %v3347
        %3498 = vst [vmem:[%s317 + $0xd0] sm:$0xff] %v3348
        %3499 = vst [vmem:[%s317 + $0xd8] sm:$0xff] %v3349
        %3500 = vst [vmem:[%s317 + $0xe0] sm:$0xff] %v3350
        %3501 = vst [vmem:[%s317 + $0xe8] sm:$0xff] %v3351
        %3502 = vst [vmem:[%s317 + $0xf0] sm:$0xff] %v3352
        %3503 = vst [vmem:[%s317 + $0xf8] sm:$0xff] %v3353
        %3504 = vst [vmem:[%s317 + $0x100] sm:$0xff] %v3354
        %3505 = vst [vmem:[%s317 + $0x108] sm:$0xff] %v3355
        %3506 = vst [vmem:[%s317 + $0x110] sm:$0xff] %v3356
        %3507 = vst [vmem:[%s317 + $0x118] sm:$0xff] %v3357
        %3508 = vst [vmem:[%s317 + $0x120] sm:$0xff] %v3358
        %3509 = vst [vmem:[%s317 + $0x128] sm:$0xff] %v3359
        %3510 = vst [vmem:[%s317 + $0x130] sm:$0xff] %v3360
        %3511 = vst [vmem:[%s317 + $0x138] sm:$0xff] %v3361
        %3512 = vst [vmem:[%s317 + $0x140] sm:$0xff] %v3362
        %3513 = vst [vmem:[%s317 + $0x148] sm:$0xff] %v3363
        %3514 = vst [vmem:[%s317 + $0x150] sm:$0xff] %v3364
        %3515 = vst [vmem:[%s317 + $0x158] sm:$0xff] %v3365
        %3516 = vst [vmem:[%s317 + $0x160] sm:$0xff] %v3366
        %3517 = vst [vmem:[%s317 + $0x168] sm:$0xff] %v3367
        %3518 = vst [vmem:[%s317 + $0x170] sm:$0xff] %v3368
        %3519 = vst [vmem:[%s317 + $0x178] sm:$0xff] %v3369
        %3520 = vst [vmem:[%s317 + $0x180] sm:$0xff] %v3370
        %3521 = vst [vmem:[%s317 + $0x188] sm:$0xff] %v3371
        %3522 = vst [vmem:[%s317 + $0x190] sm:$0xff] %v3372
        %3523 = vst [vmem:[%s317 + $0x198] sm:$0xff] %v3373
        %3524 = vst [vmem:[%s317 + $0x1a0] sm:$0xff] %v3374
        %3525 = vst [vmem:[%s317 + $0x1a8] sm:$0xff] %v3375
        %3526 = vst [vmem:[%s317 + $0x1b0] sm:$0xff] %v3376
        %3527 = vst [vmem:[%s317 + $0x1b8] sm:$0xff] %v3377
        %3528 = vst [vmem:[%s317 + $0x1c0] sm:$0xff] %v3378
        %3529 = vst [vmem:[%s317 + $0x1c8] sm:$0xff] %v3379
        %3530 = vst [vmem:[%s317 + $0x1d0] sm:$0xff] %v3380
        %3531 = vst [vmem:[%s317 + $0x1d8] sm:$0xff] %v3381
        %3532 = vst [vmem:[%s317 + $0x1e0] sm:$0xff] %v3382
        %3533 = vst [vmem:[%s317 + $0x1e8] sm:$0xff] %v3383
        %3534 = vst [vmem:[%s317 + $0x1f0] sm:$0xff] %v3384
        %3535 = vst [vmem:[%s317 + $0x1f8] sm:$0xff] %v3385
        %3536 = vst [vmem:[%s317 + $0x200] sm:$0xff] %v3386
        %3537 = vst [vmem:[%s317 + $0x208] sm:$0xff] %v3387
        %3538 = vst [vmem:[%s317 + $0x210] sm:$0xff] %v3388
        %3539 = vst [vmem:[%s317 + $0x218] sm:$0xff] %v3389
        %3540 = vst [vmem:[%s317 + $0x220] sm:$0xff] %v3390
        %3541 = vst [vmem:[%s317 + $0x228] sm:$0xff] %v3391
        %3542 = vst [vmem:[%s317 + $0x230] sm:$0xff] %v3392
        %3543 = vst [vmem:[%s317 + $0x238] sm:$0xff] %v3393
        %3544 = vst [vmem:[%s317 + $0x240] sm:$0xff] %v3394
        %3545 = vst [vmem:[%s317 + $0x248] sm:$0xff] %v3395
        %3546 = vst [vmem:[%s317 + $0x250] sm:$0xff] %v3396
        %3547 = vst [vmem:[%s317 + $0x258] sm:$0xff] %v3397
        %3548 = vst [vmem:[%s317 + $0x260] sm:$0xff] %v3398
        %3549 = vst [vmem:[%s317 + $0x268] sm:$0xff] %v3399
        %3550 = vst [vmem:[%s317 + $0x270] sm:$0xff] %v3400
        %3551 = vst [vmem:[%s317 + $0x278] sm:$0xff] %v3401
        %3552 = vst [vmem:[%s317 + $0x280] sm:$0xff] %v3402
        %3553 = vst [vmem:[%s317 + $0x288] sm:$0xff] %v3403
        %3554 = vst [vmem:[%s317 + $0x290] sm:$0xff] %v3404
        %3555 = vst [vmem:[%s317 + $0x298] sm:$0xff] %v3405
        %3556 = vst [vmem:[%s317 + $0x2a0] sm:$0xff] %v3406
        %3557 = vst [vmem:[%s317 + $0x2a8] sm:$0xff] %v3407
        %3558 = vst [vmem:[%s317 + $0x2b0] sm:$0xff] %v3408
        %3559 = vst [vmem:[%s317 + $0x2b8] sm:$0xff] %v3409
        %3560 = vst [vmem:[%s317 + $0x2c0] sm:$0xff] %v3410
        %3561 = vst [vmem:[%s317 + $0x2c8] sm:$0xff] %v3411
        %3562 = vst [vmem:[%s317 + $0x2d0] sm:$0xff] %v3412
        %3563 = vst [vmem:[%s317 + $0x2d8] sm:$0xff] %v3413
        %3564 = vst [vmem:[%s317 + $0x2e0] sm:$0xff] %v3414
        %3565 = vst [vmem:[%s317 + $0x2e8] sm:$0xff] %v3415
        %3566 = vst [vmem:[%s317 + $0x2f0] sm:$0xff] %v3416
        %3567 = vst [vmem:[%s317 + $0x2f8] sm:$0xff] %v3417
        %3568 = vst [vmem:[%s317 + $0x300] sm:$0xff] %v3418
        %3569 = vst [vmem:[%s317 + $0x308] sm:$0xff] %v3419
        %3570 = vst [vmem:[%s317 + $0x310] sm:$0xff] %v3420
        %3571 = vst [vmem:[%s317 + $0x318] sm:$0xff] %v3421
        %3572 = vst [vmem:[%s317 + $0x320] sm:$0xff] %v3422
        %3573 = vst [vmem:[%s317 + $0x328] sm:$0xff] %v3423
        %3574 = vst [vmem:[%s317 + $0x330] sm:$0xff] %v3424
        %3575 = vst [vmem:[%s317 + $0x338] sm:$0xff] %v3425
        %3576 = vst [vmem:[%s317 + $0x340] sm:$0xff] %v3426
        %3577 = vst [vmem:[%s317 + $0x348] sm:$0xff] %v3427
        %3578 = vst [vmem:[%s317 + $0x350] sm:$0xff] %v3428
        %3579 = vst [vmem:[%s317 + $0x358] sm:$0xff] %v3429
        %3580 = vst [vmem:[%s317 + $0x360] sm:$0xff] %v3430
        %3581 = vst [vmem:[%s317 + $0x368] sm:$0xff] %v3431
        %3582 = vst [vmem:[%s317 + $0x370] sm:$0xff] %v3432
        %3583 = vst [vmem:[%s317 + $0x378] sm:$0xff] %v3433
        %3584 = vst [vmem:[%s317 + $0x380] sm:$0xff] %v3434
        %3585 = vst [vmem:[%s317 + $0x388] sm:$0xff] %v3435
        %3586 = vst [vmem:[%s317 + $0x390] sm:$0xff] %v3436
        %3587 = vst [vmem:[%s317 + $0x398] sm:$0xff] %v3437
        %3588 = vst [vmem:[%s317 + $0x3a0] sm:$0xff] %v3438
        %3589 = vst [vmem:[%s317 + $0x3a8] sm:$0xff] %v3439
        %3590 = vst [vmem:[%s317 + $0x3b0] sm:$0xff] %v3440
        %3591 = vst [vmem:[%s317 + $0x3b8] sm:$0xff] %v3441
        %3592 = vst [vmem:[%s317 + $0x3c0] sm:$0xff] %v3442
        %3593 = vst [vmem:[%s317 + $0x3c8] sm:$0xff] %v3443
        %3594 = vst [vmem:[%s317 + $0x3d0] sm:$0xff] %v3444
        %3595 = vst [vmem:[%s317 + $0x3d8] sm:$0xff] %v3445
        %3596 = vst [vmem:[%s317 + $0x3e0] sm:$0xff] %v3446
        %3597 = vst [vmem:[%s317 + $0x3e8] sm:$0xff] %v3447
        %3598 = vst [vmem:[%s317 + $0x3f0] sm:$0xff] %v3448
        %3599 = vst [vmem:[%s317 + $0x3f8] sm:$0xff] %v3449
        %3600 = vst [vmem:[%s317 + $0x400] sm:$0xff] %v3450
        %3601 = vst [vmem:[%s317 + $0x408] sm:$0xff] %v3451
        %3602 = vst [vmem:[%s317 + $0x410] sm:$0xff] %v3452
        %3603 = vst [vmem:[%s317 + $0x418] sm:$0xff] %v3453
        %3604 = vst [vmem:[%s317 + $0x420] sm:$0xff] %v3454
        %3605 = vst [vmem:[%s317 + $0x428] sm:$0xff] %v3455
        %3606 = vst [vmem:[%s317 + $0x430] sm:$0xff] %v3456
        %3607 = vst [vmem:[%s317 + $0x438] sm:$0xff] %v3457
        %3608 = vst [vmem:[%s317 + $0x440] sm:$0xff] %v3458
        %3609 = vst [vmem:[%s317 + $0x448] sm:$0xff] %v3459
        %3610 = vst [vmem:[%s317 + $0x450] sm:$0xff] %v3460
        %3611 = vst [vmem:[%s317 + $0x458] sm:$0xff] %v3461
        %3612 = vst [vmem:[%s317 + $0x460] sm:$0xff] %v3462
        %3613 = vst [vmem:[%s317 + $0x468] sm:$0xff] %v3463
        %3614 = vst [vmem:[%s317 + $0x470] sm:$0xff] %v3464
        %3615 = vst [vmem:[%s317 + $0x478] sm:$0xff] %v3465
        %3616 = vst [vmem:[%s317 + $0x480] sm:$0xf] %v3466
        %3617 = vst [vmem:[%s317 + $0x488] sm:$0xf] %v3467
        %3618 = vst [vmem:[%s317 + $0x490] sm:$0xf] %v3468
        %3619 = vst [vmem:[%s317 + $0x498] sm:$0xf] %v3469
        %3620 = vst [vmem:[%s317 + $0x4a0] sm:$0xf] %v3470
        %3621 = vst [vmem:[%s317 + $0x4a8] sm:$0xf] %v3471
        %s3622 = sand.u32 %s147, 1
        %s3623 = scalar_lea.sflag [#allocation4], %s3622
        %s3624 = sand.u32 %s147, 1
        %s3625 = smul.addr %s3624, 1200
        %s3626 = scalar_lea.vmem [#allocation11], %s3625
        // Predicated region
        $region61: #{tpu_custom_call.1} parent=39 // pred_check
          %p3627 = pneg %p157
        $region62: #{tpu_custom_call.1} parent=39 // pred_check_branch
          %3629 = sbr.rel (%p3627) target = $region64
        $region63: #{tpu_custom_call.1} parent=39 // pred_region
          %s3630 = smul.u32 6, %s24
          %s3632 = ssub.s32 19200, 19200
          %3633 = vsyncadd %s3623, %s3632
          %s3634 = smul.addr %s3630, 128
          %s3635 = scalar_lea.hbm %s5, %s3634
          %s3636 = sshll.u32 %s3626, 4
          %s3637 = int_to_ptr.vmem [resolvable:$true] %s3636
          %3642 = dma.vmem_to_hbm [thread:$0]  %s3637, 19200, %s3635, %s3623, 768, 1536, 48
        $region64: #{tpu_custom_call.1} parent=39 // pred_fallthru
          _
      $region40: #{tpu_custom_call.1} parent=5 // pred_fallthru
        _
      %p3643 = scmp.le.s32.totalorder 2, %s19
      // Predicated region
      $region65: #{tpu_custom_call.1} parent=5 // pred_check
        %p3644 = pneg %p3643
      $region66: #{tpu_custom_call.1} parent=5 // pred_check_branch
        %3646 = sbr.rel (%p3644) target = $region68
      $region67: #{tpu_custom_call.1} parent=5 // pred_region
        %s3647 = ssub.s32 %s19, 2
        // Predicated region
        $region69: #{tpu_custom_call.1} parent=67 // pred_check
          %p3648 = pneg %p163
        $region70: #{tpu_custom_call.1} parent=67 // pred_check_branch
          %3650 = sbr.rel (%p3648) target = $region72
        $region71: #{tpu_custom_call.1} parent=67 // pred_region
          %s3651 = sand.u32 %s148, 1
          %s3652 = scalar_lea.sflag [#allocation4], %s3651
          %s3653 = sand.u32 %s148, 1
          %s3654 = smul.addr %s3653, 1200
          %s3655 = scalar_lea.vmem [#allocation11], %s3654
          %3656 = dma.done %s3652, 19200
        $region72: #{tpu_custom_call.1} parent=67 // pred_fallthru
          _
      $region68: #{tpu_custom_call.1} parent=5 // pred_fallthru
        _
    $region6: #{tpu_custom_call.1} parent=1 // loop_footer
      %s23 = sadd.s32 1, %s19
    $region7: #{tpu_custom_call.1} parent=1 // loop_footer_branch
      %18 = sbr.rel target = $region3
    $region8: #{tpu_custom_call.1} parent=1 // loop_exit
      _
    %3657 = vsyncpa [#allocation3], 1
    %s3658 = scalar_lea.sflag [#allocation3], 1
    %3659 = vsyncpa %s3658, 1
    %3660 = vsyncpa [#allocation6], 1
    %3661 = vsyncpa [#allocation9], 1
    %s3662 = scalar_lea.sflag [#allocation9], 1
    %3663 = vsyncpa %s3662, 1
    %3664 = vsyncpa [#allocation4], 1
    %s3665 = scalar_lea.sflag [#allocation4], 1
    %3666 = vsyncpa %s3665, 1

</llo_original>
